<compile_context>
chip_gen: v6e
topology: v6e:2x2x1
jax: 0.10.0
libtpu: 0.0.40
codegen_flags: <defaults>
</compile_context>

<pallas_src>
import functools

import jax
import jax.numpy as jnp
from jax.experimental import pallas as pl
from jax.experimental.pallas import tpu as pltpu


# ----------------------------------------------------------------------------
# Helpers
# ----------------------------------------------------------------------------
def _round_up(x, m):
    return (x + m - 1) // m * m


def _cdiv(a, b):
    return -(-a // b)


def _vmem_caps():
    """Generation-aware (vmem_limit_bytes, per-call tile budget)."""
    cap = None
    try:
        info = pltpu.get_tpu_info()
        cap = getattr(info, "vmem_capacity_bytes", None)
    except Exception:
        cap = None
    if cap is None:
        cap = 64 * 1024 * 1024                 # conservative (v7x-sized) fallback
    if cap <= 64 * 1024 * 1024:                # v7x-class: 64 MiB physical
        return 40 * 1024 * 1024, 22 * 1024 * 1024
    return 96 * 1024 * 1024, 48 * 1024 * 1024  # v5e / v6e: 128 MiB physical


_VMEM_LIMIT_BYTES, _TILE_BUDGET_BYTES = _vmem_caps()


def _compiler_params(semantics):
    return pltpu.CompilerParams(dimension_semantics=semantics,
                                vmem_limit_bytes=_VMEM_LIMIT_BYTES)


def _probe_buffered_one():
    """Check that pl.Buffered(1) (single-buffered resident blocks) lowers."""
    try:
        spec = pl.BlockSpec((8, 128), lambda i: (0, 0),
                            pipeline_mode=pl.Buffered(1))

        def k(x_ref, o_ref):
            o_ref[...] = x_ref[...] + 1.0

        out = pl.pallas_call(
            k, grid=(2,),
            in_specs=[spec],
            out_specs=pl.BlockSpec((8, 128), lambda i: (0, 0)),
            out_shape=jax.ShapeDtypeStruct((8, 128), jnp.float32),
        )(jnp.zeros((8, 128), jnp.float32))
        jax.block_until_ready(out)
        return True
    except Exception:
        return False


_HAS_BUFFERED_ONE = _probe_buffered_one()


def _resident_spec(block_shape):
    """BlockSpec for an operand that is identical for every grid step."""
    ndim = len(block_shape)
    index_map = lambda i, _n=ndim: (0,) * _n
    if _HAS_BUFFERED_ONE:
        return pl.BlockSpec(block_shape, index_map, pipeline_mode=pl.Buffered(1))
    return pl.BlockSpec(block_shape, index_map)


def _pick_tiles(m, per_row_bytes, fixed_bytes, budget_bytes, *, min_tiles=1):
    """Largest M-tile (multiple of 8) fitting the VMEM budget, balanced so
    m_pad == round_up(m, 8) whenever possible."""
    m8 = _round_up(max(m, 1), 8)
    avail = max(budget_bytes - fixed_bytes, 8 * per_row_bytes)
    tm_max = max(8, (avail // per_row_bytes) // 8 * 8)
    tm_max = min(tm_max, m8)
    n_tiles = max(min_tiles, _cdiv(m8, tm_max))
    tm = _round_up(_cdiv(m8, n_tiles), 8)
    n_tiles = _cdiv(m8, tm)
    return tm, n_tiles, tm * n_tiles


def _im2col_nhwc(x, kh, kw, stride, pad):
    """NHWC -> (N*OH*OW, KH*KW*C) patches, K ordered (kh, kw, c)."""
    n, h, w, c = x.shape
    oh = (h + 2 * pad - kh) // stride + 1
    ow = (w + 2 * pad - kw) // stride + 1
    xp = jnp.pad(x, ((0, 0), (pad, pad), (pad, pad), (0, 0)))
    cols = []
    for i in range(kh):
        for j in range(kw):
            cols.append(xp[:, i:i + stride * oh:stride,
                           j:j + stride * ow:stride, :])
    p = jnp.stack(cols, axis=3)                       # (N, OH, OW, KH*KW, C)
    return p.reshape(n * oh * ow, kh * kw * c), oh, ow


def _prep_weight(w_oihw, k_pad, oc_pad):
    oc, ic, kh, kw = w_oihw.shape
    wmat = w_oihw.transpose(2, 3, 1, 0).reshape(kh * kw * ic, oc)  # (kh,kw,ic) x oc
    wmat = jnp.pad(wmat, ((0, k_pad - kh * kw * ic), (0, oc_pad - oc)))
    return wmat.astype(jnp.bfloat16)


# ----------------------------------------------------------------------------
# Pallas kernels
# ----------------------------------------------------------------------------
def _conv_bias_act_kernel(a_ref, w_ref, b_ref, o_ref, *, slope):
    """(tm, Kp) @ (Kp, OCp) + bias [+ LeakyReLU], stored in o_ref.dtype."""
    acc = jnp.dot(a_ref[...], w_ref[...], preferred_element_type=jnp.float32)
    acc = acc + b_ref[...]
    if slope is not None:
        acc = jnp.maximum(acc, slope * acc)          # LeakyReLU: 1 mul + 1 max
    o_ref[...] = acc.astype(o_ref.dtype)


def _conv_bn_lrelu_kernel(a_ref, w_ref, g_ref, bt_ref, o_ref, acc_ref, *,
                          tm, m_real, eps, slope):
    """Fused conv (bias-free) + training-mode BatchNorm + LeakyReLU.

    The full (m_pad, OCp) f32 conv output lives in a VMEM scratch across the
    sequential M grid; at the last tile per-channel batch statistics are
    reduced in-kernel, folded into scale/shift, applied, and the bf16 result
    is stored once.  Zero-padded rows contribute exactly 0 to the sums
    because the conv has no bias.
    """
    i = pl.program_id(0)
    acc = jnp.dot(a_ref[...], w_ref[...], preferred_element_type=jnp.float32)
    r0 = pl.multiple_of(i * tm, 8)
    acc_ref[pl.ds(r0, tm), :] = acc

    @pl.when(i == pl.num_programs(0) - 1)
    def _():
        y = acc_ref[...]                                        # (m_pad, OCp)
        inv_n = jnp.float32(1.0 / m_real)
        mean = jnp.sum(y, axis=0, keepdims=True) * inv_n
        var = jnp.maximum(
            jnp.sum(y * y, axis=0, keepdims=True) * inv_n - mean * mean, 0.0)
        scale = g_ref[...] * jax.lax.rsqrt(var + eps)
        shift = bt_ref[...] - mean * scale
        z = y * scale + shift
        o_ref[...] = jnp.maximum(z, slope * z).astype(o_ref.dtype)


def _conv_stats_kernel(a_ref, w_ref, o_ref, s_ref, q_ref, s_sc, q_sc):
    """Fallback pass 1: conv matmul + cross-tile per-channel sum / sumsq
    accumulated in VMEM scratch (single (1, OCp) outputs, no XLA reduction)."""
    i = pl.program_id(0)

    @pl.when(i == 0)
    def _():
        s_sc[...] = jnp.zeros_like(s_sc)
        q_sc[...] = jnp.zeros_like(q_sc)

    acc = jnp.dot(a_ref[...], w_ref[...], preferred_element_type=jnp.float32)
    o_ref[...] = acc
    s_sc[...] += jnp.sum(acc, axis=0, keepdims=True)
    q_sc[...] += jnp.sum(acc * acc, axis=0, keepdims=True)

    @pl.when(i == pl.num_programs(0) - 1)
    def _():
        s_ref[...] = s_sc[...]
        q_ref[...] = q_sc[...]


def _scale_shift_lrelu_kernel(x_ref, sc_ref, sh_ref, o_ref, *, slope):
    """Fallback pass 2: y = x*scale + shift, LeakyReLU, bf16 store."""
    z = x_ref[...] * sc_ref[...] + sh_ref[...]
    o_ref[...] = jnp.maximum(z, slope * z).astype(o_ref.dtype)


# ----------------------------------------------------------------------------
# Layer wrappers
# ----------------------------------------------------------------------------
def conv2d_lrelu_pallas(x_nhwc, w_oihw, bias, *, stride, pad, slope,
                        out_dtype=jnp.bfloat16):
    """Conv2d (PyTorch OIHW weights) + bias + optional LeakyReLU."""
    n = x_nhwc.shape[0]
    oc, _, kh, kw = w_oihw.shape
    patches, oh, ow = _im2col_nhwc(x_nhwc, kh, kw, stride, pad)
    m, k = patches.shape
    k_pad, oc_pad = _round_up(k, 128), _round_up(oc, 128)

    out_bytes = jnp.dtype(out_dtype).itemsize
    wbuf = 1 if _HAS_BUFFERED_ONE else 2
    fixed = wbuf * (k_pad * oc_pad * 2 + oc_pad * 4)
    per_row = 2 * k_pad * 2 + 2 * oc_pad * out_bytes     # double-buffered tiles
    # >= 2 tiles so the "parallel" M axis can feed both v7x TensorCores.
    tm, n_tiles, m_pad = _pick_tiles(m, per_row, fixed, _TILE_BUDGET_BYTES,
                                     min_tiles=2)

    a = jnp.pad(patches.astype(jnp.bfloat16), ((0, m_pad - m), (0, k_pad - k)))
    wmat = _prep_weight(w_oihw, k_pad, oc_pad)
    bvec = (jnp.zeros((oc,), jnp.float32) if bias is None
            else bias.astype(jnp.float32))
    bvec = jnp.pad(bvec, (0, oc_pad - oc)).reshape(1, oc_pad)

    flat = pl.pallas_call(
        functools.partial(_conv_bias_act_kernel, slope=slope),
        grid=(n_tiles,),
        in_specs=[
            pl.BlockSpec((tm, k_pad), lambda i: (i, 0)),
            _resident_spec((k_pad, oc_pad)),
            _resident_spec((1, oc_pad)),
        ],
        out_specs=pl.BlockSpec((tm, oc_pad), lambda i: (i, 0)),
        out_shape=jax.ShapeDtypeStruct((m_pad, oc_pad), out_dtype),
        compiler_params=_compiler_params(("parallel",)),
    )(a, wmat, bvec)
    return flat, dict(n=n, oh=oh, ow=ow, oc=oc, oc_pad=oc_pad, m=m, m_pad=m_pad)


def conv2d_bn_lrelu_pallas(x_nhwc, w_oihw, gamma, beta, *, stride, pad,
                           slope=0.2, eps=1e-5):
    """Conv2d (bias-free) + BatchNorm2d (batch stats, training mode) + LeakyReLU.

    Fully fused in one pallas_call whenever the f32 conv output fits VMEM;
    otherwise a two-pass path with in-kernel stats accumulation.  bf16 output.
    The exactness of the padded-row trick requires a bias-free conv, which is
    structurally guaranteed (no bias argument on this path).
    """
    n = x_nhwc.shape[0]
    oc, _, kh, kw = w_oihw.shape
    patches, oh, ow = _im2col_nhwc(x_nhwc, kh, kw, stride, pad)
    m, k = patches.shape
    k_pad, oc_pad = _round_up(k, 128), _round_up(oc, 128)
    m8 = _round_up(m, 8)

    wmat = _prep_weight(w_oihw, k_pad, oc_pad)
    g = jnp.pad(gamma.astype(jnp.float32), (0, oc_pad - oc)).reshape(1, oc_pad)
    b = jnp.pad(beta.astype(jnp.float32), (0, oc_pad - oc)).reshape(1, oc_pad)

    wbuf = 1 if _HAS_BUFFERED_ONE else 2
    fixed_w = wbuf * (k_pad * oc_pad * 2 + 2 * oc_pad * 4)

    # Fused-path VMEM footprint: f32 full scratch + bf16 resident output (x2
    # buffers) + patch tile (double-buffered).
    fused_fixed = fixed_w + m8 * oc_pad * 4 + 2 * m8 * oc_pad * 2
    fused_per_row = 2 * k_pad * 2
    if fused_fixed + 2 * 8 * fused_per_row <= _TILE_BUDGET_BYTES:
        tm, n_tiles, m_pad = _pick_tiles(m, fused_per_row, fused_fixed,
                                         _TILE_BUDGET_BYTES)
        a = jnp.pad(patches.astype(jnp.bfloat16),
                    ((0, m_pad - m), (0, k_pad - k)))
        flat = pl.pallas_call(
            functools.partial(_conv_bn_lrelu_kernel, tm=tm, m_real=m,
                              eps=eps, slope=slope),
            grid=(n_tiles,),
            in_specs=[
                pl.BlockSpec((tm, k_pad), lambda i: (i, 0)),
                _resident_spec((k_pad, oc_pad)),
                _resident_spec((1, oc_pad)),
                _resident_spec((1, oc_pad)),
            ],
            out_specs=pl.BlockSpec((m_pad, oc_pad), lambda i: (0, 0)),
            out_shape=jax.ShapeDtypeStruct((m_pad, oc_pad), jnp.bfloat16),
            scratch_shapes=[pltpu.VMEM((m_pad, oc_pad), jnp.float32)],
            compiler_params=_compiler_params(("arbitrary",)),
        )(a, wmat, g, b)
        return flat, dict(n=n, oh=oh, ow=ow, oc=oc, oc_pad=oc_pad,
                          m=m, m_pad=m_pad)

    # ---- Fallback: two passes, stats reduced in-kernel -----------------------
    per_row = 2 * k_pad * 2 + 2 * oc_pad * 4
    tm, n_tiles, m_pad = _pick_tiles(m, per_row, fixed_w, _TILE_BUDGET_BYTES)
    a = jnp.pad(patches.astype(jnp.bfloat16), ((0, m_pad - m), (0, k_pad - k)))
    conv_f32, sums, sqs = pl.pallas_call(
        _conv_stats_kernel,
        grid=(n_tiles,),
        in_specs=[
            pl.BlockSpec((tm, k_pad), lambda i: (i, 0)),
            _resident_spec((k_pad, oc_pad)),
        ],
        out_specs=(
            pl.BlockSpec((tm, oc_pad), lambda i: (i, 0)),
            pl.BlockSpec((1, oc_pad), lambda i: (0, 0)),
            pl.BlockSpec((1, oc_pad), lambda i: (0, 0)),
        ),
        out_shape=(
            jax.ShapeDtypeStruct((m_pad, oc_pad), jnp.float32),
            jax.ShapeDtypeStruct((1, oc_pad), jnp.float32),
            jax.ShapeDtypeStruct((1, oc_pad), jnp.float32),
        ),
        scratch_shapes=[pltpu.VMEM((1, oc_pad), jnp.float32),
                        pltpu.VMEM((1, oc_pad), jnp.float32)],
        compiler_params=_compiler_params(("arbitrary",)),
    )(a, wmat)

    cnt = jnp.float32(m)
    mean = sums / cnt
    var = jnp.maximum(sqs / cnt - mean * mean, 0.0)      # biased batch variance
    scale = g * jax.lax.rsqrt(var + eps)
    shift = b - mean * scale

    flat = pl.pallas_call(
        functools.partial(_scale_shift_lrelu_kernel, slope=slope),
        grid=(n_tiles,),
        in_specs=[
            pl.BlockSpec((tm, oc_pad), lambda i: (i, 0)),
            _resident_spec((1, oc_pad)),
            _resident_spec((1, oc_pad)),
        ],
        out_specs=pl.BlockSpec((tm, oc_pad), lambda i: (i, 0)),
        out_shape=jax.ShapeDtypeStruct((m_pad, oc_pad), jnp.bfloat16),
        compiler_params=_compiler_params(("parallel",)),
    )(conv_f32, scale, shift)
    return flat, dict(n=n, oh=oh, ow=ow, oc=oc, oc_pad=oc_pad, m=m, m_pad=m_pad)


# ----------------------------------------------------------------------------
# Parameters (deterministic, synthetic — mirrors the module's layer shapes)
# ----------------------------------------------------------------------------
def init_params(key, input_nc, ndf):
    # norm_layer == BatchNorm2d  =>  use_bias = False on the BN'd convs.
    specs = [
        # (out_ch,  in_ch,    stride, has_bias, has_bn, lrelu)
        (ndf,      input_nc, 2, True,  False, True),
        (ndf * 2,  ndf,      2, False, True,  True),
        (ndf * 4,  ndf * 2,  2, False, True,  True),
        (ndf * 8,  ndf * 4,  1, False, True,  True),
        (4,        ndf * 8,  1, True,  False, False),
    ]
    weights, cfg = [], []
    for (oc, ic, stride, has_bias, has_bn, lrelu) in specs:
        key, kw_, kb_, kg_, kbt_ = jax.random.split(key, 5)
        w = 0.02 * jax.random.normal(kw_, (oc, ic, 4, 4), jnp.float32)
        b = 0.02 * jax.random.normal(kb_, (oc,), jnp.float32) if has_bias else None
        gamma = (jnp.ones((oc,), jnp.float32)
                 + 0.1 * jax.random.normal(kg_, (oc,), jnp.float32)) if has_bn else None
        beta = 0.1 * jax.random.normal(kbt_, (oc,), jnp.float32) if has_bn else None
        weights.append(dict(w=w, b=b, gamma=gamma, beta=beta))
        cfg.append((stride, has_bn, lrelu))
    return weights, tuple(cfg)


# ----------------------------------------------------------------------------
# Forward pass (training-mode BN; running-stat / eval mode not implemented)
# ----------------------------------------------------------------------------
def discriminator_forward(x_nchw, weights, cfg):
    # NCHW -> NHWC + bf16 once; activations stay bf16 NHWC between layers.
    x = x_nchw.transpose(0, 2, 3, 1).astype(jnp.bfloat16)
    n_layers = len(weights)
    for li, (p, (stride, has_bn, lrelu)) in enumerate(zip(weights, cfg)):
        last = li == n_layers - 1
        if has_bn:
            flat, meta = conv2d_bn_lrelu_pallas(
                x, p["w"], p["gamma"], p["beta"], stride=stride, pad=1)
        else:
            flat, meta = conv2d_lrelu_pallas(
                x, p["w"], p["b"], stride=stride, pad=1,
                slope=(0.2 if lrelu else None),
                out_dtype=(jnp.float32 if last else jnp.bfloat16))
        m, oc = meta["m"], meta["oc"]
        if meta["m_pad"] != m or meta["oc_pad"] != oc:   # skip slice when aligned
            flat = flat[:m, :oc]
        x = flat.reshape(meta["n"], meta["oh"], meta["ow"], oc)
    return x.transpose(0, 3, 1, 2)   # NCHW out (f32), matching the PyTorch module


# ----------------------------------------------------------------------------
if __name__ == "__main__":
    key = jax.random.PRNGKey(0)
    k_x, k_p = jax.random.split(key)

    # Small shapes consistent with the module: input_nc=3, ndf=16.
    # 32x32 -> 16 -> 8 -> 4 -> 3 -> 2 (the two 4x4 stride-1 convs need >= 3).
    N, C, H, W = 2, 3, 32, 32
    ndf = 16

    x = jax.random.normal(k_x, (N, C, H, W), jnp.float32)
    weights, cfg = init_params(k_p, input_nc=C, ndf=ndf)

    fwd = jax.jit(discriminator_forward, static_argnums=(2,))
    out = jax.block_until_ready(fwd(x, weights, cfg))

    assert out.shape == (N, 4, 2, 2), out.shape
    assert out.dtype == jnp.float32, out.dtype
    assert bool(jnp.all(jnp.isfinite(out)))
    print("KERNEL_OK")
</pallas_src>

<mosaic_0001>
module attributes {stable_mosaic.version = 11 : i64} {
  func.func @k(%arg0: i32, %arg1: memref<8x128xf32, #tpu.memory_space<vmem>>, %arg2: memref<8x128xf32, #tpu.memory_space<vmem>>) attributes {dimension_semantics = [#tpu.dimension_semantics<arbitrary>], iteration_bounds = array<i64: 2>, scalar_prefetch = 0 : i64, scratch_operands = 0 : i64, tpu.core_type = #tpu.core_type<tc>, window_params = [{pipeline_mode = #tpu.pipeline_mode<synchronous>, transform_indices = @transform_0, window_bounds = array<i64: 8, 128>}, {pipeline_mode = #tpu.pipeline_mode<synchronous>, transform_indices = @transform_1, window_bounds = array<i64: 8, 128>}]} {
    %c0 = arith.constant 0 : index
    %c0_0 = arith.constant 0 : index
    %0 = vector.load %arg1[%c0, %c0_0] : memref<8x128xf32, #tpu.memory_space<vmem>>, vector<8x128xf32>
    %cst = arith.constant 1.000000e+00 : f32
    %1 = vector.broadcast %cst : f32 to vector<8x128xf32>
    %2 = arith.addf %0, %1 : vector<8x128xf32>
    %c0_1 = arith.constant 0 : index
    %c0_2 = arith.constant 0 : index
    %3 = vector.load %arg2[%c0_1, %c0_2] : memref<8x128xf32, #tpu.memory_space<vmem>>, vector<8x128xf32>
    tpu.vector_store %arg2[%c0_1, %c0_2], %2 {strides = array<i32>} : memref<8x128xf32, #tpu.memory_space<vmem>>, vector<8x128xf32>,
    return
  }
  func.func @transform_0(%arg0: i32) -> (i32, i32) {
    %c0_i32 = arith.constant 0 : i32
    %c0_i32_0 = arith.constant 0 : i32
    %c0_i32_1 = arith.constant 0 : i32
    return %c0_i32, %c0_i32_0 : i32, i32
  }
  func.func @transform_1(%arg0: i32) -> (i32, i32) {
    %c0_i32 = arith.constant 0 : i32
    %c0_i32_0 = arith.constant 0 : i32
    %c0_i32_1 = arith.constant 0 : i32
    return %c0_i32, %c0_i32_0 : i32, i32
  }
}

module attributes {stable_mosaic.version = 11 : i64} {
  func.func @_conv_bias_act_kernel(%arg0: i32, %arg1: memref<256x128xbf16, #tpu.memory_space<vmem>>, %arg2: memref<128x128xbf16, #tpu.memory_space<vmem>>, %arg3: memref<1x128xf32, #tpu.memory_space<vmem>>, %arg4: memref<256x128xbf16, #tpu.memory_space<vmem>>) attributes {dimension_semantics = [#tpu.dimension_semantics<parallel>], iteration_bounds = array<i64: 2>, scalar_prefetch = 0 : i64, scratch_operands = 0 : i64, tpu.core_type = #tpu.core_type<tc>, window_params = [{transform_indices = @transform_0, window_bounds = array<i64: 256, 128>}, {pipeline_mode = #tpu.pipeline_mode<synchronous>, transform_indices = @transform_1, window_bounds = array<i64: 128, 128>}, {pipeline_mode = #tpu.pipeline_mode<synchronous>, transform_indices = @transform_2, window_bounds = array<i64: 1, 128>}, {transform_indices = @transform_3, window_bounds = array<i64: 256, 128>}]} {
    %c0 = arith.constant 0 : index
    %c0_0 = arith.constant 0 : index
    %0 = vector.load %arg1[%c0, %c0_0] : memref<256x128xbf16, #tpu.memory_space<vmem>>, vector<256x128xbf16>
    %c0_1 = arith.constant 0 : index
    %c0_2 = arith.constant 0 : index
    %1 = vector.load %arg2[%c0_1, %c0_2] : memref<128x128xbf16, #tpu.memory_space<vmem>>, vector<128x128xbf16>
    %cst = arith.constant dense<0.000000e+00> : vector<256x128xf32>
    %2 = tpu.matmul %0, %1, %cst {dimension_numbers = #tpu.dot_dimension_numbers<[1], [0], [0], [1], [0, 0, 1, 1], [], []>} : vector<256x128xbf16>, vector<128x128xbf16>, vector<256x128xf32> -> vector<256x128xf32>
    %c0_3 = arith.constant 0 : index
    %c0_4 = arith.constant 0 : index
    %3 = vector.load %arg3[%c0_3, %c0_4] : memref<1x128xf32, #tpu.memory_space<vmem>>, vector<1x128xf32>
    %4 = vector.broadcast %3 : vector<1x128xf32> to vector<256x128xf32>
    %5 = arith.addf %2, %4 : vector<256x128xf32>
    %cst_5 = arith.constant 2.000000e-01 : f32
    %6 = vector.broadcast %cst_5 : f32 to vector<256x128xf32>
    %7 = arith.mulf %6, %5 : vector<256x128xf32>
    %8 = arith.maximumf %5, %7 : vector<256x128xf32>
    %9 = arith.truncf %8 : vector<256x128xf32> to vector<256x128xbf16>
    %c0_6 = arith.constant 0 : index
    %c0_7 = arith.constant 0 : index
    %10 = vector.load %arg4[%c0_6, %c0_7] : memref<256x128xbf16, #tpu.memory_space<vmem>>, vector<256x128xbf16>
    tpu.vector_store %arg4[%c0_6, %c0_7], %9 {strides = array<i32>} : memref<256x128xbf16, #tpu.memory_space<vmem>>, vector<256x128xbf16>,
    return
  }
  func.func @transform_0(%arg0: i32) -> (i32, i32) {
    %c0_i32 = arith.constant 0 : i32
    %c0_i32_0 = arith.constant 0 : i32
    return %arg0, %c0_i32 : i32, i32
  }
  func.func @transform_1(%arg0: i32) -> (i32, i32) {
    %c0_i32 = arith.constant 0 : i32
    %c0_i32_0 = arith.constant 0 : i32
    %c0_i32_1 = arith.constant 0 : i32
    return %c0_i32, %c0_i32_0 : i32, i32
  }
  func.func @transform_2(%arg0: i32) -> (i32, i32) {
    %c0_i32 = arith.constant 0 : i32
    %c0_i32_0 = arith.constant 0 : i32
    %c0_i32_1 = arith.constant 0 : i32
    return %c0_i32, %c0_i32_0 : i32, i32
  }
  func.func @transform_3(%arg0: i32) -> (i32, i32) {
    %c0_i32 = arith.constant 0 : i32
    %c0_i32_0 = arith.constant 0 : i32
    return %arg0, %c0_i32 : i32, i32
  }
}

module attributes {stable_mosaic.version = 11 : i64} {
  func.func @_conv_bn_lrelu_kernel(%arg0: i32, %arg1: memref<128x256xbf16, #tpu.memory_space<vmem>>, %arg2: memref<256x128xbf16, #tpu.memory_space<vmem>>, %arg3: memref<1x128xf32, #tpu.memory_space<vmem>>, %arg4: memref<1x128xf32, #tpu.memory_space<vmem>>, %arg5: memref<128x128xbf16, #tpu.memory_space<vmem>>, %arg6: memref<128x128xf32, #tpu.memory_space<vmem>>) attributes {dimension_semantics = [#tpu.dimension_semantics<arbitrary>], iteration_bounds = array<i64: 1>, scalar_prefetch = 0 : i64, scratch_operands = 1 : i64, tpu.core_type = #tpu.core_type<tc>, window_params = [{transform_indices = @transform_0, window_bounds = array<i64: 128, 256>}, {pipeline_mode = #tpu.pipeline_mode<synchronous>, transform_indices = @transform_1, window_bounds = array<i64: 256, 128>}, {pipeline_mode = #tpu.pipeline_mode<synchronous>, transform_indices = @transform_2, window_bounds = array<i64: 1, 128>}, {pipeline_mode = #tpu.pipeline_mode<synchronous>, transform_indices = @transform_3, window_bounds = array<i64: 1, 128>}, {pipeline_mode = #tpu.pipeline_mode<synchronous>, transform_indices = @transform_4, window_bounds = array<i64: 128, 128>}]} {
    %c0 = arith.constant 0 : index
    %c0_0 = arith.constant 0 : index
    %0 = vector.load %arg1[%c0, %c0_0] : memref<128x256xbf16, #tpu.memory_space<vmem>>, vector<128x256xbf16>
    %c0_1 = arith.constant 0 : index
    %c0_2 = arith.constant 0 : index
    %1 = vector.load %arg2[%c0_1, %c0_2] : memref<256x128xbf16, #tpu.memory_space<vmem>>, vector<256x128xbf16>
    %cst = arith.constant dense<0.000000e+00> : vector<128x128xf32>
    %2 = tpu.matmul %0, %1, %cst {dimension_numbers = #tpu.dot_dimension_numbers<[1], [0], [0], [1], [0, 0, 1, 1], [], []>} : vector<128x256xbf16>, vector<256x128xbf16>, vector<128x128xf32> -> vector<128x128xf32>
    %c128_i32 = arith.constant 128 : i32
    %3 = arith.muli %arg0, %c128_i32 : i32
    %4 = tpu.assume_multiple %3, 8 : i32
    %5 = arith.index_cast %4 : i32 to index
    %c0_3 = arith.constant 0 : index
    %6 = vector.load %arg6[%5, %c0_3] : memref<128x128xf32, #tpu.memory_space<vmem>>, vector<128x128xf32>
    tpu.vector_store %arg6[%5, %c0_3], %2 {strides = array<i32>} : memref<128x128xf32, #tpu.memory_space<vmem>>, vector<128x128xf32>,
    %c0_i32 = arith.constant 0 : i32
    %7 = arith.cmpi eq, %arg0, %c0_i32 : i32
    %8 = arith.extui %7 : i1 to i32
    %c0_i32_4 = arith.constant 0 : i32
    %9 = arith.cmpi ne, %8, %c0_i32_4 : i32
    scf.if %9 {
      %c0_5 = arith.constant 0 : index
      %c0_6 = arith.constant 0 : index
      %10 = vector.load %arg6[%c0_5, %c0_6] : memref<128x128xf32, #tpu.memory_space<vmem>>, vector<128x128xf32>
      %cst_7 = arith.constant dense<0.000000e+00> : vector<128xf32>
      %11 = vector.multi_reduction <add>, %10, %cst_7 [0] : vector<128x128xf32> to vector<128xf32>
      %12 = vector.shape_cast %11 : vector<128xf32> to vector<1x128xf32>
      %cst_8 = arith.constant 7.812500e-03 : f32
      %13 = vector.broadcast %cst_8 : f32 to vector<1x128xf32>
      %14 = arith.mulf %12, %13 : vector<1x128xf32>
      %15 = arith.mulf %10, %10 : vector<128x128xf32>
      %cst_9 = arith.constant dense<0.000000e+00> : vector<128xf32>
      %16 = vector.multi_reduction <add>, %15, %cst_9 [0] : vector<128x128xf32> to vector<128xf32>
      %17 = vector.shape_cast %16 : vector<128xf32> to vector<1x128xf32>
      %cst_10 = arith.constant 7.812500e-03 : f32
      %18 = vector.broadcast %cst_10 : f32 to vector<1x128xf32>
      %19 = arith.mulf %17, %18 : vector<1x128xf32>
      %20 = arith.mulf %14, %14 : vector<1x128xf32>
      %21 = arith.subf %19, %20 : vector<1x128xf32>
      %cst_11 = arith.constant 0.000000e+00 : f32
      %22 = vector.broadcast %cst_11 : f32 to vector<1x128xf32>
      %23 = arith.maximumf %21, %22 : vector<1x128xf32>
      %c0_12 = arith.constant 0 : index
      %c0_13 = arith.constant 0 : index
      %24 = vector.load %arg3[%c0_12, %c0_13] : memref<1x128xf32, #tpu.memory_space<vmem>>, vector<1x128xf32>
      %cst_14 = arith.constant 9.99999974E-6 : f32
      %25 = vector.broadcast %cst_14 : f32 to vector<1x128xf32>
      %26 = arith.addf %23, %25 : vector<1x128xf32>
      %27 = math.rsqrt %26 : vector<1x128xf32>
      %28 = arith.mulf %24, %27 : vector<1x128xf32>
      %c0_15 = arith.constant 0 : index
      %c0_16 = arith.constant 0 : index
      %29 = vector.load %arg4[%c0_15, %c0_16] : memref<1x128xf32, #tpu.memory_space<vmem>>, vector<1x128xf32>
      %30 = arith.mulf %14, %28 : vector<1x128xf32>
      %31 = arith.subf %29, %30 : vector<1x128xf32>
      %32 = vector.broadcast %28 : vector<1x128xf32> to vector<128x128xf32>
      %33 = arith.mulf %10, %32 : vector<128x128xf32>
      %34 = vector.broadcast %31 : vector<1x128xf32> to vector<128x128xf32>
      %35 = arith.addf %33, %34 : vector<128x128xf32>
      %cst_17 = arith.constant 2.000000e-01 : f32
      %36 = vector.broadcast %cst_17 : f32 to vector<128x128xf32>
      %37 = arith.mulf %36, %35 : vector<128x128xf32>
      %38 = arith.maximumf %35, %37 : vector<128x128xf32>
      %39 = arith.truncf %38 : vector<128x128xf32> to vector<128x128xbf16>
      %c0_18 = arith.constant 0 : index
      %c0_19 = arith.constant 0 : index
      %40 = vector.load %arg5[%c0_18, %c0_19] : memref<128x128xbf16, #tpu.memory_space<vmem>>, vector<128x128xbf16>
      tpu.vector_store %arg5[%c0_18, %c0_19], %39 {strides = array<i32>} : memref<128x128xbf16, #tpu.memory_space<vmem>>, vector<128x128xbf16>,
    } else {
    }
    return
  }
  func.func @transform_0(%arg0: i32) -> (i32, i32) {
    %c0_i32 = arith.constant 0 : i32
    %c0_i32_0 = arith.constant 0 : i32
    return %arg0, %c0_i32 : i32, i32
  }
  func.func @transform_1(%arg0: i32) -> (i32, i32) {
    %c0_i32 = arith.constant 0 : i32
    %c0_i32_0 = arith.constant 0 : i32
    %c0_i32_1 = arith.constant 0 : i32
    return %c0_i32, %c0_i32_0 : i32, i32
  }
  func.func @transform_2(%arg0: i32) -> (i32, i32) {
    %c0_i32 = arith.constant 0 : i32
    %c0_i32_0 = arith.constant 0 : i32
    %c0_i32_1 = arith.constant 0 : i32
    return %c0_i32, %c0_i32_0 : i32, i32
  }
  func.func @transform_3(%arg0: i32) -> (i32, i32) {
    %c0_i32 = arith.constant 0 : i32
    %c0_i32_0 = arith.constant 0 : i32
    %c0_i32_1 = arith.constant 0 : i32
    return %c0_i32, %c0_i32_0 : i32, i32
  }
  func.func @transform_4(%arg0: i32) -> (i32, i32) {
    %c0_i32 = arith.constant 0 : i32
    %c0_i32_0 = arith.constant 0 : i32
    %c0_i32_1 = arith.constant 0 : i32
    return %c0_i32, %c0_i32_0 : i32, i32
  }
}

module attributes {stable_mosaic.version = 11 : i64} {
  func.func @_conv_bn_lrelu_kernel(%arg0: i32, %arg1: memref<32x512xbf16, #tpu.memory_space<vmem>>, %arg2: memref<512x128xbf16, #tpu.memory_space<vmem>>, %arg3: memref<1x128xf32, #tpu.memory_space<vmem>>, %arg4: memref<1x128xf32, #tpu.memory_space<vmem>>, %arg5: memref<32x128xbf16, #tpu.memory_space<vmem>>, %arg6: memref<32x128xf32, #tpu.memory_space<vmem>>) attributes {dimension_semantics = [#tpu.dimension_semantics<arbitrary>], iteration_bounds = array<i64: 1>, scalar_prefetch = 0 : i64, scratch_operands = 1 : i64, tpu.core_type = #tpu.core_type<tc>, window_params = [{transform_indices = @transform_0, window_bounds = array<i64: 32, 512>}, {pipeline_mode = #tpu.pipeline_mode<synchronous>, transform_indices = @transform_1, window_bounds = array<i64: 512, 128>}, {pipeline_mode = #tpu.pipeline_mode<synchronous>, transform_indices = @transform_2, window_bounds = array<i64: 1, 128>}, {pipeline_mode = #tpu.pipeline_mode<synchronous>, transform_indices = @transform_3, window_bounds = array<i64: 1, 128>}, {pipeline_mode = #tpu.pipeline_mode<synchronous>, transform_indices = @transform_4, window_bounds = array<i64: 32, 128>}]} {
    %c0 = arith.constant 0 : index
    %c0_0 = arith.constant 0 : index
    %0 = vector.load %arg1[%c0, %c0_0] : memref<32x512xbf16, #tpu.memory_space<vmem>>, vector<32x512xbf16>
    %c0_1 = arith.constant 0 : index
    %c0_2 = arith.constant 0 : index
    %1 = vector.load %arg2[%c0_1, %c0_2] : memref<512x128xbf16, #tpu.memory_space<vmem>>, vector<512x128xbf16>
    %cst = arith.constant dense<0.000000e+00> : vector<32x128xf32>
    %2 = tpu.matmul %0, %1, %cst {dimension_numbers = #tpu.dot_dimension_numbers<[1], [0], [0], [1], [0, 0, 1, 1], [], []>} : vector<32x512xbf16>, vector<512x128xbf16>, vector<32x128xf32> -> vector<32x128xf32>
    %c32_i32 = arith.constant 32 : i32
    %3 = arith.muli %arg0, %c32_i32 : i32
    %4 = tpu.assume_multiple %3, 8 : i32
    %5 = arith.index_cast %4 : i32 to index
    %c0_3 = arith.constant 0 : index
    %6 = vector.load %arg6[%5, %c0_3] : memref<32x128xf32, #tpu.memory_space<vmem>>, vector<32x128xf32>
    tpu.vector_store %arg6[%5, %c0_3], %2 {strides = array<i32>} : memref<32x128xf32, #tpu.memory_space<vmem>>, vector<32x128xf32>,
    %c0_i32 = arith.constant 0 : i32
    %7 = arith.cmpi eq, %arg0, %c0_i32 : i32
    %8 = arith.extui %7 : i1 to i32
    %c0_i32_4 = arith.constant 0 : i32
    %9 = arith.cmpi ne, %8, %c0_i32_4 : i32
    scf.if %9 {
      %c0_5 = arith.constant 0 : index
      %c0_6 = arith.constant 0 : index
      %10 = vector.load %arg6[%c0_5, %c0_6] : memref<32x128xf32, #tpu.memory_space<vmem>>, vector<32x128xf32>
      %cst_7 = arith.constant dense<0.000000e+00> : vector<128xf32>
      %11 = vector.multi_reduction <add>, %10, %cst_7 [0] : vector<32x128xf32> to vector<128xf32>
      %12 = vector.shape_cast %11 : vector<128xf32> to vector<1x128xf32>
      %cst_8 = arith.constant 3.125000e-02 : f32
      %13 = vector.broadcast %cst_8 : f32 to vector<1x128xf32>
      %14 = arith.mulf %12, %13 : vector<1x128xf32>
      %15 = arith.mulf %10, %10 : vector<32x128xf32>
      %cst_9 = arith.constant dense<0.000000e+00> : vector<128xf32>
      %16 = vector.multi_reduction <add>, %15, %cst_9 [0] : vector<32x128xf32> to vector<128xf32>
      %17 = vector.shape_cast %16 : vector<128xf32> to vector<1x128xf32>
      %cst_10 = arith.constant 3.125000e-02 : f32
      %18 = vector.broadcast %cst_10 : f32 to vector<1x128xf32>
      %19 = arith.mulf %17, %18 : vector<1x128xf32>
      %20 = arith.mulf %14, %14 : vector<1x128xf32>
      %21 = arith.subf %19, %20 : vector<1x128xf32>
      %cst_11 = arith.constant 0.000000e+00 : f32
      %22 = vector.broadcast %cst_11 : f32 to vector<1x128xf32>
      %23 = arith.maximumf %21, %22 : vector<1x128xf32>
      %c0_12 = arith.constant 0 : index
      %c0_13 = arith.constant 0 : index
      %24 = vector.load %arg3[%c0_12, %c0_13] : memref<1x128xf32, #tpu.memory_space<vmem>>, vector<1x128xf32>
      %cst_14 = arith.constant 9.99999974E-6 : f32
      %25 = vector.broadcast %cst_14 : f32 to vector<1x128xf32>
      %26 = arith.addf %23, %25 : vector<1x128xf32>
      %27 = math.rsqrt %26 : vector<1x128xf32>
      %28 = arith.mulf %24, %27 : vector<1x128xf32>
      %c0_15 = arith.constant 0 : index
      %c0_16 = arith.constant 0 : index
      %29 = vector.load %arg4[%c0_15, %c0_16] : memref<1x128xf32, #tpu.memory_space<vmem>>, vector<1x128xf32>
      %30 = arith.mulf %14, %28 : vector<1x128xf32>
      %31 = arith.subf %29, %30 : vector<1x128xf32>
      %32 = vector.broadcast %28 : vector<1x128xf32> to vector<32x128xf32>
      %33 = arith.mulf %10, %32 : vector<32x128xf32>
      %34 = vector.broadcast %31 : vector<1x128xf32> to vector<32x128xf32>
      %35 = arith.addf %33, %34 : vector<32x128xf32>
      %cst_17 = arith.constant 2.000000e-01 : f32
      %36 = vector.broadcast %cst_17 : f32 to vector<32x128xf32>
      %37 = arith.mulf %36, %35 : vector<32x128xf32>
      %38 = arith.maximumf %35, %37 : vector<32x128xf32>
      %39 = arith.truncf %38 : vector<32x128xf32> to vector<32x128xbf16>
      %c0_18 = arith.constant 0 : index
      %c0_19 = arith.constant 0 : index
      %40 = vector.load %arg5[%c0_18, %c0_19] : memref<32x128xbf16, #tpu.memory_space<vmem>>, vector<32x128xbf16>
      tpu.vector_store %arg5[%c0_18, %c0_19], %39 {strides = array<i32>} : memref<32x128xbf16, #tpu.memory_space<vmem>>, vector<32x128xbf16>,
    } else {
    }
    return
  }
  func.func @transform_0(%arg0: i32) -> (i32, i32) {
    %c0_i32 = arith.constant 0 : i32
    %c0_i32_0 = arith.constant 0 : i32
    return %arg0, %c0_i32 : i32, i32
  }
  func.func @transform_1(%arg0: i32) -> (i32, i32) {
    %c0_i32 = arith.constant 0 : i32
    %c0_i32_0 = arith.constant 0 : i32
    %c0_i32_1 = arith.constant 0 : i32
    return %c0_i32, %c0_i32_0 : i32, i32
  }
  func.func @transform_2(%arg0: i32) -> (i32, i32) {
    %c0_i32 = arith.constant 0 : i32
    %c0_i32_0 = arith.constant 0 : i32
    %c0_i32_1 = arith.constant 0 : i32
    return %c0_i32, %c0_i32_0 : i32, i32
  }
  func.func @transform_3(%arg0: i32) -> (i32, i32) {
    %c0_i32 = arith.constant 0 : i32
    %c0_i32_0 = arith.constant 0 : i32
    %c0_i32_1 = arith.constant 0 : i32
    return %c0_i32, %c0_i32_0 : i32, i32
  }
  func.func @transform_4(%arg0: i32) -> (i32, i32) {
    %c0_i32 = arith.constant 0 : i32
    %c0_i32_0 = arith.constant 0 : i32
    %c0_i32_1 = arith.constant 0 : i32
    return %c0_i32, %c0_i32_0 : i32, i32
  }
}

module attributes {stable_mosaic.version = 11 : i64} {
  func.func @_conv_bn_lrelu_kernel(%arg0: i32, %arg1: memref<24x1024xbf16, #tpu.memory_space<vmem>>, %arg2: memref<1024x128xbf16, #tpu.memory_space<vmem>>, %arg3: memref<1x128xf32, #tpu.memory_space<vmem>>, %arg4: memref<1x128xf32, #tpu.memory_space<vmem>>, %arg5: memref<24x128xbf16, #tpu.memory_space<vmem>>, %arg6: memref<24x128xf32, #tpu.memory_space<vmem>>) attributes {dimension_semantics = [#tpu.dimension_semantics<arbitrary>], iteration_bounds = array<i64: 1>, scalar_prefetch = 0 : i64, scratch_operands = 1 : i64, tpu.core_type = #tpu.core_type<tc>, window_params = [{transform_indices = @transform_0, window_bounds = array<i64: 24, 1024>}, {pipeline_mode = #tpu.pipeline_mode<synchronous>, transform_indices = @transform_1, window_bounds = array<i64: 1024, 128>}, {pipeline_mode = #tpu.pipeline_mode<synchronous>, transform_indices = @transform_2, window_bounds = array<i64: 1, 128>}, {pipeline_mode = #tpu.pipeline_mode<synchronous>, transform_indices = @transform_3, window_bounds = array<i64: 1, 128>}, {pipeline_mode = #tpu.pipeline_mode<synchronous>, transform_indices = @transform_4, window_bounds = array<i64: 24, 128>}]} {
    %c0 = arith.constant 0 : index
    %c0_0 = arith.constant 0 : index
    %0 = vector.load %arg1[%c0, %c0_0] : memref<24x1024xbf16, #tpu.memory_space<vmem>>, vector<24x1024xbf16>
    %c0_1 = arith.constant 0 : index
    %c0_2 = arith.constant 0 : index
    %1 = vector.load %arg2[%c0_1, %c0_2] : memref<1024x128xbf16, #tpu.memory_space<vmem>>, vector<1024x128xbf16>
    %cst = arith.constant dense<0.000000e+00> : vector<24x128xf32>
    %2 = tpu.matmul %0, %1, %cst {dimension_numbers = #tpu.dot_dimension_numbers<[1], [0], [0], [1], [0, 0, 1, 1], [], []>} : vector<24x1024xbf16>, vector<1024x128xbf16>, vector<24x128xf32> -> vector<24x128xf32>
    %c24_i32 = arith.constant 24 : i32
    %3 = arith.muli %arg0, %c24_i32 : i32
    %4 = tpu.assume_multiple %3, 8 : i32
    %5 = arith.index_cast %4 : i32 to index
    %c0_3 = arith.constant 0 : index
    %6 = vector.load %arg6[%5, %c0_3] : memref<24x128xf32, #tpu.memory_space<vmem>>, vector<24x128xf32>
    tpu.vector_store %arg6[%5, %c0_3], %2 {strides = array<i32>} : memref<24x128xf32, #tpu.memory_space<vmem>>, vector<24x128xf32>,
    %c0_i32 = arith.constant 0 : i32
    %7 = arith.cmpi eq, %arg0, %c0_i32 : i32
    %8 = arith.extui %7 : i1 to i32
    %c0_i32_4 = arith.constant 0 : i32
    %9 = arith.cmpi ne, %8, %c0_i32_4 : i32
    scf.if %9 {
      %c0_5 = arith.constant 0 : index
      %c0_6 = arith.constant 0 : index
      %10 = vector.load %arg6[%c0_5, %c0_6] : memref<24x128xf32, #tpu.memory_space<vmem>>, vector<24x128xf32>
      %cst_7 = arith.constant dense<0.000000e+00> : vector<128xf32>
      %11 = vector.multi_reduction <add>, %10, %cst_7 [0] : vector<24x128xf32> to vector<128xf32>
      %12 = vector.shape_cast %11 : vector<128xf32> to vector<1x128xf32>
      %cst_8 = arith.constant 0.055555556 : f32
      %13 = vector.broadcast %cst_8 : f32 to vector<1x128xf32>
      %14 = arith.mulf %12, %13 : vector<1x128xf32>
      %15 = arith.mulf %10, %10 : vector<24x128xf32>
      %cst_9 = arith.constant dense<0.000000e+00> : vector<128xf32>
      %16 = vector.multi_reduction <add>, %15, %cst_9 [0] : vector<24x128xf32> to vector<128xf32>
      %17 = vector.shape_cast %16 : vector<128xf32> to vector<1x128xf32>
      %cst_10 = arith.constant 0.055555556 : f32
      %18 = vector.broadcast %cst_10 : f32 to vector<1x128xf32>
      %19 = arith.mulf %17, %18 : vector<1x128xf32>
      %20 = arith.mulf %14, %14 : vector<1x128xf32>
      %21 = arith.subf %19, %20 : vector<1x128xf32>
      %cst_11 = arith.constant 0.000000e+00 : f32
      %22 = vector.broadcast %cst_11 : f32 to vector<1x128xf32>
      %23 = arith.maximumf %21, %22 : vector<1x128xf32>
      %c0_12 = arith.constant 0 : index
      %c0_13 = arith.constant 0 : index
      %24 = vector.load %arg3[%c0_12, %c0_13] : memref<1x128xf32, #tpu.memory_space<vmem>>, vector<1x128xf32>
      %cst_14 = arith.constant 9.99999974E-6 : f32
      %25 = vector.broadcast %cst_14 : f32 to vector<1x128xf32>
      %26 = arith.addf %23, %25 : vector<1x128xf32>
      %27 = math.rsqrt %26 : vector<1x128xf32>
      %28 = arith.mulf %24, %27 : vector<1x128xf32>
      %c0_15 = arith.constant 0 : index
      %c0_16 = arith.constant 0 : index
      %29 = vector.load %arg4[%c0_15, %c0_16] : memref<1x128xf32, #tpu.memory_space<vmem>>, vector<1x128xf32>
      %30 = arith.mulf %14, %28 : vector<1x128xf32>
      %31 = arith.subf %29, %30 : vector<1x128xf32>
      %32 = vector.broadcast %28 : vector<1x128xf32> to vector<24x128xf32>
      %33 = arith.mulf %10, %32 : vector<24x128xf32>
      %34 = vector.broadcast %31 : vector<1x128xf32> to vector<24x128xf32>
      %35 = arith.addf %33, %34 : vector<24x128xf32>
      %cst_17 = arith.constant 2.000000e-01 : f32
      %36 = vector.broadcast %cst_17 : f32 to vector<24x128xf32>
      %37 = arith.mulf %36, %35 : vector<24x128xf32>
      %38 = arith.maximumf %35, %37 : vector<24x128xf32>
      %39 = arith.truncf %38 : vector<24x128xf32> to vector<24x128xbf16>
      %c0_18 = arith.constant 0 : index
      %c0_19 = arith.constant 0 : index
      %40 = vector.load %arg5[%c0_18, %c0_19] : memref<24x128xbf16, #tpu.memory_space<vmem>>, vector<24x128xbf16>
      tpu.vector_store %arg5[%c0_18, %c0_19], %39 {strides = array<i32>} : memref<24x128xbf16, #tpu.memory_space<vmem>>, vector<24x128xbf16>,
    } else {
    }
    return
  }
  func.func @transform_0(%arg0: i32) -> (i32, i32) {
    %c0_i32 = arith.constant 0 : i32
    %c0_i32_0 = arith.constant 0 : i32
    return %arg0, %c0_i32 : i32, i32
  }
  func.func @transform_1(%arg0: i32) -> (i32, i32) {
    %c0_i32 = arith.constant 0 : i32
    %c0_i32_0 = arith.constant 0 : i32
    %c0_i32_1 = arith.constant 0 : i32
    return %c0_i32, %c0_i32_0 : i32, i32
  }
  func.func @transform_2(%arg0: i32) -> (i32, i32) {
    %c0_i32 = arith.constant 0 : i32
    %c0_i32_0 = arith.constant 0 : i32
    %c0_i32_1 = arith.constant 0 : i32
    return %c0_i32, %c0_i32_0 : i32, i32
  }
  func.func @transform_3(%arg0: i32) -> (i32, i32) {
    %c0_i32 = arith.constant 0 : i32
    %c0_i32_0 = arith.constant 0 : i32
    %c0_i32_1 = arith.constant 0 : i32
    return %c0_i32, %c0_i32_0 : i32, i32
  }
  func.func @transform_4(%arg0: i32) -> (i32, i32) {
    %c0_i32 = arith.constant 0 : i32
    %c0_i32_0 = arith.constant 0 : i32
    %c0_i32_1 = arith.constant 0 : i32
    return %c0_i32, %c0_i32_0 : i32, i32
  }
}

module attributes {stable_mosaic.version = 11 : i64} {
  func.func @_conv_bias_act_kernel(%arg0: i32, %arg1: memref<8x2048xbf16, #tpu.memory_space<vmem>>, %arg2: memref<2048x128xbf16, #tpu.memory_space<vmem>>, %arg3: memref<1x128xf32, #tpu.memory_space<vmem>>, %arg4: memref<8x128xf32, #tpu.memory_space<vmem>>) attributes {dimension_semantics = [#tpu.dimension_semantics<parallel>], iteration_bounds = array<i64: 1>, scalar_prefetch = 0 : i64, scratch_operands = 0 : i64, tpu.core_type = #tpu.core_type<tc>, window_params = [{transform_indices = @transform_0, window_bounds = array<i64: 8, 2048>}, {pipeline_mode = #tpu.pipeline_mode<synchronous>, transform_indices = @transform_1, window_bounds = array<i64: 2048, 128>}, {pipeline_mode = #tpu.pipeline_mode<synchronous>, transform_indices = @transform_2, window_bounds = array<i64: 1, 128>}, {transform_indices = @transform_3, window_bounds = array<i64: 8, 128>}]} {
    %c0 = arith.constant 0 : index
    %c0_0 = arith.constant 0 : index
    %0 = vector.load %arg1[%c0, %c0_0] : memref<8x2048xbf16, #tpu.memory_space<vmem>>, vector<8x2048xbf16>
    %c0_1 = arith.constant 0 : index
    %c0_2 = arith.constant 0 : index
    %1 = vector.load %arg2[%c0_1, %c0_2] : memref<2048x128xbf16, #tpu.memory_space<vmem>>, vector<2048x128xbf16>
    %cst = arith.constant dense<0.000000e+00> : vector<8x128xf32>
    %2 = tpu.matmul %0, %1, %cst {dimension_numbers = #tpu.dot_dimension_numbers<[1], [0], [0], [1], [0, 0, 1, 1], [], []>} : vector<8x2048xbf16>, vector<2048x128xbf16>, vector<8x128xf32> -> vector<8x128xf32>
    %c0_3 = arith.constant 0 : index
    %c0_4 = arith.constant 0 : index
    %3 = vector.load %arg3[%c0_3, %c0_4] : memref<1x128xf32, #tpu.memory_space<vmem>>, vector<1x128xf32>
    %4 = vector.broadcast %3 : vector<1x128xf32> to vector<8x128xf32>
    %5 = arith.addf %2, %4 : vector<8x128xf32>
    %c0_5 = arith.constant 0 : index
    %c0_6 = arith.constant 0 : index
    %6 = vector.load %arg4[%c0_5, %c0_6] : memref<8x128xf32, #tpu.memory_space<vmem>>, vector<8x128xf32>
    tpu.vector_store %arg4[%c0_5, %c0_6], %5 {strides = array<i32>} : memref<8x128xf32, #tpu.memory_space<vmem>>, vector<8x128xf32>,
    return
  }
  func.func @transform_0(%arg0: i32) -> (i32, i32) {
    %c0_i32 = arith.constant 0 : i32
    %c0_i32_0 = arith.constant 0 : i32
    return %arg0, %c0_i32 : i32, i32
  }
  func.func @transform_1(%arg0: i32) -> (i32, i32) {
    %c0_i32 = arith.constant 0 : i32
    %c0_i32_0 = arith.constant 0 : i32
    %c0_i32_1 = arith.constant 0 : i32
    return %c0_i32, %c0_i32_0 : i32, i32
  }
  func.func @transform_2(%arg0: i32) -> (i32, i32) {
    %c0_i32 = arith.constant 0 : i32
    %c0_i32_0 = arith.constant 0 : i32
    %c0_i32_1 = arith.constant 0 : i32
    return %c0_i32, %c0_i32_0 : i32, i32
  }
  func.func @transform_3(%arg0: i32) -> (i32, i32) {
    %c0_i32 = arith.constant 0 : i32
    %c0_i32_0 = arith.constant 0 : i32
    return %arg0, %c0_i32 : i32, i32
  }
}

</mosaic_0001>

<llo_original>
// kernel: tpu_custom_call.1
$region0: #{tpu_custom_call.1}
  #allocation0 [shape = 'u32[]', space=smem, size = 0x4, offset = 0x4, fixed_abs, tag = 'smem constant byte address 0x4 - core index']
  #allocation1 [shape = 'u32[144,128]{1,0:T(1,128)}', space=vmem, size = 0x12000, scoped, tag = 'internal scratch']
  %s0 = inlined_call_operand.hbm [shape: f32[8,128], index: 0, kind: input, shape index: {}]
  %s1 = inlined_call_operand.hbm [shape: f32[8,128], index: 1, kind: output, shape index: {}]
  %s2 = sld [smem:[#allocation0]]
  $region41: #{tpu_custom_call.1} parent=0
    _
  %s4 = ssub.s32 1, %s2
  %s5 = scalar_select 0, %s4, %s2
  $region1: #{tpu_custom_call.1} parent=0
    #allocation2 [shape = 'u8[4096]{0}', space=vmem, size = 0x1000, scoped, tag = 'input window, operand 0, single buffered']
    #allocation3 [shape = 's32[2]{0}', space=sflag, size = 0x8, scoped, tag = 'scoped memory for tpu_custom_call.1']
    #allocation4 [shape = 's32[2]{0}', space=sflag, size = 0x8, scoped, tag = 'scoped memory for tpu_custom_call.1']
    #allocation5 [shape = 'u8[4096]{0}', space=vmem, size = 0x1000, scoped, tag = 'output window, operand 0, single buffered']
    %6 = vsyncpa [#allocation3], 0
    %7 = vsyncpa [#allocation4], 0
    loop: start=0, step=1, limit=4
    $region2: #{tpu_custom_call.1} parent=1 // loop_pre_header
      _
    $region3: #{tpu_custom_call.1} parent=1 // loop_header
      %s9 = sphi 0, %s13
      %p10 = scmp.ge.s32.totalorder %s9, 4
      %s17 = sphi 0, %s17
      %s19 = sphi 0, %s17
      %s20 = sphi 0, %s19
      %s34 = sphi 0, %s20
      %s38 = sphi 0, %s38
      %s40 = sphi 0, %s38
      %s41 = sphi 0, %s40
      %s55 = sphi 0, %s41
    $region4: #{tpu_custom_call.1} parent=1 // loop_header_branch
      %12 = sbr.rel (%p10) target = $region8
    $region5: #{tpu_custom_call.1} parent=1 // loop_body
      %s14 = ssub.s32 %s9, 1
      %s15 = ssub.s32 %s9, 2
      %s16 = sadd.s32 %s9, 1
      %s18 = sadd.s32 %s17, 1
      %p21 = scmp.eq.s32.totalorder %s9, 1
      %p22 = scmp.ne.s32.totalorder %s17, %s19
      %p23 = scmp.eq.s32.totalorder %s9, 0
      %p24 = por %p22, %p23
      %p25 = scmp.ne.s32.totalorder %s17, %s19
      %p26 = scmp.eq.s32.totalorder %s14, 1
      %p27 = por %p25, %p26
      %p28 = scmp.ne.s32.totalorder %s19, %s20
      %p29 = scmp.eq.s32.totalorder %s14, 0
      %p30 = por %p28, %p29
      %p31 = scmp.ne.s32.totalorder %s19, %s20
      %p32 = scmp.eq.s32.totalorder %s15, 1
      %p33 = por %p31, %p32
      %p35 = scmp.ne.s32.totalorder %s20, %s34
      %p36 = scmp.eq.s32.totalorder %s15, 0
      %p37 = por %p35, %p36
      %s39 = sadd.s32 %s38, 1
      %p42 = scmp.eq.s32.totalorder %s9, 1
      %p43 = scmp.ne.s32.totalorder %s38, %s40
      %p44 = scmp.eq.s32.totalorder %s9, 0
      %p45 = por %p43, %p44
      %p46 = scmp.ne.s32.totalorder %s38, %s40
      %p47 = scmp.eq.s32.totalorder %s14, 1
      %p48 = por %p46, %p47
      %p49 = scmp.ne.s32.totalorder %s40, %s41
      %p50 = scmp.eq.s32.totalorder %s14, 0
      %p51 = por %p49, %p50
      %p52 = scmp.ne.s32.totalorder %s40, %s41
      %p53 = scmp.eq.s32.totalorder %s15, 1
      %p54 = por %p52, %p53
      %p56 = scmp.ne.s32.totalorder %s41, %s55
      %p57 = scmp.eq.s32.totalorder %s15, 0
      %p58 = por %p56, %p57
      %p59 = scmp.le.s32.totalorder 1, %s9
      %p60 = scmp.lt.s32.totalorder %s9, 3
      %p61 = pnand %p59, %p60
      %p62 = pneg %p61
      // Predicated region
      $region9: #{tpu_custom_call.1} parent=5 // pred_check
        _
      $region10: #{tpu_custom_call.1} parent=5 // pred_check_branch
        %64 = sbr.rel (%p61) target = $region12
      $region11: #{tpu_custom_call.1} parent=5 // pred_region
        %s65 = ssub.s32 %s9, 1
        // Predicated region
        $region13: #{tpu_custom_call.1} parent=11 // pred_check
          %p66 = pneg %p30
        $region14: #{tpu_custom_call.1} parent=11 // pred_check_branch
          %68 = sbr.rel (%p66) target = $region16
        $region15: #{tpu_custom_call.1} parent=11 // pred_region
          %s70 = ssub.s32 128, 128
          %71 = vsyncadd [#allocation3], %s70
          %s73 = sshll.u32 [#allocation2], 4
          %s74 = int_to_ptr.vmem [resolvable:$true] %s73
          %76 = dma.hbm_to_vmem [thread:$0]  %s0, 128, %s74, [#allocation3]
        $region16: #{tpu_custom_call.1} parent=11 // pred_fallthru
          _
      $region12: #{tpu_custom_call.1} parent=5 // pred_fallthru
        _
      %p77 = scmp.lt.s32.totalorder %s9, 2
      // Predicated region
      $region17: #{tpu_custom_call.1} parent=5 // pred_check
        %p78 = pneg %p77
      $region18: #{tpu_custom_call.1} parent=5 // pred_check_branch
        %80 = sbr.rel (%p78) target = $region20
      $region19: #{tpu_custom_call.1} parent=5 // pred_region
        _
      $region20: #{tpu_custom_call.1} parent=5 // pred_fallthru
        _
      %p81 = scmp.le.s32.totalorder 1, %s9
      %p82 = scmp.lt.s32.totalorder %s9, 3
      %p83 = pnand %p81, %p82
      %p84 = pneg %p83
      // Predicated region
      $region21: #{tpu_custom_call.1} parent=5 // pred_check
        _
      $region22: #{tpu_custom_call.1} parent=5 // pred_check_branch
        %86 = sbr.rel (%p83) target = $region24
      $region23: #{tpu_custom_call.1} parent=5 // pred_region
        %s87 = ssub.s32 %s9, 1
        // Predicated region
        $region25: #{tpu_custom_call.1} parent=23 // pred_check
          %p88 = pneg %p30
        $region26: #{tpu_custom_call.1} parent=23 // pred_check_branch
          %90 = sbr.rel (%p88) target = $region28
        $region27: #{tpu_custom_call.1} parent=23 // pred_region
          %91 = dma.done [#allocation3], 128
        $region28: #{tpu_custom_call.1} parent=23 // pred_fallthru
          _
        %p92 = pneg %p30
        %p93 = pneg %p27
        %p94 = pneg %p51
        %p95 = pneg %p48
        %v96 = vld [vmem:[#allocation2] sm:$0xff]
        %v97 = vadd.f32 %v96, 1.0
        %98 = vst [vmem:[#allocation5] sm:$0xff] %v97
        // Predicated region
        $region29: #{tpu_custom_call.1} parent=23 // pred_check
          %p99 = pneg %p48
        $region30: #{tpu_custom_call.1} parent=23 // pred_check_branch
          %101 = sbr.rel (%p99) target = $region32
        $region31: #{tpu_custom_call.1} parent=23 // pred_region
          %s103 = ssub.s32 128, 128
          %104 = vsyncadd [#allocation4], %s103
          %s106 = sshll.u32 [#allocation5], 4
          %s107 = int_to_ptr.vmem [resolvable:$true] %s106
          %109 = dma.vmem_to_hbm [thread:$0]  %s107, 128, %s1, [#allocation4]
        $region32: #{tpu_custom_call.1} parent=23 // pred_fallthru
          _
        // Predicated region
        $region33: #{tpu_custom_call.1} parent=23 // pred_check
          %p110 = pneg %p48
        $region34: #{tpu_custom_call.1} parent=23 // pred_check_branch
          %112 = sbr.rel (%p110) target = $region36
        $region35: #{tpu_custom_call.1} parent=23 // pred_region
          %113 = dma.done [#allocation4], 128
        $region36: #{tpu_custom_call.1} parent=23 // pred_fallthru
          _
      $region24: #{tpu_custom_call.1} parent=5 // pred_fallthru
        _
      %p114 = scmp.le.s32.totalorder 2, %s9
      // Predicated region
      $region37: #{tpu_custom_call.1} parent=5 // pred_check
        %p115 = pneg %p114
      $region38: #{tpu_custom_call.1} parent=5 // pred_check_branch
        %117 = sbr.rel (%p115) target = $region40
      $region39: #{tpu_custom_call.1} parent=5 // pred_region
        %s118 = ssub.s32 %s9, 2
      $region40: #{tpu_custom_call.1} parent=5 // pred_fallthru
        _
    $region6: #{tpu_custom_call.1} parent=1 // loop_footer
      %s13 = sadd.s32 1, %s9
    $region7: #{tpu_custom_call.1} parent=1 // loop_footer_branch
      %8 = sbr.rel target = $region3
    $region8: #{tpu_custom_call.1} parent=1 // loop_exit
      _
    %119 = vsyncpa [#allocation3], 1
    %s120 = scalar_lea.sflag [#allocation3], 1
    %121 = vsyncpa %s120, 1
    %122 = vsyncpa [#allocation4], 1
    %s123 = scalar_lea.sflag [#allocation4], 1
    %124 = vsyncpa %s123, 1

// kernel: discriminator_forward.5
$region0: #{discriminator_forward.5}
  #allocation0 [shape = 'u32[]', space=smem, size = 0x4, offset = 0x4, fixed_abs, tag = 'smem constant byte address 0x4 - core index']
  #allocation1 [shape = 'u32[144,128]{1,0:T(1,128)}', space=vmem, size = 0x12000, scoped, tag = 'internal scratch']
  %s0 = inlined_call_operand.vmem [shape: bf16[512,128], index: 0, kind: input, shape index: {}]
  %s1 = inlined_call_operand.vmem [shape: bf16[128,128], index: 1, kind: input, shape index: {}]
  %s2 = inlined_call_operand.vmem [shape: f32[1,128], index: 2, kind: input, shape index: {}]
  %s3 = inlined_call_operand.vmem [shape: bf16[512,128], index: 3, kind: output, shape index: {}]
  %s4 = sld [smem:[#allocation0]]
  $region45: #{discriminator_forward.5} parent=0
    _
  %s6 = ssub.s32 1, %s4
  %s7 = scalar_select 0, %s6, %s4
  loop: start=0, step=1, limit=4
  $region2: #{discriminator_forward.5} parent=0 // loop_pre_header
    _
  $region3: #{discriminator_forward.5} parent=0 // loop_header
    %s9 = sphi 0, %s13
    %p10 = scmp.ge.s32.totalorder %s9, 4
    %s19 = sphi 0, %s21
    %s22 = sphi 0, %s19
    %s23 = sphi 0, %s22
    %s39 = sphi 0, %s23
    %s43 = sphi 0, %s43
    %s45 = sphi 0, %s43
    %s46 = sphi 0, %s45
    %s60 = sphi 0, %s46
    %s64 = sphi 0, %s64
    %s66 = sphi 0, %s64
    %s67 = sphi 0, %s66
    %s81 = sphi 0, %s67
    %s87 = sphi 0, %s89
    %s90 = sphi 0, %s87
    %s91 = sphi 0, %s90
    %s107 = sphi 0, %s91
  $region4: #{discriminator_forward.5} parent=0 // loop_header_branch
    %12 = sbr.rel (%p10) target = $region8
  $region5: #{discriminator_forward.5} parent=0 // loop_body
    %s14 = ssub.s32 %s9, 1
    %s15 = ssub.s32 %s9, 2
    %s16 = sadd.s32 %s9, 1
    %s17 = ssub.s32 %s9, %s16
    %p18 = scmp.eq.s32.totalorder %s17, 0
    %s20 = sadd.s32 %s19, 1
    %s21 = scalar_select %p18, %s19, %s20
    %p24 = pneg %p18
    %p25 = scmp.eq.s32.totalorder %s9, 1
    %p26 = por %p24, %p25
    %p27 = scmp.ne.s32.totalorder %s19, %s22
    %p28 = scmp.eq.s32.totalorder %s9, 0
    %p29 = por %p27, %p28
    %p30 = scmp.ne.s32.totalorder %s19, %s22
    %p31 = scmp.eq.s32.totalorder %s14, 1
    %p32 = por %p30, %p31
    %p33 = scmp.ne.s32.totalorder %s22, %s23
    %p34 = scmp.eq.s32.totalorder %s14, 0
    %p35 = por %p33, %p34
    %p36 = scmp.ne.s32.totalorder %s22, %s23
    %p37 = scmp.eq.s32.totalorder %s15, 1
    %p38 = por %p36, %p37
    %p40 = scmp.ne.s32.totalorder %s23, %s39
    %p41 = scmp.eq.s32.totalorder %s15, 0
    %p42 = por %p40, %p41
    %s44 = sadd.s32 %s43, 1
    %p47 = scmp.eq.s32.totalorder %s9, 1
    %p48 = scmp.ne.s32.totalorder %s43, %s45
    %p49 = scmp.eq.s32.totalorder %s9, 0
    %p50 = por %p48, %p49
    %p51 = scmp.ne.s32.totalorder %s43, %s45
    %p52 = scmp.eq.s32.totalorder %s14, 1
    %p53 = por %p51, %p52
    %p54 = scmp.ne.s32.totalorder %s45, %s46
    %p55 = scmp.eq.s32.totalorder %s14, 0
    %p56 = por %p54, %p55
    %p57 = scmp.ne.s32.totalorder %s45, %s46
    %p58 = scmp.eq.s32.totalorder %s15, 1
    %p59 = por %p57, %p58
    %p61 = scmp.ne.s32.totalorder %s46, %s60
    %p62 = scmp.eq.s32.totalorder %s15, 0
    %p63 = por %p61, %p62
    %s65 = sadd.s32 %s64, 1
    %p68 = scmp.eq.s32.totalorder %s9, 1
    %p69 = scmp.ne.s32.totalorder %s64, %s66
    %p70 = scmp.eq.s32.totalorder %s9, 0
    %p71 = por %p69, %p70
    %p72 = scmp.ne.s32.totalorder %s64, %s66
    %p73 = scmp.eq.s32.totalorder %s14, 1
    %p74 = por %p72, %p73
    %p75 = scmp.ne.s32.totalorder %s66, %s67
    %p76 = scmp.eq.s32.totalorder %s14, 0
    %p77 = por %p75, %p76
    %p78 = scmp.ne.s32.totalorder %s66, %s67
    %p79 = scmp.eq.s32.totalorder %s15, 1
    %p80 = por %p78, %p79
    %p82 = scmp.ne.s32.totalorder %s67, %s81
    %p83 = scmp.eq.s32.totalorder %s15, 0
    %p84 = por %p82, %p83
    %s85 = ssub.s32 %s9, %s16
    %p86 = scmp.eq.s32.totalorder %s85, 0
    %s88 = sadd.s32 %s87, 1
    %s89 = scalar_select %p86, %s87, %s88
    %p92 = pneg %p86
    %p93 = scmp.eq.s32.totalorder %s9, 1
    %p94 = por %p92, %p93
    %p95 = scmp.ne.s32.totalorder %s87, %s90
    %p96 = scmp.eq.s32.totalorder %s9, 0
    %p97 = por %p95, %p96
    %p98 = scmp.ne.s32.totalorder %s87, %s90
    %p99 = scmp.eq.s32.totalorder %s14, 1
    %p100 = por %p98, %p99
    %p101 = scmp.ne.s32.totalorder %s90, %s91
    %p102 = scmp.eq.s32.totalorder %s14, 0
    %p103 = por %p101, %p102
    %p104 = scmp.ne.s32.totalorder %s90, %s91
    %p105 = scmp.eq.s32.totalorder %s15, 1
    %p106 = por %p104, %p105
    %p108 = scmp.ne.s32.totalorder %s91, %s107
    %p109 = scmp.eq.s32.totalorder %s15, 0
    %p110 = por %p108, %p109
    %p111 = scmp.le.s32.totalorder 1, %s9
    %p112 = scmp.lt.s32.totalorder %s9, 3
    %p113 = pnand %p111, %p112
    %p114 = pneg %p113
    // Predicated region
    $region9: #{discriminator_forward.5} parent=5 // pred_check
      _
    $region10: #{discriminator_forward.5} parent=5 // pred_check_branch
      %116 = sbr.rel (%p113) target = $region12
    $region11: #{discriminator_forward.5} parent=5 // pred_region
      %s117 = ssub.s32 %s9, 1
      // Predicated region
      $region13: #{discriminator_forward.5} parent=11 // pred_check
        %p118 = pneg %p56
      $region14: #{discriminator_forward.5} parent=11 // pred_check_branch
        %120 = sbr.rel (%p118) target = $region16
      $region15: #{discriminator_forward.5} parent=11 // pred_region
        _
      $region16: #{discriminator_forward.5} parent=11 // pred_fallthru
        _
      // Predicated region
      $region17: #{discriminator_forward.5} parent=11 // pred_check
        %p121 = pneg %p77
      $region18: #{discriminator_forward.5} parent=11 // pred_check_branch
        %123 = sbr.rel (%p121) target = $region20
      $region19: #{discriminator_forward.5} parent=11 // pred_region
        _
      $region20: #{discriminator_forward.5} parent=11 // pred_fallthru
        _
    $region12: #{discriminator_forward.5} parent=5 // pred_fallthru
      _
    %p124 = scmp.lt.s32.totalorder %s9, 2
    // Predicated region
    $region21: #{discriminator_forward.5} parent=5 // pred_check
      %p125 = pneg %p124
    $region22: #{discriminator_forward.5} parent=5 // pred_check_branch
      %127 = sbr.rel (%p125) target = $region24
    $region23: #{discriminator_forward.5} parent=5 // pred_region
      // Predicated region
      $region25: #{discriminator_forward.5} parent=23 // pred_check
        %p128 = pneg %p29
      $region26: #{discriminator_forward.5} parent=23 // pred_check_branch
        %130 = sbr.rel (%p128) target = $region28
      $region27: #{discriminator_forward.5} parent=23 // pred_region
        %s131 = smul.u32 32, %s9
        %p132 = scmp.lt.s32.totalorder %s131, 63
        %s133 = scalar_select %p132, %s131, 63
        %s134 = smul.addr %s133, 4
        %s135 = scalar_lea.vmem %s0, %s134
        %s136 = smul.u32 32, %s9
      $region28: #{discriminator_forward.5} parent=23 // pred_fallthru
        _
    $region24: #{discriminator_forward.5} parent=5 // pred_fallthru
      _
    %p137 = scmp.le.s32.totalorder 1, %s9
    %p138 = scmp.lt.s32.totalorder %s9, 3
    %p139 = pnand %p137, %p138
    %p140 = pneg %p139
    // Predicated region
    $region29: #{discriminator_forward.5} parent=5 // pred_check
      _
    $region30: #{discriminator_forward.5} parent=5 // pred_check_branch
      %142 = sbr.rel (%p139) target = $region32
    $region31: #{discriminator_forward.5} parent=5 // pred_region
      %s143 = ssub.s32 %s9, 1
      %s144 = smul.u32 32, %s14
      %p145 = scmp.lt.s32.totalorder %s144, 63
      %s146 = scalar_select %p145, %s144, 63
      %s147 = smul.addr %s146, 4
      %s148 = scalar_lea.vmem %s0, %s147
      %p149 = pneg %p35
      %p150 = pneg %p32
      %p151 = pneg %p56
      %p152 = pneg %p53
      %p153 = pneg %p77
      %p154 = pneg %p74
      %p155 = pneg %p103
      %p156 = pneg %p100
      %s157 = smul.u32 32, %s14
      %p158 = scmp.lt.s32.totalorder %s157, 63
      %s159 = scalar_select %p158, %s157, 63
      %s160 = smul.addr %s159, 4
      %s161 = scalar_lea.vmem %s3, %s160
      %s162 = smul.u32 32, %s14
      %p163 = scmp.lt.s32.totalorder %s162, 63
      %s164 = scalar_select %p163, %s162, 63
      %s165 = smul.addr %s164, 4
      %s166 = scalar_lea.vmem %s0, %s165
      %s167 = smul.u32 32, %s14
      %s168 = smul.u32 32, %s14
      %p169 = scmp.lt.s32.totalorder %s168, 63
      %s170 = scalar_select %p169, %s168, 63
      %s171 = smul.addr %s170, 4
      %s172 = scalar_lea.vmem %s3, %s171
      %s173 = smul.u32 32, %s14
      %v175 = vld [vmem:[%s166] sm:$0xf]
      %v176 = vld [vmem:[%s166 + $0x4] sm:$0xf]
      %v177 = vld [vmem:[%s166 + $0x8] sm:$0xf]
      %v178 = vld [vmem:[%s166 + $0xc] sm:$0xf]
      %v179 = vld [vmem:[%s166 + $0x10] sm:$0xf]
      %v180 = vld [vmem:[%s166 + $0x14] sm:$0xf]
      %v181 = vld [vmem:[%s166 + $0x18] sm:$0xf]
      %v182 = vld [vmem:[%s166 + $0x1c] sm:$0xf]
      %v183 = vld [vmem:[%s166 + $0x20] sm:$0xf]
      %v184 = vld [vmem:[%s166 + $0x24] sm:$0xf]
      %v185 = vld [vmem:[%s166 + $0x28] sm:$0xf]
      %v186 = vld [vmem:[%s166 + $0x2c] sm:$0xf]
      %v187 = vld [vmem:[%s166 + $0x30] sm:$0xf]
      %v188 = vld [vmem:[%s166 + $0x34] sm:$0xf]
      %v189 = vld [vmem:[%s166 + $0x38] sm:$0xf]
      %v190 = vld [vmem:[%s166 + $0x3c] sm:$0xf]
      %v191 = vld [vmem:[%s166 + $0x40] sm:$0xf]
      %v192 = vld [vmem:[%s166 + $0x44] sm:$0xf]
      %v193 = vld [vmem:[%s166 + $0x48] sm:$0xf]
      %v194 = vld [vmem:[%s166 + $0x4c] sm:$0xf]
      %v195 = vld [vmem:[%s166 + $0x50] sm:$0xf]
      %v196 = vld [vmem:[%s166 + $0x54] sm:$0xf]
      %v197 = vld [vmem:[%s166 + $0x58] sm:$0xf]
      %v198 = vld [vmem:[%s166 + $0x5c] sm:$0xf]
      %v199 = vld [vmem:[%s166 + $0x60] sm:$0xf]
      %v200 = vld [vmem:[%s166 + $0x64] sm:$0xf]
      %v201 = vld [vmem:[%s166 + $0x68] sm:$0xf]
      %v202 = vld [vmem:[%s166 + $0x6c] sm:$0xf]
      %v203 = vld [vmem:[%s166 + $0x70] sm:$0xf]
      %v204 = vld [vmem:[%s166 + $0x74] sm:$0xf]
      %v205 = vld [vmem:[%s166 + $0x78] sm:$0xf]
      %v206 = vld [vmem:[%s166 + $0x7c] sm:$0xf]
      %v207 = vld [vmem:[%s1] sm:$0xf]
      %v208 = vld [vmem:[%s1 + $0x4] sm:$0xf]
      %v209 = vld [vmem:[%s1 + $0x8] sm:$0xf]
      %v210 = vld [vmem:[%s1 + $0xc] sm:$0xf]
      %v211 = vld [vmem:[%s1 + $0x10] sm:$0xf]
      %v212 = vld [vmem:[%s1 + $0x14] sm:$0xf]
      %v213 = vld [vmem:[%s1 + $0x18] sm:$0xf]
      %v214 = vld [vmem:[%s1 + $0x1c] sm:$0xf]
      %v215 = vld [vmem:[%s1 + $0x20] sm:$0xf]
      %v216 = vld [vmem:[%s1 + $0x24] sm:$0xf]
      %v217 = vld [vmem:[%s1 + $0x28] sm:$0xf]
      %v218 = vld [vmem:[%s1 + $0x2c] sm:$0xf]
      %v219 = vld [vmem:[%s1 + $0x30] sm:$0xf]
      %v220 = vld [vmem:[%s1 + $0x34] sm:$0xf]
      %v221 = vld [vmem:[%s1 + $0x38] sm:$0xf]
      %v222 = vld [vmem:[%s1 + $0x3c] sm:$0xf]
      %v223 = vld [vmem:[%s2] sm:$0x1]
      %v225 = vlaneseq
      %v226 = vshrl.u32 %v225, 7
      %v227 = vsub.s32 0, %v226
      %v228 = vrot.slane %v223, %v227
      %v262 = vunpack.c.l.b16 %v175
      %v263 = vunpack.c.l.b16 %v176
      %v264 = vunpack.c.l.b16 %v177
      %v265 = vunpack.c.l.b16 %v178
      %v266 = vunpack.c.l.b16 %v179
      %v267 = vunpack.c.l.b16 %v180
      %v268 = vunpack.c.l.b16 %v181
      %v269 = vunpack.c.l.b16 %v182
      %v270 = vunpack.c.l.b16 %v183
      %v271 = vunpack.c.l.b16 %v184
      %v272 = vunpack.c.l.b16 %v185
      %v273 = vunpack.c.l.b16 %v186
      %v274 = vunpack.c.l.b16 %v187
      %v275 = vunpack.c.l.b16 %v188
      %v276 = vunpack.c.l.b16 %v189
      %v277 = vunpack.c.l.b16 %v190
      %v278 = vunpack.c.l.b16 %v191
      %v279 = vunpack.c.l.b16 %v192
      %v280 = vunpack.c.l.b16 %v193
      %v281 = vunpack.c.l.b16 %v194
      %v282 = vunpack.c.l.b16 %v195
      %v283 = vunpack.c.l.b16 %v196
      %v284 = vunpack.c.l.b16 %v197
      %v285 = vunpack.c.l.b16 %v198
      %v286 = vunpack.c.l.b16 %v199
      %v287 = vunpack.c.l.b16 %v200
      %v288 = vunpack.c.l.b16 %v201
      %v289 = vunpack.c.l.b16 %v202
      %v290 = vunpack.c.l.b16 %v203
      %v291 = vunpack.c.l.b16 %v204
      %v292 = vunpack.c.l.b16 %v205
      %v293 = vunpack.c.l.b16 %v206
      %v294 = vpack.c.b16 %v263, %v262
      %v295 = vpack.c.b16 %v265, %v264
      %v296 = vpack.c.b16 %v267, %v266
      %v297 = vpack.c.b16 %v269, %v268
      %v298 = vpack.c.b16 %v271, %v270
      %v299 = vpack.c.b16 %v273, %v272
      %v300 = vpack.c.b16 %v275, %v274
      %v301 = vpack.c.b16 %v277, %v276
      %v302 = vpack.c.b16 %v279, %v278
      %v303 = vpack.c.b16 %v281, %v280
      %v304 = vpack.c.b16 %v283, %v282
      %v305 = vpack.c.b16 %v285, %v284
      %v306 = vpack.c.b16 %v287, %v286
      %v307 = vpack.c.b16 %v289, %v288
      %v308 = vpack.c.b16 %v291, %v290
      %v309 = vpack.c.b16 %v293, %v292
      %v342 = vunpack.c.l.b16 %v207
      %v343 = vunpack.c.l.b16 %v208
      %v344 = vunpack.c.l.b16 %v209
      %v345 = vunpack.c.l.b16 %v210
      %v346 = vunpack.c.l.b16 %v211
      %v347 = vunpack.c.l.b16 %v212
      %v348 = vunpack.c.l.b16 %v213
      %v349 = vunpack.c.l.b16 %v214
      %v350 = vunpack.c.l.b16 %v215
      %v351 = vunpack.c.l.b16 %v216
      %v352 = vunpack.c.l.b16 %v217
      %v353 = vunpack.c.l.b16 %v218
      %v354 = vunpack.c.l.b16 %v219
      %v355 = vunpack.c.l.b16 %v220
      %v356 = vunpack.c.l.b16 %v221
      %v357 = vunpack.c.l.b16 %v222
      %v358 = vpack.c.b16 %v343, %v342
      %v359 = vpack.c.b16 %v345, %v344
      %v360 = vpack.c.b16 %v347, %v346
      %v361 = vpack.c.b16 %v349, %v348
      %v362 = vpack.c.b16 %v351, %v350
      %v363 = vpack.c.b16 %v353, %v352
      %v364 = vpack.c.b16 %v355, %v354
      %v365 = vpack.c.b16 %v357, %v356
      %374 = vmatprep.subr.bf16.mxu0 0
      %375 = vmatpush1.bf16.msra.mxu0 %v365
      %376 = vmatprep.subr.bf16.mxu0 0
      %377 = vmatpush1.bf16.msra.mxu0 %v364
      %378 = vmatprep.subr.bf16.mxu0 0
      %379 = vmatpush1.bf16.msra.mxu0 %v363
      %380 = vmatprep.subr.bf16.mxu0 0
      %381 = vmatpush1.bf16.msra.mxu0 %v362
      %382 = vmatprep.subr.bf16.mxu0 0
      %383 = vmatpush1.bf16.msra.mxu0 %v361
      %384 = vmatprep.subr.bf16.mxu0 0
      %385 = vmatpush1.bf16.msra.mxu0 %v360
      %386 = vmatprep.subr.bf16.mxu0 0
      %387 = vmatpush1.bf16.msra.mxu0 %v359
      %388 = vmatprep.subr.bf16.mxu0 0
      %389 = vmatpush1.bf16.msra.mxu0 %v358
      %390 = vmatprep.subr.bf16.mxu0 0
      %391 = vmatpush2.bf16.msra.mxu0 0
      %392 = vmatprep.subr.bf16.mxu0 0
      %393 = vmatpush2.bf16.msra.mxu0 0
      %394 = vmatprep.subr.bf16.mxu0 0
      %395 = vmatpush2.bf16.msra.mxu0 0
      %396 = vmatprep.subr.bf16.mxu0 0
      %397 = vmatpush2.bf16.msra.mxu0 0
      %398 = vmatprep.subr.bf16.mxu0 0
      %399 = vmatpush2.bf16.msra.mxu0 0
      %400 = vmatprep.subr.bf16.mxu0 0
      %401 = vmatpush2.bf16.msra.mxu0 0
      %402 = vmatprep.subr.bf16.mxu0 0
      %403 = vmatpush2.bf16.msra.mxu0 0
      %404 = vmatprep.subr.bf16.mxu0 0
      %405 = vmatpush2.bf16.msra.mxu0 0
      %406 = vmatprep.mubr.bf16.mxu0 0
      %407 = vmatmul.mubr.bf16.gmra.mxu0 %v294
      %v408 = vpop.f32.mrf.mxu0
      %v409 = vadd.f32 %v228, %v408
      %v410 = vpop.f32.mrf.mxu0
      %v411 = vpop.f32.mrf.mxu0
      %v412 = vadd.f32 %v228, %v411
      %v413 = vpop.f32.mrf.mxu0
      %414 = vmatprep.mubr.bf16.mxu0 0
      %415 = vmatmul.mubr.bf16.gmra.mxu0 %v295
      %v416 = vpop.f32.mrf.mxu0
      %v417 = vadd.f32 %v228, %v416
      %v418 = vpop.f32.mrf.mxu0
      %v419 = vpop.f32.mrf.mxu0
      %v420 = vadd.f32 %v228, %v419
      %v421 = vpop.f32.mrf.mxu0
      %422 = vmatprep.mubr.bf16.mxu0 0
      %423 = vmatmul.mubr.bf16.gmra.mxu0 %v296
      %v424 = vpop.f32.mrf.mxu0
      %v425 = vadd.f32 %v228, %v424
      %v426 = vpop.f32.mrf.mxu0
      %v427 = vpop.f32.mrf.mxu0
      %v428 = vadd.f32 %v228, %v427
      %v429 = vpop.f32.mrf.mxu0
      %430 = vmatprep.mubr.bf16.mxu0 0
      %431 = vmatmul.mubr.bf16.gmra.mxu0 %v297
      %v432 = vpop.f32.mrf.mxu0
      %v433 = vadd.f32 %v228, %v432
      %v434 = vpop.f32.mrf.mxu0
      %v435 = vpop.f32.mrf.mxu0
      %v436 = vadd.f32 %v228, %v435
      %v437 = vpop.f32.mrf.mxu0
      %438 = vmatprep.mubr.bf16.mxu0 0
      %439 = vmatmul.mubr.bf16.gmra.mxu0 %v298
      %v440 = vpop.f32.mrf.mxu0
      %v441 = vadd.f32 %v228, %v440
      %v442 = vpop.f32.mrf.mxu0
      %v443 = vpop.f32.mrf.mxu0
      %v444 = vadd.f32 %v228, %v443
      %v445 = vpop.f32.mrf.mxu0
      %446 = vmatprep.mubr.bf16.mxu0 0
      %447 = vmatmul.mubr.bf16.gmra.mxu0 %v299
      %v448 = vpop.f32.mrf.mxu0
      %v449 = vadd.f32 %v228, %v448
      %v450 = vpop.f32.mrf.mxu0
      %v451 = vpop.f32.mrf.mxu0
      %v452 = vadd.f32 %v228, %v451
      %v453 = vpop.f32.mrf.mxu0
      %454 = vmatprep.mubr.bf16.mxu0 0
      %455 = vmatmul.mubr.bf16.gmra.mxu0 %v300
      %v456 = vpop.f32.mrf.mxu0
      %v457 = vadd.f32 %v228, %v456
      %v458 = vpop.f32.mrf.mxu0
      %v459 = vpop.f32.mrf.mxu0
      %v460 = vadd.f32 %v228, %v459
      %v461 = vpop.f32.mrf.mxu0
      %462 = vmatprep.mubr.bf16.mxu0 0
      %463 = vmatmul.mubr.bf16.gmra.mxu0 %v301
      %v464 = vpop.f32.mrf.mxu0
      %v465 = vadd.f32 %v228, %v464
      %v466 = vpop.f32.mrf.mxu0
      %v467 = vpop.f32.mrf.mxu0
      %v468 = vadd.f32 %v228, %v467
      %v469 = vpop.f32.mrf.mxu0
      %470 = vmatprep.mubr.bf16.mxu0 0
      %471 = vmatmul.mubr.bf16.gmra.mxu0 %v302
      %v472 = vpop.f32.mrf.mxu0
      %v473 = vadd.f32 %v228, %v472
      %v474 = vpop.f32.mrf.mxu0
      %v475 = vpop.f32.mrf.mxu0
      %v476 = vadd.f32 %v228, %v475
      %v477 = vpop.f32.mrf.mxu0
      %478 = vmatprep.mubr.bf16.mxu0 0
      %479 = vmatmul.mubr.bf16.gmra.mxu0 %v303
      %v480 = vpop.f32.mrf.mxu0
      %v481 = vadd.f32 %v228, %v480
      %v482 = vpop.f32.mrf.mxu0
      %v483 = vpop.f32.mrf.mxu0
      %v484 = vadd.f32 %v228, %v483
      %v485 = vpop.f32.mrf.mxu0
      %486 = vmatprep.mubr.bf16.mxu0 0
      %487 = vmatmul.mubr.bf16.gmra.mxu0 %v304
      %v488 = vpop.f32.mrf.mxu0
      %v489 = vadd.f32 %v228, %v488
      %v490 = vpop.f32.mrf.mxu0
      %v491 = vpop.f32.mrf.mxu0
      %v492 = vadd.f32 %v228, %v491
      %v493 = vpop.f32.mrf.mxu0
      %494 = vmatprep.mubr.bf16.mxu0 0
      %495 = vmatmul.mubr.bf16.gmra.mxu0 %v305
      %v496 = vpop.f32.mrf.mxu0
      %v497 = vadd.f32 %v228, %v496
      %v498 = vpop.f32.mrf.mxu0
      %v499 = vpop.f32.mrf.mxu0
      %v500 = vadd.f32 %v228, %v499
      %v501 = vpop.f32.mrf.mxu0
      %502 = vmatprep.mubr.bf16.mxu0 0
      %503 = vmatmul.mubr.bf16.gmra.mxu0 %v306
      %v504 = vpop.f32.mrf.mxu0
      %v505 = vadd.f32 %v228, %v504
      %v506 = vpop.f32.mrf.mxu0
      %v507 = vpop.f32.mrf.mxu0
      %v508 = vadd.f32 %v228, %v507
      %v509 = vpop.f32.mrf.mxu0
      %510 = vmatprep.mubr.bf16.mxu0 0
      %511 = vmatmul.mubr.bf16.gmra.mxu0 %v307
      %v512 = vpop.f32.mrf.mxu0
      %v513 = vadd.f32 %v228, %v512
      %v514 = vpop.f32.mrf.mxu0
      %v515 = vpop.f32.mrf.mxu0
      %v516 = vadd.f32 %v228, %v515
      %v517 = vpop.f32.mrf.mxu0
      %518 = vmatprep.mubr.bf16.mxu0 0
      %519 = vmatmul.mubr.bf16.gmra.mxu0 %v308
      %v520 = vpop.f32.mrf.mxu0
      %v521 = vadd.f32 %v228, %v520
      %v522 = vpop.f32.mrf.mxu0
      %v523 = vpop.f32.mrf.mxu0
      %v524 = vadd.f32 %v228, %v523
      %v525 = vpop.f32.mrf.mxu0
      %526 = vmatprep.mubr.bf16.mxu0 0
      %527 = vmatmul.mubr.bf16.gmra.mxu0 %v309
      %v528 = vpop.f32.mrf.mxu0
      %v529 = vadd.f32 %v228, %v528
      %v530 = vpop.f32.mrf.mxu0
      %v531 = vpop.f32.mrf.mxu0
      %v532 = vadd.f32 %v228, %v531
      %v533 = vpop.f32.mrf.mxu0
      %534 = vdwg.mxu0
      %v535 = vmul.f32 %v409, 0.2
      %v536 = vmul.f32 %v412, 0.2
      %v537 = vmul.f32 %v417, 0.2
      %v538 = vmul.f32 %v420, 0.2
      %v539 = vmul.f32 %v425, 0.2
      %v540 = vmul.f32 %v428, 0.2
      %v541 = vmul.f32 %v433, 0.2
      %v542 = vmul.f32 %v436, 0.2
      %v543 = vmul.f32 %v441, 0.2
      %v544 = vmul.f32 %v444, 0.2
      %v545 = vmul.f32 %v449, 0.2
      %v546 = vmul.f32 %v452, 0.2
      %v547 = vmul.f32 %v457, 0.2
      %v548 = vmul.f32 %v460, 0.2
      %v549 = vmul.f32 %v465, 0.2
      %v550 = vmul.f32 %v468, 0.2
      %v551 = vmul.f32 %v473, 0.2
      %v552 = vmul.f32 %v476, 0.2
      %v553 = vmul.f32 %v481, 0.2
      %v554 = vmul.f32 %v484, 0.2
      %v555 = vmul.f32 %v489, 0.2
      %v556 = vmul.f32 %v492, 0.2
      %v557 = vmul.f32 %v497, 0.2
      %v558 = vmul.f32 %v500, 0.2
      %v559 = vmul.f32 %v505, 0.2
      %v560 = vmul.f32 %v508, 0.2
      %v561 = vmul.f32 %v513, 0.2
      %v562 = vmul.f32 %v516, 0.2
      %v563 = vmul.f32 %v521, 0.2
      %v564 = vmul.f32 %v524, 0.2
      %v565 = vmul.f32 %v529, 0.2
      %v566 = vmul.f32 %v532, 0.2
      %v567 = vmax.f32 %v409, %v535
      %v568 = vmax.f32 %v412, %v536
      %v569 = vmax.f32 %v417, %v537
      %v570 = vmax.f32 %v420, %v538
      %v571 = vmax.f32 %v425, %v539
      %v572 = vmax.f32 %v428, %v540
      %v573 = vmax.f32 %v433, %v541
      %v574 = vmax.f32 %v436, %v542
      %v575 = vmax.f32 %v441, %v543
      %v576 = vmax.f32 %v444, %v544
      %v577 = vmax.f32 %v449, %v545
      %v578 = vmax.f32 %v452, %v546
      %v579 = vmax.f32 %v457, %v547
      %v580 = vmax.f32 %v460, %v548
      %v581 = vmax.f32 %v465, %v549
      %v582 = vmax.f32 %v468, %v550
      %v583 = vmax.f32 %v473, %v551
      %v584 = vmax.f32 %v476, %v552
      %v585 = vmax.f32 %v481, %v553
      %v586 = vmax.f32 %v484, %v554
      %v587 = vmax.f32 %v489, %v555
      %v588 = vmax.f32 %v492, %v556
      %v589 = vmax.f32 %v497, %v557
      %v590 = vmax.f32 %v500, %v558
      %v591 = vmax.f32 %v505, %v559
      %v592 = vmax.f32 %v508, %v560
      %v593 = vmax.f32 %v513, %v561
      %v594 = vmax.f32 %v516, %v562
      %v595 = vmax.f32 %v521, %v563
      %v596 = vmax.f32 %v524, %v564
      %v597 = vmax.f32 %v529, %v565
      %v598 = vmax.f32 %v532, %v566
      %v599 = vpack.c.bf16 %v568, %v567
      %v600 = vpack.c.bf16 %v570, %v569
      %v601 = vpack.c.bf16 %v572, %v571
      %v602 = vpack.c.bf16 %v574, %v573
      %v603 = vpack.c.bf16 %v576, %v575
      %v604 = vpack.c.bf16 %v578, %v577
      %v605 = vpack.c.bf16 %v580, %v579
      %v606 = vpack.c.bf16 %v582, %v581
      %v607 = vpack.c.bf16 %v584, %v583
      %v608 = vpack.c.bf16 %v586, %v585
      %v609 = vpack.c.bf16 %v588, %v587
      %v610 = vpack.c.bf16 %v590, %v589
      %v611 = vpack.c.bf16 %v592, %v591
      %v612 = vpack.c.bf16 %v594, %v593
      %v613 = vpack.c.bf16 %v596, %v595
      %v614 = vpack.c.bf16 %v598, %v597
      %v631 = vunpack.c.l.b16 %v599
      %v632 = vunpack.c.h.b16 %v599
      %v633 = vunpack.c.l.b16 %v600
      %v634 = vunpack.c.h.b16 %v600
      %v635 = vunpack.c.l.b16 %v601
      %v636 = vunpack.c.h.b16 %v601
      %v637 = vunpack.c.l.b16 %v602
      %v638 = vunpack.c.h.b16 %v602
      %v639 = vunpack.c.l.b16 %v603
      %v640 = vunpack.c.h.b16 %v603
      %v641 = vunpack.c.l.b16 %v604
      %v642 = vunpack.c.h.b16 %v604
      %v643 = vunpack.c.l.b16 %v605
      %v644 = vunpack.c.h.b16 %v605
      %v645 = vunpack.c.l.b16 %v606
      %v646 = vunpack.c.h.b16 %v606
      %v647 = vunpack.c.l.b16 %v607
      %v648 = vunpack.c.h.b16 %v607
      %v649 = vunpack.c.l.b16 %v608
      %v650 = vunpack.c.h.b16 %v608
      %v651 = vunpack.c.l.b16 %v609
      %v652 = vunpack.c.h.b16 %v609
      %v653 = vunpack.c.l.b16 %v610
      %v654 = vunpack.c.h.b16 %v610
      %v655 = vunpack.c.l.b16 %v611
      %v656 = vunpack.c.h.b16 %v611
      %v657 = vunpack.c.l.b16 %v612
      %v658 = vunpack.c.h.b16 %v612
      %v659 = vunpack.c.l.b16 %v613
      %v660 = vunpack.c.h.b16 %v613
      %v661 = vunpack.c.l.b16 %v614
      %v662 = vunpack.c.h.b16 %v614
      %v663 = vpack.c.b16 %v631, %v631
      %v664 = vpack.c.b16 %v632, %v632
      %v665 = vpack.c.b16 %v633, %v633
      %v666 = vpack.c.b16 %v634, %v634
      %v667 = vpack.c.b16 %v635, %v635
      %v668 = vpack.c.b16 %v636, %v636
      %v669 = vpack.c.b16 %v637, %v637
      %v670 = vpack.c.b16 %v638, %v638
      %v671 = vpack.c.b16 %v639, %v639
      %v672 = vpack.c.b16 %v640, %v640
      %v673 = vpack.c.b16 %v641, %v641
      %v674 = vpack.c.b16 %v642, %v642
      %v675 = vpack.c.b16 %v643, %v643
      %v676 = vpack.c.b16 %v644, %v644
      %v677 = vpack.c.b16 %v645, %v645
      %v678 = vpack.c.b16 %v646, %v646
      %v679 = vpack.c.b16 %v647, %v647
      %v680 = vpack.c.b16 %v648, %v648
      %v681 = vpack.c.b16 %v649, %v649
      %v682 = vpack.c.b16 %v650, %v650
      %v683 = vpack.c.b16 %v651, %v651
      %v684 = vpack.c.b16 %v652, %v652
      %v685 = vpack.c.b16 %v653, %v653
      %v686 = vpack.c.b16 %v654, %v654
      %v687 = vpack.c.b16 %v655, %v655
      %v688 = vpack.c.b16 %v656, %v656
      %v689 = vpack.c.b16 %v657, %v657
      %v690 = vpack.c.b16 %v658, %v658
      %v691 = vpack.c.b16 %v659, %v659
      %v692 = vpack.c.b16 %v660, %v660
      %v693 = vpack.c.b16 %v661, %v661
      %v694 = vpack.c.b16 %v662, %v662
      %727 = vst [vmem:[%s172] sm:$0xf] %v663
      %728 = vst [vmem:[%s172 + $0x4] sm:$0xf] %v664
      %729 = vst [vmem:[%s172 + $0x8] sm:$0xf] %v665
      %730 = vst [vmem:[%s172 + $0xc] sm:$0xf] %v666
      %731 = vst [vmem:[%s172 + $0x10] sm:$0xf] %v667
      %732 = vst [vmem:[%s172 + $0x14] sm:$0xf] %v668
      %733 = vst [vmem:[%s172 + $0x18] sm:$0xf] %v669
      %734 = vst [vmem:[%s172 + $0x1c] sm:$0xf] %v670
      %735 = vst [vmem:[%s172 + $0x20] sm:$0xf] %v671
      %736 = vst [vmem:[%s172 + $0x24] sm:$0xf] %v672
      %737 = vst [vmem:[%s172 + $0x28] sm:$0xf] %v673
      %738 = vst [vmem:[%s172 + $0x2c] sm:$0xf] %v674
      %739 = vst [vmem:[%s172 + $0x30] sm:$0xf] %v675
      %740 = vst [vmem:[%s172 + $0x34] sm:$0xf] %v676
      %741 = vst [vmem:[%s172 + $0x38] sm:$0xf] %v677
      %742 = vst [vmem:[%s172 + $0x3c] sm:$0xf] %v678
      %743 = vst [vmem:[%s172 + $0x40] sm:$0xf] %v679
      %744 = vst [vmem:[%s172 + $0x44] sm:$0xf] %v680
      %745 = vst [vmem:[%s172 + $0x48] sm:$0xf] %v681
      %746 = vst [vmem:[%s172 + $0x4c] sm:$0xf] %v682
      %747 = vst [vmem:[%s172 + $0x50] sm:$0xf] %v683
      %748 = vst [vmem:[%s172 + $0x54] sm:$0xf] %v684
      %749 = vst [vmem:[%s172 + $0x58] sm:$0xf] %v685
      %750 = vst [vmem:[%s172 + $0x5c] sm:$0xf] %v686
      %751 = vst [vmem:[%s172 + $0x60] sm:$0xf] %v687
      %752 = vst [vmem:[%s172 + $0x64] sm:$0xf] %v688
      %753 = vst [vmem:[%s172 + $0x68] sm:$0xf] %v689
      %754 = vst [vmem:[%s172 + $0x6c] sm:$0xf] %v690
      %755 = vst [vmem:[%s172 + $0x70] sm:$0xf] %v691
      %756 = vst [vmem:[%s172 + $0x74] sm:$0xf] %v692
      %757 = vst [vmem:[%s172 + $0x78] sm:$0xf] %v693
      %758 = vst [vmem:[%s172 + $0x7c] sm:$0xf] %v694
      %s759 = smul.u32 32, %s14
      %p760 = scmp.lt.s32.totalorder %s759, 63
      %s761 = scalar_select %p760, %s759, 63
      %s762 = smul.addr %s761, 4
      %s763 = scalar_lea.vmem %s3, %s762
      // Predicated region
      $region33: #{discriminator_forward.5} parent=31 // pred_check
        %p764 = pneg %p100
      $region34: #{discriminator_forward.5} parent=31 // pred_check_branch
        %766 = sbr.rel (%p764) target = $region36
      $region35: #{discriminator_forward.5} parent=31 // pred_region
        %s767 = smul.u32 32, %s14
      $region36: #{discriminator_forward.5} parent=31 // pred_fallthru
        _
    $region32: #{discriminator_forward.5} parent=5 // pred_fallthru
      _
    %p768 = scmp.le.s32.totalorder 2, %s9
    // Predicated region
    $region37: #{discriminator_forward.5} parent=5 // pred_check
      %p769 = pneg %p768
    $region38: #{discriminator_forward.5} parent=5 // pred_check_branch
      %771 = sbr.rel (%p769) target = $region40
    $region39: #{discriminator_forward.5} parent=5 // pred_region
      %s772 = ssub.s32 %s9, 2
      // Predicated region
      $region41: #{discriminator_forward.5} parent=39 // pred_check
        %p773 = pneg %p106
      $region42: #{discriminator_forward.5} parent=39 // pred_check_branch
        %775 = sbr.rel (%p773) target = $region44
      $region43: #{discriminator_forward.5} parent=39 // pred_region
        %s776 = smul.u32 32, %s15
        %p777 = scmp.lt.s32.totalorder %s776, 63
        %s778 = scalar_select %p777, %s776, 63
        %s779 = smul.addr %s778, 4
        %s780 = scalar_lea.vmem %s3, %s779
      $region44: #{discriminator_forward.5} parent=39 // pred_fallthru
        _
    $region40: #{discriminator_forward.5} parent=5 // pred_fallthru
      _
  $region6: #{discriminator_forward.5} parent=0 // loop_footer
    %s13 = sadd.s32 1, %s9
  $region7: #{discriminator_forward.5} parent=0 // loop_footer_branch
    %8 = sbr.rel target = $region3
  $region8: #{discriminator_forward.5} parent=0 // loop_exit
    _

// kernel: discriminator_forward.6
$region0: #{discriminator_forward.6}
  #allocation0 [shape = 'u32[]', space=smem, size = 0x4, offset = 0x4, fixed_abs, tag = 'smem constant byte address 0x4 - core index']
  #allocation1 [shape = 'u32[144,128]{1,0:T(1,128)}', space=vmem, size = 0x12000, scoped, tag = 'internal scratch']
  #allocation2 [shape = 'f32[128,128]{1,0:T(8,128)}', space=vmem, size = 0x10000, scoped, tag = 'scratch operand']
  %s0 = inlined_call_operand.vmem [shape: bf16[128,256], index: 0, kind: input, shape index: {}]
  %s1 = inlined_call_operand.vmem [shape: bf16[256,128], index: 1, kind: input, shape index: {}]
  %s2 = inlined_call_operand.vmem [shape: f32[1,128], index: 2, kind: input, shape index: {}]
  %s3 = inlined_call_operand.vmem [shape: f32[1,128], index: 3, kind: input, shape index: {}]
  %s4 = inlined_call_operand.vmem [shape: bf16[128,128], index: 4, kind: output, shape index: {}]
  %s5 = sld [smem:[#allocation0]]
  $region30: #{discriminator_forward.6} parent=0
    _
  %s7 = ssub.s32 1, %s5
  %s8 = scalar_select 0, %s7, %s5
  // Predicated region
  $region2: #{discriminator_forward.6} parent=0 // pred_check
    _
  $region3: #{discriminator_forward.6} parent=0 // pred_check_branch
    %10 = sbr.rel (0) target = $region5
  $region4: #{discriminator_forward.6} parent=0 // pred_region
    _
  $region5: #{discriminator_forward.6} parent=0 // pred_fallthru
    _
  // Predicated region
  $region6: #{discriminator_forward.6} parent=0 // pred_check
    _
  $region7: #{discriminator_forward.6} parent=0 // pred_check_branch
    %12 = sbr.rel (0) target = $region9
  $region8: #{discriminator_forward.6} parent=0 // pred_region
    _
  $region9: #{discriminator_forward.6} parent=0 // pred_fallthru
    _
  // Predicated region
  $region10: #{discriminator_forward.6} parent=0 // pred_check
    _
  $region11: #{discriminator_forward.6} parent=0 // pred_check_branch
    %14 = sbr.rel (0) target = $region13
  $region12: #{discriminator_forward.6} parent=0 // pred_region
    _
  $region13: #{discriminator_forward.6} parent=0 // pred_fallthru
    _
  // Predicated region
  $region14: #{discriminator_forward.6} parent=0 // pred_check
    _
  $region15: #{discriminator_forward.6} parent=0 // pred_check_branch
    %16 = sbr.rel (0) target = $region17
  $region16: #{discriminator_forward.6} parent=0 // pred_region
    _
  $region17: #{discriminator_forward.6} parent=0 // pred_fallthru
    _
  %v18 = vld [vmem:[%s0] sm:$0xff]
  %v19 = vld [vmem:[%s0 + $0x8] sm:$0xff]
  %v20 = vld [vmem:[%s0 + $0x10] sm:$0xff]
  %v21 = vld [vmem:[%s0 + $0x18] sm:$0xff]
  %v22 = vld [vmem:[%s0 + $0x20] sm:$0xff]
  %v23 = vld [vmem:[%s0 + $0x28] sm:$0xff]
  %v24 = vld [vmem:[%s0 + $0x30] sm:$0xff]
  %v25 = vld [vmem:[%s0 + $0x38] sm:$0xff]
  %v26 = vld [vmem:[%s0 + $0x40] sm:$0xff]
  %v27 = vld [vmem:[%s0 + $0x48] sm:$0xff]
  %v28 = vld [vmem:[%s0 + $0x50] sm:$0xff]
  %v29 = vld [vmem:[%s0 + $0x58] sm:$0xff]
  %v30 = vld [vmem:[%s0 + $0x60] sm:$0xff]
  %v31 = vld [vmem:[%s0 + $0x68] sm:$0xff]
  %v32 = vld [vmem:[%s0 + $0x70] sm:$0xff]
  %v33 = vld [vmem:[%s0 + $0x78] sm:$0xff]
  %v34 = vld [vmem:[%s1] sm:$0xf]
  %v35 = vld [vmem:[%s1 + $0x4] sm:$0xf]
  %v36 = vld [vmem:[%s1 + $0x8] sm:$0xf]
  %v37 = vld [vmem:[%s1 + $0xc] sm:$0xf]
  %v38 = vld [vmem:[%s1 + $0x10] sm:$0xf]
  %v39 = vld [vmem:[%s1 + $0x14] sm:$0xf]
  %v40 = vld [vmem:[%s1 + $0x18] sm:$0xf]
  %v41 = vld [vmem:[%s1 + $0x1c] sm:$0xf]
  %v42 = vld [vmem:[%s1 + $0x20] sm:$0xf]
  %v43 = vld [vmem:[%s1 + $0x24] sm:$0xf]
  %v44 = vld [vmem:[%s1 + $0x28] sm:$0xf]
  %v45 = vld [vmem:[%s1 + $0x2c] sm:$0xf]
  %v46 = vld [vmem:[%s1 + $0x30] sm:$0xf]
  %v47 = vld [vmem:[%s1 + $0x34] sm:$0xf]
  %v48 = vld [vmem:[%s1 + $0x38] sm:$0xf]
  %v49 = vld [vmem:[%s1 + $0x3c] sm:$0xf]
  %v50 = vld [vmem:[%s1 + $0x40] sm:$0xf]
  %v51 = vld [vmem:[%s1 + $0x44] sm:$0xf]
  %v52 = vld [vmem:[%s1 + $0x48] sm:$0xf]
  %v53 = vld [vmem:[%s1 + $0x4c] sm:$0xf]
  %v54 = vld [vmem:[%s1 + $0x50] sm:$0xf]
  %v55 = vld [vmem:[%s1 + $0x54] sm:$0xf]
  %v56 = vld [vmem:[%s1 + $0x58] sm:$0xf]
  %v57 = vld [vmem:[%s1 + $0x5c] sm:$0xf]
  %v58 = vld [vmem:[%s1 + $0x60] sm:$0xf]
  %v59 = vld [vmem:[%s1 + $0x64] sm:$0xf]
  %v60 = vld [vmem:[%s1 + $0x68] sm:$0xf]
  %v61 = vld [vmem:[%s1 + $0x6c] sm:$0xf]
  %v62 = vld [vmem:[%s1 + $0x70] sm:$0xf]
  %v63 = vld [vmem:[%s1 + $0x74] sm:$0xf]
  %v64 = vld [vmem:[%s1 + $0x78] sm:$0xf]
  %v65 = vld [vmem:[%s1 + $0x7c] sm:$0xf]
  %v82 = vunpack.c.l.b16 %v18
  %v83 = vunpack.c.h.b16 %v18
  %v84 = vunpack.c.l.b16 %v19
  %v85 = vunpack.c.h.b16 %v19
  %v86 = vunpack.c.l.b16 %v20
  %v87 = vunpack.c.h.b16 %v20
  %v88 = vunpack.c.l.b16 %v21
  %v89 = vunpack.c.h.b16 %v21
  %v90 = vunpack.c.l.b16 %v22
  %v91 = vunpack.c.h.b16 %v22
  %v92 = vunpack.c.l.b16 %v23
  %v93 = vunpack.c.h.b16 %v23
  %v94 = vunpack.c.l.b16 %v24
  %v95 = vunpack.c.h.b16 %v24
  %v96 = vunpack.c.l.b16 %v25
  %v97 = vunpack.c.h.b16 %v25
  %v98 = vunpack.c.l.b16 %v26
  %v99 = vunpack.c.h.b16 %v26
  %v100 = vunpack.c.l.b16 %v27
  %v101 = vunpack.c.h.b16 %v27
  %v102 = vunpack.c.l.b16 %v28
  %v103 = vunpack.c.h.b16 %v28
  %v104 = vunpack.c.l.b16 %v29
  %v105 = vunpack.c.h.b16 %v29
  %v106 = vunpack.c.l.b16 %v30
  %v107 = vunpack.c.h.b16 %v30
  %v108 = vunpack.c.l.b16 %v31
  %v109 = vunpack.c.h.b16 %v31
  %v110 = vunpack.c.l.b16 %v32
  %v111 = vunpack.c.h.b16 %v32
  %v112 = vunpack.c.l.b16 %v33
  %v113 = vunpack.c.h.b16 %v33
  %v114 = vpack.c.b16 %v84, %v82
  %v115 = vpack.c.b16 %v85, %v83
  %v116 = vpack.c.b16 %v88, %v86
  %v117 = vpack.c.b16 %v89, %v87
  %v118 = vpack.c.b16 %v92, %v90
  %v119 = vpack.c.b16 %v93, %v91
  %v120 = vpack.c.b16 %v96, %v94
  %v121 = vpack.c.b16 %v97, %v95
  %v122 = vpack.c.b16 %v100, %v98
  %v123 = vpack.c.b16 %v101, %v99
  %v124 = vpack.c.b16 %v104, %v102
  %v125 = vpack.c.b16 %v105, %v103
  %v126 = vpack.c.b16 %v108, %v106
  %v127 = vpack.c.b16 %v109, %v107
  %v128 = vpack.c.b16 %v112, %v110
  %v129 = vpack.c.b16 %v113, %v111
  %v178 = vunpack.c.l.b16 %v34
  %v179 = vunpack.c.l.b16 %v35
  %v180 = vunpack.c.l.b16 %v36
  %v181 = vunpack.c.l.b16 %v37
  %v182 = vunpack.c.l.b16 %v38
  %v183 = vunpack.c.l.b16 %v39
  %v184 = vunpack.c.l.b16 %v40
  %v185 = vunpack.c.l.b16 %v41
  %v186 = vunpack.c.l.b16 %v42
  %v187 = vunpack.c.l.b16 %v43
  %v188 = vunpack.c.l.b16 %v44
  %v189 = vunpack.c.l.b16 %v45
  %v190 = vunpack.c.l.b16 %v46
  %v191 = vunpack.c.l.b16 %v47
  %v192 = vunpack.c.l.b16 %v48
  %v193 = vunpack.c.l.b16 %v49
  %v194 = vunpack.c.l.b16 %v50
  %v195 = vunpack.c.l.b16 %v51
  %v196 = vunpack.c.l.b16 %v52
  %v197 = vunpack.c.l.b16 %v53
  %v198 = vunpack.c.l.b16 %v54
  %v199 = vunpack.c.l.b16 %v55
  %v200 = vunpack.c.l.b16 %v56
  %v201 = vunpack.c.l.b16 %v57
  %v202 = vunpack.c.l.b16 %v58
  %v203 = vunpack.c.l.b16 %v59
  %v204 = vunpack.c.l.b16 %v60
  %v205 = vunpack.c.l.b16 %v61
  %v206 = vunpack.c.l.b16 %v62
  %v207 = vunpack.c.l.b16 %v63
  %v208 = vunpack.c.l.b16 %v64
  %v209 = vunpack.c.l.b16 %v65
  %v210 = vpack.c.b16 %v179, %v178
  %v211 = vpack.c.b16 %v181, %v180
  %v212 = vpack.c.b16 %v183, %v182
  %v213 = vpack.c.b16 %v185, %v184
  %v214 = vpack.c.b16 %v187, %v186
  %v215 = vpack.c.b16 %v189, %v188
  %v216 = vpack.c.b16 %v191, %v190
  %v217 = vpack.c.b16 %v193, %v192
  %v218 = vpack.c.b16 %v195, %v194
  %v219 = vpack.c.b16 %v197, %v196
  %v220 = vpack.c.b16 %v199, %v198
  %v221 = vpack.c.b16 %v201, %v200
  %v222 = vpack.c.b16 %v203, %v202
  %v223 = vpack.c.b16 %v205, %v204
  %v224 = vpack.c.b16 %v207, %v206
  %v225 = vpack.c.b16 %v209, %v208
  %242 = vmatprep.subr.bf16.mxu0 0
  %243 = vmatpush1.bf16.msra.mxu0 %v217
  %244 = vmatprep.subr.bf16.mxu0 0
  %245 = vmatpush1.bf16.msra.mxu0 %v216
  %246 = vmatprep.subr.bf16.mxu0 0
  %247 = vmatpush1.bf16.msra.mxu0 %v215
  %248 = vmatprep.subr.bf16.mxu0 0
  %249 = vmatpush1.bf16.msra.mxu0 %v214
  %250 = vmatprep.subr.bf16.mxu0 0
  %251 = vmatpush1.bf16.msra.mxu0 %v213
  %252 = vmatprep.subr.bf16.mxu0 0
  %253 = vmatpush1.bf16.msra.mxu0 %v212
  %254 = vmatprep.subr.bf16.mxu0 0
  %255 = vmatpush1.bf16.msra.mxu0 %v211
  %256 = vmatprep.subr.bf16.mxu0 0
  %257 = vmatpush1.bf16.msra.mxu0 %v210
  %258 = vmatprep.subr.bf16.mxu0 0
  %259 = vmatpush2.bf16.msra.mxu0 %v225
  %260 = vmatprep.subr.bf16.mxu0 0
  %261 = vmatpush2.bf16.msra.mxu0 %v224
  %262 = vmatprep.subr.bf16.mxu0 0
  %263 = vmatpush2.bf16.msra.mxu0 %v223
  %264 = vmatprep.subr.bf16.mxu0 0
  %265 = vmatpush2.bf16.msra.mxu0 %v222
  %266 = vmatprep.subr.bf16.mxu0 0
  %267 = vmatpush2.bf16.msra.mxu0 %v221
  %268 = vmatprep.subr.bf16.mxu0 0
  %269 = vmatpush2.bf16.msra.mxu0 %v220
  %270 = vmatprep.subr.bf16.mxu0 0
  %271 = vmatpush2.bf16.msra.mxu0 %v219
  %272 = vmatprep.subr.bf16.mxu0 0
  %273 = vmatpush2.bf16.msra.mxu0 %v218
  %274 = vmatprep.mubr.bf16.mxu0 %v115
  %275 = vmatmul.mubr.bf16.gmra.mxu0 %v114
  %v276 = vpop.f32.mrf.mxu0
  %v277 = vadd.f32 0.0, %v276
  %v278 = vpop.f32.mrf.mxu0
  %v279 = vpop.f32.mrf.mxu0
  %v280 = vadd.f32 0.0, %v279
  %v281 = vpop.f32.mrf.mxu0
  %282 = vmatprep.mubr.bf16.mxu0 %v117
  %283 = vmatmul.mubr.bf16.gmra.mxu0 %v116
  %v284 = vpop.f32.mrf.mxu0
  %v285 = vadd.f32 0.0, %v284
  %v286 = vpop.f32.mrf.mxu0
  %v287 = vpop.f32.mrf.mxu0
  %v288 = vadd.f32 0.0, %v287
  %v289 = vpop.f32.mrf.mxu0
  %290 = vmatprep.mubr.bf16.mxu0 %v119
  %291 = vmatmul.mubr.bf16.gmra.mxu0 %v118
  %v292 = vpop.f32.mrf.mxu0
  %v293 = vadd.f32 0.0, %v292
  %v294 = vpop.f32.mrf.mxu0
  %v295 = vpop.f32.mrf.mxu0
  %v296 = vadd.f32 0.0, %v295
  %v297 = vpop.f32.mrf.mxu0
  %298 = vmatprep.mubr.bf16.mxu0 %v121
  %299 = vmatmul.mubr.bf16.gmra.mxu0 %v120
  %v300 = vpop.f32.mrf.mxu0
  %v301 = vadd.f32 0.0, %v300
  %v302 = vpop.f32.mrf.mxu0
  %v303 = vpop.f32.mrf.mxu0
  %v304 = vadd.f32 0.0, %v303
  %v305 = vpop.f32.mrf.mxu0
  %306 = vmatprep.mubr.bf16.mxu0 %v123
  %307 = vmatmul.mubr.bf16.gmra.mxu0 %v122
  %v308 = vpop.f32.mrf.mxu0
  %v309 = vadd.f32 0.0, %v308
  %v310 = vpop.f32.mrf.mxu0
  %v311 = vpop.f32.mrf.mxu0
  %v312 = vadd.f32 0.0, %v311
  %v313 = vpop.f32.mrf.mxu0
  %314 = vmatprep.mubr.bf16.mxu0 %v125
  %315 = vmatmul.mubr.bf16.gmra.mxu0 %v124
  %v316 = vpop.f32.mrf.mxu0
  %v317 = vadd.f32 0.0, %v316
  %v318 = vpop.f32.mrf.mxu0
  %v319 = vpop.f32.mrf.mxu0
  %v320 = vadd.f32 0.0, %v319
  %v321 = vpop.f32.mrf.mxu0
  %322 = vmatprep.mubr.bf16.mxu0 %v127
  %323 = vmatmul.mubr.bf16.gmra.mxu0 %v126
  %v324 = vpop.f32.mrf.mxu0
  %v325 = vadd.f32 0.0, %v324
  %v326 = vpop.f32.mrf.mxu0
  %v327 = vpop.f32.mrf.mxu0
  %v328 = vadd.f32 0.0, %v327
  %v329 = vpop.f32.mrf.mxu0
  %330 = vmatprep.mubr.bf16.mxu0 %v129
  %331 = vmatmul.mubr.bf16.gmra.mxu0 %v128
  %v332 = vpop.f32.mrf.mxu0
  %v333 = vadd.f32 0.0, %v332
  %v334 = vpop.f32.mrf.mxu0
  %v335 = vpop.f32.mrf.mxu0
  %v336 = vadd.f32 0.0, %v335
  %v337 = vpop.f32.mrf.mxu0
  %338 = vdwg.mxu0
  %s339 = smul.u32 0, 128
  %s340 = scalar_lea.vmem [#allocation2], %s339
  %341 = vst [vmem:[%s340] sm:$0xff] %v277
  %342 = vst [vmem:[%s340 + $0x8] sm:$0xff] %v280
  %343 = vst [vmem:[%s340 + $0x10] sm:$0xff] %v285
  %344 = vst [vmem:[%s340 + $0x18] sm:$0xff] %v288
  %345 = vst [vmem:[%s340 + $0x20] sm:$0xff] %v293
  %346 = vst [vmem:[%s340 + $0x28] sm:$0xff] %v296
  %347 = vst [vmem:[%s340 + $0x30] sm:$0xff] %v301
  %348 = vst [vmem:[%s340 + $0x38] sm:$0xff] %v304
  %349 = vst [vmem:[%s340 + $0x40] sm:$0xff] %v309
  %350 = vst [vmem:[%s340 + $0x48] sm:$0xff] %v312
  %351 = vst [vmem:[%s340 + $0x50] sm:$0xff] %v317
  %352 = vst [vmem:[%s340 + $0x58] sm:$0xff] %v320
  %353 = vst [vmem:[%s340 + $0x60] sm:$0xff] %v325
  %354 = vst [vmem:[%s340 + $0x68] sm:$0xff] %v328
  %355 = vst [vmem:[%s340 + $0x70] sm:$0xff] %v333
  %356 = vst [vmem:[%s340 + $0x78] sm:$0xff] %v336
  %p357 = scmp.eq.s32.totalorder 0, 0
  // Predicated region
  $region18: #{discriminator_forward.6} parent=0 // pred_check
    %p358 = pneg %p357
  $region19: #{discriminator_forward.6} parent=0 // pred_check_branch
    %360 = sbr.rel (%p358) target = $region21
  $region20: #{discriminator_forward.6} parent=0 // pred_region
    %v361 = vld [vmem:[#allocation2] sm:$0xff]
    %v362 = vld [vmem:[#allocation2 + $0x8] sm:$0xff]
    %v363 = vld [vmem:[#allocation2 + $0x10] sm:$0xff]
    %v364 = vld [vmem:[#allocation2 + $0x18] sm:$0xff]
    %v365 = vld [vmem:[#allocation2 + $0x20] sm:$0xff]
    %v366 = vld [vmem:[#allocation2 + $0x28] sm:$0xff]
    %v367 = vld [vmem:[#allocation2 + $0x30] sm:$0xff]
    %v368 = vld [vmem:[#allocation2 + $0x38] sm:$0xff]
    %v369 = vld [vmem:[#allocation2 + $0x40] sm:$0xff]
    %v370 = vld [vmem:[#allocation2 + $0x48] sm:$0xff]
    %v371 = vld [vmem:[#allocation2 + $0x50] sm:$0xff]
    %v372 = vld [vmem:[#allocation2 + $0x58] sm:$0xff]
    %v373 = vld [vmem:[#allocation2 + $0x60] sm:$0xff]
    %v374 = vld [vmem:[#allocation2 + $0x68] sm:$0xff]
    %v375 = vld [vmem:[#allocation2 + $0x70] sm:$0xff]
    %v376 = vld [vmem:[#allocation2 + $0x78] sm:$0xff]
    %v377 = vadd.f32 %v361, %v362
    %v378 = vadd.f32 %v377, %v363
    %v379 = vadd.f32 %v378, %v364
    %v380 = vadd.f32 %v379, %v365
    %v381 = vadd.f32 %v380, %v366
    %v382 = vadd.f32 %v381, %v367
    %v383 = vadd.f32 %v382, %v368
    %v384 = vadd.f32 %v383, %v369
    %v385 = vadd.f32 %v384, %v370
    %v386 = vadd.f32 %v385, %v371
    %v387 = vadd.f32 %v386, %v372
    %v388 = vadd.f32 %v387, %v373
    %v389 = vadd.f32 %v388, %v374
    %v390 = vadd.f32 %v389, %v375
    %v391 = vadd.f32 %v390, %v376
    %v392 = vrot.slane %v391, 4
    %v393 = vadd.f32 %v391, %v392
    %v394 = vrot.slane %v393, 2
    %v395 = vadd.f32 %v393, %v394
    %v396 = vrot.slane %v395, 1
    %v397 = vadd.f32 %v395, %v396
    %v398 = vmul.f32 %v397, 0.0078125
    %v399 = vmul.f32 %v361, %v361
    %v400 = vmul.f32 %v362, %v362
    %v401 = vmul.f32 %v363, %v363
    %v402 = vmul.f32 %v364, %v364
    %v403 = vmul.f32 %v365, %v365
    %v404 = vmul.f32 %v366, %v366
    %v405 = vmul.f32 %v367, %v367
    %v406 = vmul.f32 %v368, %v368
    %v407 = vmul.f32 %v369, %v369
    %v408 = vmul.f32 %v370, %v370
    %v409 = vmul.f32 %v371, %v371
    %v410 = vmul.f32 %v372, %v372
    %v411 = vmul.f32 %v373, %v373
    %v412 = vmul.f32 %v374, %v374
    %v413 = vmul.f32 %v375, %v375
    %v414 = vmul.f32 %v376, %v376
    %v415 = vadd.f32 %v399, %v400
    %v416 = vadd.f32 %v415, %v401
    %v417 = vadd.f32 %v416, %v402
    %v418 = vadd.f32 %v417, %v403
    %v419 = vadd.f32 %v418, %v404
    %v420 = vadd.f32 %v419, %v405
    %v421 = vadd.f32 %v420, %v406
    %v422 = vadd.f32 %v421, %v407
    %v423 = vadd.f32 %v422, %v408
    %v424 = vadd.f32 %v423, %v409
    %v425 = vadd.f32 %v424, %v410
    %v426 = vadd.f32 %v425, %v411
    %v427 = vadd.f32 %v426, %v412
    %v428 = vadd.f32 %v427, %v413
    %v429 = vadd.f32 %v428, %v414
    %v430 = vrot.slane %v429, 4
    %v431 = vadd.f32 %v429, %v430
    %v432 = vrot.slane %v431, 2
    %v433 = vadd.f32 %v431, %v432
    %v434 = vrot.slane %v433, 1
    %v435 = vadd.f32 %v433, %v434
    %v436 = vmul.f32 %v435, 0.0078125
    %v437 = vmul.f32 %v398, %v398
    %v438 = vsub.f32 %v436, %v437
    %v439 = vmax.f32 %v438, 0.0
    %v440 = vld [vmem:[%s2] sm:$0x1]
    %v441 = vadd.f32 %v439, 1e-05
    %v442 = vrsqrt.pop %v441
    %v443 = vmul.f32 %v440, %v442
    %v444 = vld [vmem:[%s3] sm:$0x1]
    %v445 = vmul.f32 %v398, %v443
    %v446 = vsub.f32 %v444, %v445
    %v448 = vlaneseq
    %v449 = vshrl.u32 %v448, 7
    %v450 = vsub.s32 0, %v449
    %v451 = vrot.slane %v443, %v450
    %v453 = vmul.f32 %v361, %v451
    %v454 = vmul.f32 %v362, %v451
    %v455 = vmul.f32 %v363, %v451
    %v456 = vmul.f32 %v364, %v451
    %v457 = vmul.f32 %v365, %v451
    %v458 = vmul.f32 %v366, %v451
    %v459 = vmul.f32 %v367, %v451
    %v460 = vmul.f32 %v368, %v451
    %v461 = vmul.f32 %v369, %v451
    %v462 = vmul.f32 %v370, %v451
    %v463 = vmul.f32 %v371, %v451
    %v464 = vmul.f32 %v372, %v451
    %v465 = vmul.f32 %v373, %v451
    %v466 = vmul.f32 %v374, %v451
    %v467 = vmul.f32 %v375, %v451
    %v468 = vmul.f32 %v376, %v451
    %v470 = vlaneseq
    %v471 = vshrl.u32 %v470, 7
    %v472 = vsub.s32 0, %v471
    %v473 = vrot.slane %v446, %v472
    %v475 = vadd.f32 %v453, %v473
    %v476 = vadd.f32 %v454, %v473
    %v477 = vadd.f32 %v455, %v473
    %v478 = vadd.f32 %v456, %v473
    %v479 = vadd.f32 %v457, %v473
    %v480 = vadd.f32 %v458, %v473
    %v481 = vadd.f32 %v459, %v473
    %v482 = vadd.f32 %v460, %v473
    %v483 = vadd.f32 %v461, %v473
    %v484 = vadd.f32 %v462, %v473
    %v485 = vadd.f32 %v463, %v473
    %v486 = vadd.f32 %v464, %v473
    %v487 = vadd.f32 %v465, %v473
    %v488 = vadd.f32 %v466, %v473
    %v489 = vadd.f32 %v467, %v473
    %v490 = vadd.f32 %v468, %v473
    %v491 = vmul.f32 %v475, 0.2
    %v492 = vmul.f32 %v476, 0.2
    %v493 = vmul.f32 %v477, 0.2
    %v494 = vmul.f32 %v478, 0.2
    %v495 = vmul.f32 %v479, 0.2
    %v496 = vmul.f32 %v480, 0.2
    %v497 = vmul.f32 %v481, 0.2
    %v498 = vmul.f32 %v482, 0.2
    %v499 = vmul.f32 %v483, 0.2
    %v500 = vmul.f32 %v484, 0.2
    %v501 = vmul.f32 %v485, 0.2
    %v502 = vmul.f32 %v486, 0.2
    %v503 = vmul.f32 %v487, 0.2
    %v504 = vmul.f32 %v488, 0.2
    %v505 = vmul.f32 %v489, 0.2
    %v506 = vmul.f32 %v490, 0.2
    %v507 = vmax.f32 %v475, %v491
    %v508 = vmax.f32 %v476, %v492
    %v509 = vmax.f32 %v477, %v493
    %v510 = vmax.f32 %v478, %v494
    %v511 = vmax.f32 %v479, %v495
    %v512 = vmax.f32 %v480, %v496
    %v513 = vmax.f32 %v481, %v497
    %v514 = vmax.f32 %v482, %v498
    %v515 = vmax.f32 %v483, %v499
    %v516 = vmax.f32 %v484, %v500
    %v517 = vmax.f32 %v485, %v501
    %v518 = vmax.f32 %v486, %v502
    %v519 = vmax.f32 %v487, %v503
    %v520 = vmax.f32 %v488, %v504
    %v521 = vmax.f32 %v489, %v505
    %v522 = vmax.f32 %v490, %v506
    %v523 = vpack.c.bf16 %v508, %v507
    %v524 = vpack.c.bf16 %v510, %v509
    %v525 = vpack.c.bf16 %v512, %v511
    %v526 = vpack.c.bf16 %v514, %v513
    %v527 = vpack.c.bf16 %v516, %v515
    %v528 = vpack.c.bf16 %v518, %v517
    %v529 = vpack.c.bf16 %v520, %v519
    %v530 = vpack.c.bf16 %v522, %v521
    %v539 = vunpack.c.l.b16 %v523
    %v540 = vunpack.c.h.b16 %v523
    %v541 = vunpack.c.l.b16 %v524
    %v542 = vunpack.c.h.b16 %v524
    %v543 = vunpack.c.l.b16 %v525
    %v544 = vunpack.c.h.b16 %v525
    %v545 = vunpack.c.l.b16 %v526
    %v546 = vunpack.c.h.b16 %v526
    %v547 = vunpack.c.l.b16 %v527
    %v548 = vunpack.c.h.b16 %v527
    %v549 = vunpack.c.l.b16 %v528
    %v550 = vunpack.c.h.b16 %v528
    %v551 = vunpack.c.l.b16 %v529
    %v552 = vunpack.c.h.b16 %v529
    %v553 = vunpack.c.l.b16 %v530
    %v554 = vunpack.c.h.b16 %v530
    %v555 = vpack.c.b16 %v539, %v539
    %v556 = vpack.c.b16 %v540, %v540
    %v557 = vpack.c.b16 %v541, %v541
    %v558 = vpack.c.b16 %v542, %v542
    %v559 = vpack.c.b16 %v543, %v543
    %v560 = vpack.c.b16 %v544, %v544
    %v561 = vpack.c.b16 %v545, %v545
    %v562 = vpack.c.b16 %v546, %v546
    %v563 = vpack.c.b16 %v547, %v547
    %v564 = vpack.c.b16 %v548, %v548
    %v565 = vpack.c.b16 %v549, %v549
    %v566 = vpack.c.b16 %v550, %v550
    %v567 = vpack.c.b16 %v551, %v551
    %v568 = vpack.c.b16 %v552, %v552
    %v569 = vpack.c.b16 %v553, %v553
    %v570 = vpack.c.b16 %v554, %v554
    %587 = vst [vmem:[%s4] sm:$0xf] %v555
    %588 = vst [vmem:[%s4 + $0x4] sm:$0xf] %v556
    %589 = vst [vmem:[%s4 + $0x8] sm:$0xf] %v557
    %590 = vst [vmem:[%s4 + $0xc] sm:$0xf] %v558
    %591 = vst [vmem:[%s4 + $0x10] sm:$0xf] %v559
    %592 = vst [vmem:[%s4 + $0x14] sm:$0xf] %v560
    %593 = vst [vmem:[%s4 + $0x18] sm:$0xf] %v561
    %594 = vst [vmem:[%s4 + $0x1c] sm:$0xf] %v562
    %595 = vst [vmem:[%s4 + $0x20] sm:$0xf] %v563
    %596 = vst [vmem:[%s4 + $0x24] sm:$0xf] %v564
    %597 = vst [vmem:[%s4 + $0x28] sm:$0xf] %v565
    %598 = vst [vmem:[%s4 + $0x2c] sm:$0xf] %v566
    %599 = vst [vmem:[%s4 + $0x30] sm:$0xf] %v567
    %600 = vst [vmem:[%s4 + $0x34] sm:$0xf] %v568
    %601 = vst [vmem:[%s4 + $0x38] sm:$0xf] %v569
    %602 = vst [vmem:[%s4 + $0x3c] sm:$0xf] %v570
  $region21: #{discriminator_forward.6} parent=0 // pred_fallthru
    _
  // Predicated region
  $region22: #{discriminator_forward.6} parent=0 // pred_check
    _
  $region23: #{discriminator_forward.6} parent=0 // pred_check_branch
    %604 = sbr.rel (0) target = $region25
  $region24: #{discriminator_forward.6} parent=0 // pred_region
    _
  $region25: #{discriminator_forward.6} parent=0 // pred_fallthru
    _
  // Predicated region
  $region26: #{discriminator_forward.6} parent=0 // pred_check
    _
  $region27: #{discriminator_forward.6} parent=0 // pred_check_branch
    %606 = sbr.rel (0) target = $region29
  $region28: #{discriminator_forward.6} parent=0 // pred_region
    _
  $region29: #{discriminator_forward.6} parent=0 // pred_fallthru
    _

// kernel: discriminator_forward.7
$region0: #{discriminator_forward.7}
  #allocation0 [shape = 'u32[]', space=smem, size = 0x4, offset = 0x4, fixed_abs, tag = 'smem constant byte address 0x4 - core index']
  #allocation1 [shape = 'u32[144,128]{1,0:T(1,128)}', space=vmem, size = 0x12000, scoped, tag = 'internal scratch']
  #allocation2 [shape = 'f32[32,128]{1,0:T(8,128)}', space=vmem, size = 0x4000, scoped, tag = 'scratch operand']
  %s0 = inlined_call_operand.vmem [shape: bf16[32,512], index: 0, kind: input, shape index: {}]
  %s1 = inlined_call_operand.vmem [shape: bf16[512,128], index: 1, kind: input, shape index: {}]
  %s2 = inlined_call_operand.vmem [shape: f32[1,128], index: 2, kind: input, shape index: {}]
  %s3 = inlined_call_operand.vmem [shape: f32[1,128], index: 3, kind: input, shape index: {}]
  %s4 = inlined_call_operand.vmem [shape: bf16[32,128], index: 4, kind: output, shape index: {}]
  %s5 = sld [smem:[#allocation0]]
  $region30: #{discriminator_forward.7} parent=0
    _
  %s7 = ssub.s32 1, %s5
  %s8 = scalar_select 0, %s7, %s5
  // Predicated region
  $region2: #{discriminator_forward.7} parent=0 // pred_check
    _
  $region3: #{discriminator_forward.7} parent=0 // pred_check_branch
    %10 = sbr.rel (0) target = $region5
  $region4: #{discriminator_forward.7} parent=0 // pred_region
    _
  $region5: #{discriminator_forward.7} parent=0 // pred_fallthru
    _
  // Predicated region
  $region6: #{discriminator_forward.7} parent=0 // pred_check
    _
  $region7: #{discriminator_forward.7} parent=0 // pred_check_branch
    %12 = sbr.rel (0) target = $region9
  $region8: #{discriminator_forward.7} parent=0 // pred_region
    _
  $region9: #{discriminator_forward.7} parent=0 // pred_fallthru
    _
  // Predicated region
  $region10: #{discriminator_forward.7} parent=0 // pred_check
    _
  $region11: #{discriminator_forward.7} parent=0 // pred_check_branch
    %14 = sbr.rel (0) target = $region13
  $region12: #{discriminator_forward.7} parent=0 // pred_region
    _
  $region13: #{discriminator_forward.7} parent=0 // pred_fallthru
    _
  // Predicated region
  $region14: #{discriminator_forward.7} parent=0 // pred_check
    _
  $region15: #{discriminator_forward.7} parent=0 // pred_check_branch
    %16 = sbr.rel (0) target = $region17
  $region16: #{discriminator_forward.7} parent=0 // pred_region
    _
  $region17: #{discriminator_forward.7} parent=0 // pred_fallthru
    _
  %v18 = vld [vmem:[%s0] sm:$0xff]
  %v19 = vld [vmem:[%s0 + $0x8] sm:$0xff]
  %v20 = vld [vmem:[%s0 + $0x10] sm:$0xff]
  %v21 = vld [vmem:[%s0 + $0x18] sm:$0xff]
  %v22 = vld [vmem:[%s0 + $0x20] sm:$0xff]
  %v23 = vld [vmem:[%s0 + $0x28] sm:$0xff]
  %v24 = vld [vmem:[%s0 + $0x30] sm:$0xff]
  %v25 = vld [vmem:[%s0 + $0x38] sm:$0xff]
  %v26 = vld [vmem:[%s1] sm:$0xf]
  %v27 = vld [vmem:[%s1 + $0x4] sm:$0xf]
  %v28 = vld [vmem:[%s1 + $0x8] sm:$0xf]
  %v29 = vld [vmem:[%s1 + $0xc] sm:$0xf]
  %v30 = vld [vmem:[%s1 + $0x10] sm:$0xf]
  %v31 = vld [vmem:[%s1 + $0x14] sm:$0xf]
  %v32 = vld [vmem:[%s1 + $0x18] sm:$0xf]
  %v33 = vld [vmem:[%s1 + $0x1c] sm:$0xf]
  %v34 = vld [vmem:[%s1 + $0x20] sm:$0xf]
  %v35 = vld [vmem:[%s1 + $0x24] sm:$0xf]
  %v36 = vld [vmem:[%s1 + $0x28] sm:$0xf]
  %v37 = vld [vmem:[%s1 + $0x2c] sm:$0xf]
  %v38 = vld [vmem:[%s1 + $0x30] sm:$0xf]
  %v39 = vld [vmem:[%s1 + $0x34] sm:$0xf]
  %v40 = vld [vmem:[%s1 + $0x38] sm:$0xf]
  %v41 = vld [vmem:[%s1 + $0x3c] sm:$0xf]
  %v42 = vld [vmem:[%s1 + $0x40] sm:$0xf]
  %v43 = vld [vmem:[%s1 + $0x44] sm:$0xf]
  %v44 = vld [vmem:[%s1 + $0x48] sm:$0xf]
  %v45 = vld [vmem:[%s1 + $0x4c] sm:$0xf]
  %v46 = vld [vmem:[%s1 + $0x50] sm:$0xf]
  %v47 = vld [vmem:[%s1 + $0x54] sm:$0xf]
  %v48 = vld [vmem:[%s1 + $0x58] sm:$0xf]
  %v49 = vld [vmem:[%s1 + $0x5c] sm:$0xf]
  %v50 = vld [vmem:[%s1 + $0x60] sm:$0xf]
  %v51 = vld [vmem:[%s1 + $0x64] sm:$0xf]
  %v52 = vld [vmem:[%s1 + $0x68] sm:$0xf]
  %v53 = vld [vmem:[%s1 + $0x6c] sm:$0xf]
  %v54 = vld [vmem:[%s1 + $0x70] sm:$0xf]
  %v55 = vld [vmem:[%s1 + $0x74] sm:$0xf]
  %v56 = vld [vmem:[%s1 + $0x78] sm:$0xf]
  %v57 = vld [vmem:[%s1 + $0x7c] sm:$0xf]
  %v58 = vld [vmem:[%s1 + $0x80] sm:$0xf]
  %v59 = vld [vmem:[%s1 + $0x84] sm:$0xf]
  %v60 = vld [vmem:[%s1 + $0x88] sm:$0xf]
  %v61 = vld [vmem:[%s1 + $0x8c] sm:$0xf]
  %v62 = vld [vmem:[%s1 + $0x90] sm:$0xf]
  %v63 = vld [vmem:[%s1 + $0x94] sm:$0xf]
  %v64 = vld [vmem:[%s1 + $0x98] sm:$0xf]
  %v65 = vld [vmem:[%s1 + $0x9c] sm:$0xf]
  %v66 = vld [vmem:[%s1 + $0xa0] sm:$0xf]
  %v67 = vld [vmem:[%s1 + $0xa4] sm:$0xf]
  %v68 = vld [vmem:[%s1 + $0xa8] sm:$0xf]
  %v69 = vld [vmem:[%s1 + $0xac] sm:$0xf]
  %v70 = vld [vmem:[%s1 + $0xb0] sm:$0xf]
  %v71 = vld [vmem:[%s1 + $0xb4] sm:$0xf]
  %v72 = vld [vmem:[%s1 + $0xb8] sm:$0xf]
  %v73 = vld [vmem:[%s1 + $0xbc] sm:$0xf]
  %v74 = vld [vmem:[%s1 + $0xc0] sm:$0xf]
  %v75 = vld [vmem:[%s1 + $0xc4] sm:$0xf]
  %v76 = vld [vmem:[%s1 + $0xc8] sm:$0xf]
  %v77 = vld [vmem:[%s1 + $0xcc] sm:$0xf]
  %v78 = vld [vmem:[%s1 + $0xd0] sm:$0xf]
  %v79 = vld [vmem:[%s1 + $0xd4] sm:$0xf]
  %v80 = vld [vmem:[%s1 + $0xd8] sm:$0xf]
  %v81 = vld [vmem:[%s1 + $0xdc] sm:$0xf]
  %v82 = vld [vmem:[%s1 + $0xe0] sm:$0xf]
  %v83 = vld [vmem:[%s1 + $0xe4] sm:$0xf]
  %v84 = vld [vmem:[%s1 + $0xe8] sm:$0xf]
  %v85 = vld [vmem:[%s1 + $0xec] sm:$0xf]
  %v86 = vld [vmem:[%s1 + $0xf0] sm:$0xf]
  %v87 = vld [vmem:[%s1 + $0xf4] sm:$0xf]
  %v88 = vld [vmem:[%s1 + $0xf8] sm:$0xf]
  %v89 = vld [vmem:[%s1 + $0xfc] sm:$0xf]
  %v98 = vunpack.c.l.b16 %v18
  %v99 = vunpack.c.h.b16 %v18
  %v100 = vunpack.c.l.b16 %v19
  %v101 = vunpack.c.h.b16 %v19
  %v102 = vunpack.c.l.b16 %v20
  %v103 = vunpack.c.h.b16 %v20
  %v104 = vunpack.c.l.b16 %v21
  %v105 = vunpack.c.h.b16 %v21
  %v106 = vunpack.c.l.b16 %v22
  %v107 = vunpack.c.h.b16 %v22
  %v108 = vunpack.c.l.b16 %v23
  %v109 = vunpack.c.h.b16 %v23
  %v110 = vunpack.c.l.b16 %v24
  %v111 = vunpack.c.h.b16 %v24
  %v112 = vunpack.c.l.b16 %v25
  %v113 = vunpack.c.h.b16 %v25
  %v114 = vpack.c.b16 %v102, %v98
  %v115 = vpack.c.b16 %v103, %v99
  %v116 = vpack.c.b16 %v104, %v100
  %v117 = vpack.c.b16 %v105, %v101
  %v118 = vpack.c.b16 %v110, %v106
  %v119 = vpack.c.b16 %v111, %v107
  %v120 = vpack.c.b16 %v112, %v108
  %v121 = vpack.c.b16 %v113, %v109
  %v194 = vunpack.c.l.b16 %v26
  %v195 = vunpack.c.l.b16 %v27
  %v196 = vunpack.c.l.b16 %v28
  %v197 = vunpack.c.l.b16 %v29
  %v198 = vunpack.c.l.b16 %v30
  %v199 = vunpack.c.l.b16 %v31
  %v200 = vunpack.c.l.b16 %v32
  %v201 = vunpack.c.l.b16 %v33
  %v202 = vunpack.c.l.b16 %v34
  %v203 = vunpack.c.l.b16 %v35
  %v204 = vunpack.c.l.b16 %v36
  %v205 = vunpack.c.l.b16 %v37
  %v206 = vunpack.c.l.b16 %v38
  %v207 = vunpack.c.l.b16 %v39
  %v208 = vunpack.c.l.b16 %v40
  %v209 = vunpack.c.l.b16 %v41
  %v210 = vunpack.c.l.b16 %v42
  %v211 = vunpack.c.l.b16 %v43
  %v212 = vunpack.c.l.b16 %v44
  %v213 = vunpack.c.l.b16 %v45
  %v214 = vunpack.c.l.b16 %v46
  %v215 = vunpack.c.l.b16 %v47
  %v216 = vunpack.c.l.b16 %v48
  %v217 = vunpack.c.l.b16 %v49
  %v218 = vunpack.c.l.b16 %v50
  %v219 = vunpack.c.l.b16 %v51
  %v220 = vunpack.c.l.b16 %v52
  %v221 = vunpack.c.l.b16 %v53
  %v222 = vunpack.c.l.b16 %v54
  %v223 = vunpack.c.l.b16 %v55
  %v224 = vunpack.c.l.b16 %v56
  %v225 = vunpack.c.l.b16 %v57
  %v226 = vunpack.c.l.b16 %v58
  %v227 = vunpack.c.l.b16 %v59
  %v228 = vunpack.c.l.b16 %v60
  %v229 = vunpack.c.l.b16 %v61
  %v230 = vunpack.c.l.b16 %v62
  %v231 = vunpack.c.l.b16 %v63
  %v232 = vunpack.c.l.b16 %v64
  %v233 = vunpack.c.l.b16 %v65
  %v234 = vunpack.c.l.b16 %v66
  %v235 = vunpack.c.l.b16 %v67
  %v236 = vunpack.c.l.b16 %v68
  %v237 = vunpack.c.l.b16 %v69
  %v238 = vunpack.c.l.b16 %v70
  %v239 = vunpack.c.l.b16 %v71
  %v240 = vunpack.c.l.b16 %v72
  %v241 = vunpack.c.l.b16 %v73
  %v242 = vunpack.c.l.b16 %v74
  %v243 = vunpack.c.l.b16 %v75
  %v244 = vunpack.c.l.b16 %v76
  %v245 = vunpack.c.l.b16 %v77
  %v246 = vunpack.c.l.b16 %v78
  %v247 = vunpack.c.l.b16 %v79
  %v248 = vunpack.c.l.b16 %v80
  %v249 = vunpack.c.l.b16 %v81
  %v250 = vunpack.c.l.b16 %v82
  %v251 = vunpack.c.l.b16 %v83
  %v252 = vunpack.c.l.b16 %v84
  %v253 = vunpack.c.l.b16 %v85
  %v254 = vunpack.c.l.b16 %v86
  %v255 = vunpack.c.l.b16 %v87
  %v256 = vunpack.c.l.b16 %v88
  %v257 = vunpack.c.l.b16 %v89
  %v258 = vpack.c.b16 %v195, %v194
  %v259 = vpack.c.b16 %v197, %v196
  %v260 = vpack.c.b16 %v199, %v198
  %v261 = vpack.c.b16 %v201, %v200
  %v262 = vpack.c.b16 %v203, %v202
  %v263 = vpack.c.b16 %v205, %v204
  %v264 = vpack.c.b16 %v207, %v206
  %v265 = vpack.c.b16 %v209, %v208
  %v266 = vpack.c.b16 %v211, %v210
  %v267 = vpack.c.b16 %v213, %v212
  %v268 = vpack.c.b16 %v215, %v214
  %v269 = vpack.c.b16 %v217, %v216
  %v270 = vpack.c.b16 %v219, %v218
  %v271 = vpack.c.b16 %v221, %v220
  %v272 = vpack.c.b16 %v223, %v222
  %v273 = vpack.c.b16 %v225, %v224
  %v274 = vpack.c.b16 %v227, %v226
  %v275 = vpack.c.b16 %v229, %v228
  %v276 = vpack.c.b16 %v231, %v230
  %v277 = vpack.c.b16 %v233, %v232
  %v278 = vpack.c.b16 %v235, %v234
  %v279 = vpack.c.b16 %v237, %v236
  %v280 = vpack.c.b16 %v239, %v238
  %v281 = vpack.c.b16 %v241, %v240
  %v282 = vpack.c.b16 %v243, %v242
  %v283 = vpack.c.b16 %v245, %v244
  %v284 = vpack.c.b16 %v247, %v246
  %v285 = vpack.c.b16 %v249, %v248
  %v286 = vpack.c.b16 %v251, %v250
  %v287 = vpack.c.b16 %v253, %v252
  %v288 = vpack.c.b16 %v255, %v254
  %v289 = vpack.c.b16 %v257, %v256
  %322 = vmatprep.subr.bf16.mxu0 0
  %323 = vmatpush1.bf16.msra.mxu0 %v265
  %324 = vmatprep.subr.bf16.mxu0 0
  %325 = vmatpush1.bf16.msra.mxu0 %v264
  %326 = vmatprep.subr.bf16.mxu0 0
  %327 = vmatpush1.bf16.msra.mxu0 %v263
  %328 = vmatprep.subr.bf16.mxu0 0
  %329 = vmatpush1.bf16.msra.mxu0 %v262
  %330 = vmatprep.subr.bf16.mxu0 0
  %331 = vmatpush1.bf16.msra.mxu0 %v261
  %332 = vmatprep.subr.bf16.mxu0 0
  %333 = vmatpush1.bf16.msra.mxu0 %v260
  %334 = vmatprep.subr.bf16.mxu0 0
  %335 = vmatpush1.bf16.msra.mxu0 %v259
  %336 = vmatprep.subr.bf16.mxu0 0
  %337 = vmatpush1.bf16.msra.mxu0 %v258
  %338 = vmatprep.subr.bf16.mxu0 0
  %339 = vmatpush2.bf16.msra.mxu0 %v273
  %340 = vmatprep.subr.bf16.mxu0 0
  %341 = vmatpush2.bf16.msra.mxu0 %v272
  %342 = vmatprep.subr.bf16.mxu0 0
  %343 = vmatpush2.bf16.msra.mxu0 %v271
  %344 = vmatprep.subr.bf16.mxu0 0
  %345 = vmatpush2.bf16.msra.mxu0 %v270
  %346 = vmatprep.subr.bf16.mxu0 0
  %347 = vmatpush2.bf16.msra.mxu0 %v269
  %348 = vmatprep.subr.bf16.mxu0 0
  %349 = vmatpush2.bf16.msra.mxu0 %v268
  %350 = vmatprep.subr.bf16.mxu0 0
  %351 = vmatpush2.bf16.msra.mxu0 %v267
  %352 = vmatprep.subr.bf16.mxu0 0
  %353 = vmatpush2.bf16.msra.mxu0 %v266
  %354 = vmatprep.mubr.bf16.mxu0 %v115
  %355 = vmatmul.mubr.bf16.gmra.mxu0 %v114
  %v356 = vpop.f32.mrf.mxu0
  %v357 = vadd.f32 0.0, %v356
  %v358 = vpop.f32.mrf.mxu0
  %v359 = vpop.f32.mrf.mxu0
  %v360 = vadd.f32 0.0, %v359
  %v361 = vpop.f32.mrf.mxu0
  %362 = vmatprep.mubr.bf16.mxu0 %v119
  %363 = vmatmul.mubr.bf16.gmra.mxu0 %v118
  %v364 = vpop.f32.mrf.mxu0
  %v365 = vadd.f32 0.0, %v364
  %v366 = vpop.f32.mrf.mxu0
  %v367 = vpop.f32.mrf.mxu0
  %v368 = vadd.f32 0.0, %v367
  %v369 = vpop.f32.mrf.mxu0
  %370 = vdwg.mxu0
  %371 = vmatprep.subr.bf16.mxu0 0
  %372 = vmatpush1.bf16.msra.mxu0 %v281
  %373 = vmatprep.subr.bf16.mxu0 0
  %374 = vmatpush1.bf16.msra.mxu0 %v280
  %375 = vmatprep.subr.bf16.mxu0 0
  %376 = vmatpush1.bf16.msra.mxu0 %v279
  %377 = vmatprep.subr.bf16.mxu0 0
  %378 = vmatpush1.bf16.msra.mxu0 %v278
  %379 = vmatprep.subr.bf16.mxu0 0
  %380 = vmatpush1.bf16.msra.mxu0 %v277
  %381 = vmatprep.subr.bf16.mxu0 0
  %382 = vmatpush1.bf16.msra.mxu0 %v276
  %383 = vmatprep.subr.bf16.mxu0 0
  %384 = vmatpush1.bf16.msra.mxu0 %v275
  %385 = vmatprep.subr.bf16.mxu0 0
  %386 = vmatpush1.bf16.msra.mxu0 %v274
  %387 = vmatprep.subr.bf16.mxu0 0
  %388 = vmatpush2.bf16.msra.mxu0 %v289
  %389 = vmatprep.subr.bf16.mxu0 0
  %390 = vmatpush2.bf16.msra.mxu0 %v288
  %391 = vmatprep.subr.bf16.mxu0 0
  %392 = vmatpush2.bf16.msra.mxu0 %v287
  %393 = vmatprep.subr.bf16.mxu0 0
  %394 = vmatpush2.bf16.msra.mxu0 %v286
  %395 = vmatprep.subr.bf16.mxu0 0
  %396 = vmatpush2.bf16.msra.mxu0 %v285
  %397 = vmatprep.subr.bf16.mxu0 0
  %398 = vmatpush2.bf16.msra.mxu0 %v284
  %399 = vmatprep.subr.bf16.mxu0 0
  %400 = vmatpush2.bf16.msra.mxu0 %v283
  %401 = vmatprep.subr.bf16.mxu0 0
  %402 = vmatpush2.bf16.msra.mxu0 %v282
  %403 = vmatprep.mubr.bf16.mxu0 %v117
  %404 = vmatmul.mubr.bf16.gmra.mxu0 %v116
  %v405 = vpop.f32.mrf.mxu0
  %v406 = vadd.f32 %v357, %v405
  %v407 = vpop.f32.mrf.mxu0
  %v408 = vpop.f32.mrf.mxu0
  %v409 = vadd.f32 %v360, %v408
  %v410 = vpop.f32.mrf.mxu0
  %411 = vmatprep.mubr.bf16.mxu0 %v121
  %412 = vmatmul.mubr.bf16.gmra.mxu0 %v120
  %v413 = vpop.f32.mrf.mxu0
  %v414 = vadd.f32 %v365, %v413
  %v415 = vpop.f32.mrf.mxu0
  %v416 = vpop.f32.mrf.mxu0
  %v417 = vadd.f32 %v368, %v416
  %v418 = vpop.f32.mrf.mxu0
  %419 = vdwg.mxu0
  %s420 = smul.u32 0, 32
  %s421 = scalar_lea.vmem [#allocation2], %s420
  %422 = vst [vmem:[%s421] sm:$0xff] %v406
  %423 = vst [vmem:[%s421 + $0x8] sm:$0xff] %v409
  %424 = vst [vmem:[%s421 + $0x10] sm:$0xff] %v414
  %425 = vst [vmem:[%s421 + $0x18] sm:$0xff] %v417
  %p426 = scmp.eq.s32.totalorder 0, 0
  // Predicated region
  $region18: #{discriminator_forward.7} parent=0 // pred_check
    %p427 = pneg %p426
  $region19: #{discriminator_forward.7} parent=0 // pred_check_branch
    %429 = sbr.rel (%p427) target = $region21
  $region20: #{discriminator_forward.7} parent=0 // pred_region
    %v430 = vld [vmem:[#allocation2] sm:$0xff]
    %v431 = vld [vmem:[#allocation2 + $0x8] sm:$0xff]
    %v432 = vld [vmem:[#allocation2 + $0x10] sm:$0xff]
    %v433 = vld [vmem:[#allocation2 + $0x18] sm:$0xff]
    %v434 = vadd.f32 %v430, %v431
    %v435 = vadd.f32 %v434, %v432
    %v436 = vadd.f32 %v435, %v433
    %v437 = vrot.slane %v436, 4
    %v438 = vadd.f32 %v436, %v437
    %v439 = vrot.slane %v438, 2
    %v440 = vadd.f32 %v438, %v439
    %v441 = vrot.slane %v440, 1
    %v442 = vadd.f32 %v440, %v441
    %v443 = vmul.f32 %v442, 0.03125
    %v444 = vmul.f32 %v430, %v430
    %v445 = vmul.f32 %v431, %v431
    %v446 = vmul.f32 %v432, %v432
    %v447 = vmul.f32 %v433, %v433
    %v448 = vadd.f32 %v444, %v445
    %v449 = vadd.f32 %v448, %v446
    %v450 = vadd.f32 %v449, %v447
    %v451 = vrot.slane %v450, 4
    %v452 = vadd.f32 %v450, %v451
    %v453 = vrot.slane %v452, 2
    %v454 = vadd.f32 %v452, %v453
    %v455 = vrot.slane %v454, 1
    %v456 = vadd.f32 %v454, %v455
    %v457 = vmul.f32 %v456, 0.03125
    %v458 = vmul.f32 %v443, %v443
    %v459 = vsub.f32 %v457, %v458
    %v460 = vmax.f32 %v459, 0.0
    %v461 = vld [vmem:[%s2] sm:$0x1]
    %v462 = vadd.f32 %v460, 1e-05
    %v463 = vrsqrt.pop %v462
    %v464 = vmul.f32 %v461, %v463
    %v465 = vld [vmem:[%s3] sm:$0x1]
    %v466 = vmul.f32 %v443, %v464
    %v467 = vsub.f32 %v465, %v466
    %v469 = vlaneseq
    %v470 = vshrl.u32 %v469, 7
    %v471 = vsub.s32 0, %v470
    %v472 = vrot.slane %v464, %v471
    %v474 = vmul.f32 %v430, %v472
    %v475 = vmul.f32 %v431, %v472
    %v476 = vmul.f32 %v432, %v472
    %v477 = vmul.f32 %v433, %v472
    %v479 = vlaneseq
    %v480 = vshrl.u32 %v479, 7
    %v481 = vsub.s32 0, %v480
    %v482 = vrot.slane %v467, %v481
    %v484 = vadd.f32 %v474, %v482
    %v485 = vadd.f32 %v475, %v482
    %v486 = vadd.f32 %v476, %v482
    %v487 = vadd.f32 %v477, %v482
    %v488 = vmul.f32 %v484, 0.2
    %v489 = vmul.f32 %v485, 0.2
    %v490 = vmul.f32 %v486, 0.2
    %v491 = vmul.f32 %v487, 0.2
    %v492 = vmax.f32 %v484, %v488
    %v493 = vmax.f32 %v485, %v489
    %v494 = vmax.f32 %v486, %v490
    %v495 = vmax.f32 %v487, %v491
    %v496 = vpack.c.bf16 %v493, %v492
    %v497 = vpack.c.bf16 %v495, %v494
    %v500 = vunpack.c.l.b16 %v496
    %v501 = vunpack.c.h.b16 %v496
    %v502 = vunpack.c.l.b16 %v497
    %v503 = vunpack.c.h.b16 %v497
    %v504 = vpack.c.b16 %v500, %v500
    %v505 = vpack.c.b16 %v501, %v501
    %v506 = vpack.c.b16 %v502, %v502
    %v507 = vpack.c.b16 %v503, %v503
    %512 = vst [vmem:[%s4] sm:$0xf] %v504
    %513 = vst [vmem:[%s4 + $0x4] sm:$0xf] %v505
    %514 = vst [vmem:[%s4 + $0x8] sm:$0xf] %v506
    %515 = vst [vmem:[%s4 + $0xc] sm:$0xf] %v507
  $region21: #{discriminator_forward.7} parent=0 // pred_fallthru
    _
  // Predicated region
  $region22: #{discriminator_forward.7} parent=0 // pred_check
    _
  $region23: #{discriminator_forward.7} parent=0 // pred_check_branch
    %517 = sbr.rel (0) target = $region25
  $region24: #{discriminator_forward.7} parent=0 // pred_region
    _
  $region25: #{discriminator_forward.7} parent=0 // pred_fallthru
    _
  // Predicated region
  $region26: #{discriminator_forward.7} parent=0 // pred_check
    _
  $region27: #{discriminator_forward.7} parent=0 // pred_check_branch
    %519 = sbr.rel (0) target = $region29
  $region28: #{discriminator_forward.7} parent=0 // pred_region
    _
  $region29: #{discriminator_forward.7} parent=0 // pred_fallthru
    _

// kernel: discriminator_forward.8
$region0: #{discriminator_forward.8}
  #allocation0 [shape = 'u32[]', space=smem, size = 0x4, offset = 0x4, fixed_abs, tag = 'smem constant byte address 0x4 - core index']
  #allocation1 [shape = 'u32[144,128]{1,0:T(1,128)}', space=vmem, size = 0x12000, scoped, tag = 'internal scratch']
  #allocation2 [shape = 'f32[24,128]{1,0:T(8,128)}', space=vmem, size = 0x3000, scoped, tag = 'scratch operand']
  %s0 = inlined_call_operand.vmem [shape: bf16[24,1024], index: 0, kind: input, shape index: {}]
  %s1 = inlined_call_operand.vmem [shape: bf16[1024,128], index: 1, kind: input, shape index: {}]
  %s2 = inlined_call_operand.vmem [shape: f32[1,128], index: 2, kind: input, shape index: {}]
  %s3 = inlined_call_operand.vmem [shape: f32[1,128], index: 3, kind: input, shape index: {}]
  %s4 = inlined_call_operand.vmem [shape: bf16[24,128], index: 4, kind: output, shape index: {}]
  %s5 = sld [smem:[#allocation0]]
  $region30: #{discriminator_forward.8} parent=0
    _
  %s7 = ssub.s32 1, %s5
  %s8 = scalar_select 0, %s7, %s5
  // Predicated region
  $region2: #{discriminator_forward.8} parent=0 // pred_check
    _
  $region3: #{discriminator_forward.8} parent=0 // pred_check_branch
    %10 = sbr.rel (0) target = $region5
  $region4: #{discriminator_forward.8} parent=0 // pred_region
    _
  $region5: #{discriminator_forward.8} parent=0 // pred_fallthru
    _
  // Predicated region
  $region6: #{discriminator_forward.8} parent=0 // pred_check
    _
  $region7: #{discriminator_forward.8} parent=0 // pred_check_branch
    %12 = sbr.rel (0) target = $region9
  $region8: #{discriminator_forward.8} parent=0 // pred_region
    _
  $region9: #{discriminator_forward.8} parent=0 // pred_fallthru
    _
  // Predicated region
  $region10: #{discriminator_forward.8} parent=0 // pred_check
    _
  $region11: #{discriminator_forward.8} parent=0 // pred_check_branch
    %14 = sbr.rel (0) target = $region13
  $region12: #{discriminator_forward.8} parent=0 // pred_region
    _
  $region13: #{discriminator_forward.8} parent=0 // pred_fallthru
    _
  // Predicated region
  $region14: #{discriminator_forward.8} parent=0 // pred_check
    _
  $region15: #{discriminator_forward.8} parent=0 // pred_check_branch
    %16 = sbr.rel (0) target = $region17
  $region16: #{discriminator_forward.8} parent=0 // pred_region
    _
  $region17: #{discriminator_forward.8} parent=0 // pred_fallthru
    _
  %v18 = vld [vmem:[%s0] sm:$0xff]
  %v19 = vld [vmem:[%s0 + $0x8] sm:$0xff]
  %v20 = vld [vmem:[%s0 + $0x10] sm:$0xff]
  %v21 = vld [vmem:[%s0 + $0x18] sm:$0xff]
  %v22 = vld [vmem:[%s0 + $0x20] sm:$0xff]
  %v23 = vld [vmem:[%s0 + $0x28] sm:$0xff]
  %v24 = vld [vmem:[%s0 + $0x30] sm:$0xff]
  %v25 = vld [vmem:[%s0 + $0x38] sm:$0xff]
  %v26 = vld [vmem:[%s0 + $0x40] sm:$0xff]
  %v27 = vld [vmem:[%s0 + $0x48] sm:$0xff]
  %v28 = vld [vmem:[%s0 + $0x50] sm:$0xff]
  %v29 = vld [vmem:[%s0 + $0x58] sm:$0xff]
  %v30 = vld [vmem:[%s1] sm:$0xf]
  %v31 = vld [vmem:[%s1 + $0x4] sm:$0xf]
  %v32 = vld [vmem:[%s1 + $0x8] sm:$0xf]
  %v33 = vld [vmem:[%s1 + $0xc] sm:$0xf]
  %v34 = vld [vmem:[%s1 + $0x10] sm:$0xf]
  %v35 = vld [vmem:[%s1 + $0x14] sm:$0xf]
  %v36 = vld [vmem:[%s1 + $0x18] sm:$0xf]
  %v37 = vld [vmem:[%s1 + $0x1c] sm:$0xf]
  %v38 = vld [vmem:[%s1 + $0x20] sm:$0xf]
  %v39 = vld [vmem:[%s1 + $0x24] sm:$0xf]
  %v40 = vld [vmem:[%s1 + $0x28] sm:$0xf]
  %v41 = vld [vmem:[%s1 + $0x2c] sm:$0xf]
  %v42 = vld [vmem:[%s1 + $0x30] sm:$0xf]
  %v43 = vld [vmem:[%s1 + $0x34] sm:$0xf]
  %v44 = vld [vmem:[%s1 + $0x38] sm:$0xf]
  %v45 = vld [vmem:[%s1 + $0x3c] sm:$0xf]
  %v46 = vld [vmem:[%s1 + $0x40] sm:$0xf]
  %v47 = vld [vmem:[%s1 + $0x44] sm:$0xf]
  %v48 = vld [vmem:[%s1 + $0x48] sm:$0xf]
  %v49 = vld [vmem:[%s1 + $0x4c] sm:$0xf]
  %v50 = vld [vmem:[%s1 + $0x50] sm:$0xf]
  %v51 = vld [vmem:[%s1 + $0x54] sm:$0xf]
  %v52 = vld [vmem:[%s1 + $0x58] sm:$0xf]
  %v53 = vld [vmem:[%s1 + $0x5c] sm:$0xf]
  %v54 = vld [vmem:[%s1 + $0x60] sm:$0xf]
  %v55 = vld [vmem:[%s1 + $0x64] sm:$0xf]
  %v56 = vld [vmem:[%s1 + $0x68] sm:$0xf]
  %v57 = vld [vmem:[%s1 + $0x6c] sm:$0xf]
  %v58 = vld [vmem:[%s1 + $0x70] sm:$0xf]
  %v59 = vld [vmem:[%s1 + $0x74] sm:$0xf]
  %v60 = vld [vmem:[%s1 + $0x78] sm:$0xf]
  %v61 = vld [vmem:[%s1 + $0x7c] sm:$0xf]
  %v62 = vld [vmem:[%s1 + $0x80] sm:$0xf]
  %v63 = vld [vmem:[%s1 + $0x84] sm:$0xf]
  %v64 = vld [vmem:[%s1 + $0x88] sm:$0xf]
  %v65 = vld [vmem:[%s1 + $0x8c] sm:$0xf]
  %v66 = vld [vmem:[%s1 + $0x90] sm:$0xf]
  %v67 = vld [vmem:[%s1 + $0x94] sm:$0xf]
  %v68 = vld [vmem:[%s1 + $0x98] sm:$0xf]
  %v69 = vld [vmem:[%s1 + $0x9c] sm:$0xf]
  %v70 = vld [vmem:[%s1 + $0xa0] sm:$0xf]
  %v71 = vld [vmem:[%s1 + $0xa4] sm:$0xf]
  %v72 = vld [vmem:[%s1 + $0xa8] sm:$0xf]
  %v73 = vld [vmem:[%s1 + $0xac] sm:$0xf]
  %v74 = vld [vmem:[%s1 + $0xb0] sm:$0xf]
  %v75 = vld [vmem:[%s1 + $0xb4] sm:$0xf]
  %v76 = vld [vmem:[%s1 + $0xb8] sm:$0xf]
  %v77 = vld [vmem:[%s1 + $0xbc] sm:$0xf]
  %v78 = vld [vmem:[%s1 + $0xc0] sm:$0xf]
  %v79 = vld [vmem:[%s1 + $0xc4] sm:$0xf]
  %v80 = vld [vmem:[%s1 + $0xc8] sm:$0xf]
  %v81 = vld [vmem:[%s1 + $0xcc] sm:$0xf]
  %v82 = vld [vmem:[%s1 + $0xd0] sm:$0xf]
  %v83 = vld [vmem:[%s1 + $0xd4] sm:$0xf]
  %v84 = vld [vmem:[%s1 + $0xd8] sm:$0xf]
  %v85 = vld [vmem:[%s1 + $0xdc] sm:$0xf]
  %v86 = vld [vmem:[%s1 + $0xe0] sm:$0xf]
  %v87 = vld [vmem:[%s1 + $0xe4] sm:$0xf]
  %v88 = vld [vmem:[%s1 + $0xe8] sm:$0xf]
  %v89 = vld [vmem:[%s1 + $0xec] sm:$0xf]
  %v90 = vld [vmem:[%s1 + $0xf0] sm:$0xf]
  %v91 = vld [vmem:[%s1 + $0xf4] sm:$0xf]
  %v92 = vld [vmem:[%s1 + $0xf8] sm:$0xf]
  %v93 = vld [vmem:[%s1 + $0xfc] sm:$0xf]
  %v94 = vld [vmem:[%s1 + $0x100] sm:$0xf]
  %v95 = vld [vmem:[%s1 + $0x104] sm:$0xf]
  %v96 = vld [vmem:[%s1 + $0x108] sm:$0xf]
  %v97 = vld [vmem:[%s1 + $0x10c] sm:$0xf]
  %v98 = vld [vmem:[%s1 + $0x110] sm:$0xf]
  %v99 = vld [vmem:[%s1 + $0x114] sm:$0xf]
  %v100 = vld [vmem:[%s1 + $0x118] sm:$0xf]
  %v101 = vld [vmem:[%s1 + $0x11c] sm:$0xf]
  %v102 = vld [vmem:[%s1 + $0x120] sm:$0xf]
  %v103 = vld [vmem:[%s1 + $0x124] sm:$0xf]
  %v104 = vld [vmem:[%s1 + $0x128] sm:$0xf]
  %v105 = vld [vmem:[%s1 + $0x12c] sm:$0xf]
  %v106 = vld [vmem:[%s1 + $0x130] sm:$0xf]
  %v107 = vld [vmem:[%s1 + $0x134] sm:$0xf]
  %v108 = vld [vmem:[%s1 + $0x138] sm:$0xf]
  %v109 = vld [vmem:[%s1 + $0x13c] sm:$0xf]
  %v110 = vld [vmem:[%s1 + $0x140] sm:$0xf]
  %v111 = vld [vmem:[%s1 + $0x144] sm:$0xf]
  %v112 = vld [vmem:[%s1 + $0x148] sm:$0xf]
  %v113 = vld [vmem:[%s1 + $0x14c] sm:$0xf]
  %v114 = vld [vmem:[%s1 + $0x150] sm:$0xf]
  %v115 = vld [vmem:[%s1 + $0x154] sm:$0xf]
  %v116 = vld [vmem:[%s1 + $0x158] sm:$0xf]
  %v117 = vld [vmem:[%s1 + $0x15c] sm:$0xf]
  %v118 = vld [vmem:[%s1 + $0x160] sm:$0xf]
  %v119 = vld [vmem:[%s1 + $0x164] sm:$0xf]
  %v120 = vld [vmem:[%s1 + $0x168] sm:$0xf]
  %v121 = vld [vmem:[%s1 + $0x16c] sm:$0xf]
  %v122 = vld [vmem:[%s1 + $0x170] sm:$0xf]
  %v123 = vld [vmem:[%s1 + $0x174] sm:$0xf]
  %v124 = vld [vmem:[%s1 + $0x178] sm:$0xf]
  %v125 = vld [vmem:[%s1 + $0x17c] sm:$0xf]
  %v126 = vld [vmem:[%s1 + $0x180] sm:$0xf]
  %v127 = vld [vmem:[%s1 + $0x184] sm:$0xf]
  %v128 = vld [vmem:[%s1 + $0x188] sm:$0xf]
  %v129 = vld [vmem:[%s1 + $0x18c] sm:$0xf]
  %v130 = vld [vmem:[%s1 + $0x190] sm:$0xf]
  %v131 = vld [vmem:[%s1 + $0x194] sm:$0xf]
  %v132 = vld [vmem:[%s1 + $0x198] sm:$0xf]
  %v133 = vld [vmem:[%s1 + $0x19c] sm:$0xf]
  %v134 = vld [vmem:[%s1 + $0x1a0] sm:$0xf]
  %v135 = vld [vmem:[%s1 + $0x1a4] sm:$0xf]
  %v136 = vld [vmem:[%s1 + $0x1a8] sm:$0xf]
  %v137 = vld [vmem:[%s1 + $0x1ac] sm:$0xf]
  %v138 = vld [vmem:[%s1 + $0x1b0] sm:$0xf]
  %v139 = vld [vmem:[%s1 + $0x1b4] sm:$0xf]
  %v140 = vld [vmem:[%s1 + $0x1b8] sm:$0xf]
  %v141 = vld [vmem:[%s1 + $0x1bc] sm:$0xf]
  %v142 = vld [vmem:[%s1 + $0x1c0] sm:$0xf]
  %v143 = vld [vmem:[%s1 + $0x1c4] sm:$0xf]
  %v144 = vld [vmem:[%s1 + $0x1c8] sm:$0xf]
  %v145 = vld [vmem:[%s1 + $0x1cc] sm:$0xf]
  %v146 = vld [vmem:[%s1 + $0x1d0] sm:$0xf]
  %v147 = vld [vmem:[%s1 + $0x1d4] sm:$0xf]
  %v148 = vld [vmem:[%s1 + $0x1d8] sm:$0xf]
  %v149 = vld [vmem:[%s1 + $0x1dc] sm:$0xf]
  %v150 = vld [vmem:[%s1 + $0x1e0] sm:$0xf]
  %v151 = vld [vmem:[%s1 + $0x1e4] sm:$0xf]
  %v152 = vld [vmem:[%s1 + $0x1e8] sm:$0xf]
  %v153 = vld [vmem:[%s1 + $0x1ec] sm:$0xf]
  %v154 = vld [vmem:[%s1 + $0x1f0] sm:$0xf]
  %v155 = vld [vmem:[%s1 + $0x1f4] sm:$0xf]
  %v156 = vld [vmem:[%s1 + $0x1f8] sm:$0xf]
  %v157 = vld [vmem:[%s1 + $0x1fc] sm:$0xf]
  %v170 = vunpack.c.l.b16 %v18
  %v171 = vunpack.c.h.b16 %v18
  %v172 = vunpack.c.l.b16 %v19
  %v173 = vunpack.c.h.b16 %v19
  %v174 = vunpack.c.l.b16 %v20
  %v175 = vunpack.c.h.b16 %v20
  %v176 = vunpack.c.l.b16 %v21
  %v177 = vunpack.c.h.b16 %v21
  %v178 = vunpack.c.l.b16 %v22
  %v179 = vunpack.c.h.b16 %v22
  %v180 = vunpack.c.l.b16 %v23
  %v181 = vunpack.c.h.b16 %v23
  %v182 = vunpack.c.l.b16 %v24
  %v183 = vunpack.c.h.b16 %v24
  %v184 = vunpack.c.l.b16 %v25
  %v185 = vunpack.c.h.b16 %v25
  %v186 = vunpack.c.l.b16 %v26
  %v187 = vunpack.c.h.b16 %v26
  %v188 = vunpack.c.l.b16 %v27
  %v189 = vunpack.c.h.b16 %v27
  %v190 = vunpack.c.l.b16 %v28
  %v191 = vunpack.c.h.b16 %v28
  %v192 = vunpack.c.l.b16 %v29
  %v193 = vunpack.c.h.b16 %v29
  %v194 = vpack.c.b16 %v178, %v170
  %v195 = vpack.c.b16 %v179, %v171
  %v196 = vpack.c.b16 %v180, %v172
  %v197 = vpack.c.b16 %v181, %v173
  %v198 = vpack.c.b16 %v182, %v174
  %v199 = vpack.c.b16 %v183, %v175
  %v200 = vpack.c.b16 %v184, %v176
  %v201 = vpack.c.b16 %v185, %v177
  %v202 = vpack.c.b16 %v186, %v186
  %v203 = vpack.c.b16 %v187, %v187
  %v204 = vpack.c.b16 %v188, %v188
  %v205 = vpack.c.b16 %v189, %v189
  %v206 = vpack.c.b16 %v190, %v190
  %v207 = vpack.c.b16 %v191, %v191
  %v208 = vpack.c.b16 %v192, %v192
  %v209 = vpack.c.b16 %v193, %v193
  %v354 = vunpack.c.l.b16 %v30
  %v355 = vunpack.c.l.b16 %v31
  %v356 = vunpack.c.l.b16 %v32
  %v357 = vunpack.c.l.b16 %v33
  %v358 = vunpack.c.l.b16 %v34
  %v359 = vunpack.c.l.b16 %v35
  %v360 = vunpack.c.l.b16 %v36
  %v361 = vunpack.c.l.b16 %v37
  %v362 = vunpack.c.l.b16 %v38
  %v363 = vunpack.c.l.b16 %v39
  %v364 = vunpack.c.l.b16 %v40
  %v365 = vunpack.c.l.b16 %v41
  %v366 = vunpack.c.l.b16 %v42
  %v367 = vunpack.c.l.b16 %v43
  %v368 = vunpack.c.l.b16 %v44
  %v369 = vunpack.c.l.b16 %v45
  %v370 = vunpack.c.l.b16 %v46
  %v371 = vunpack.c.l.b16 %v47
  %v372 = vunpack.c.l.b16 %v48
  %v373 = vunpack.c.l.b16 %v49
  %v374 = vunpack.c.l.b16 %v50
  %v375 = vunpack.c.l.b16 %v51
  %v376 = vunpack.c.l.b16 %v52
  %v377 = vunpack.c.l.b16 %v53
  %v378 = vunpack.c.l.b16 %v54
  %v379 = vunpack.c.l.b16 %v55
  %v380 = vunpack.c.l.b16 %v56
  %v381 = vunpack.c.l.b16 %v57
  %v382 = vunpack.c.l.b16 %v58
  %v383 = vunpack.c.l.b16 %v59
  %v384 = vunpack.c.l.b16 %v60
  %v385 = vunpack.c.l.b16 %v61
  %v386 = vunpack.c.l.b16 %v62
  %v387 = vunpack.c.l.b16 %v63
  %v388 = vunpack.c.l.b16 %v64
  %v389 = vunpack.c.l.b16 %v65
  %v390 = vunpack.c.l.b16 %v66
  %v391 = vunpack.c.l.b16 %v67
  %v392 = vunpack.c.l.b16 %v68
  %v393 = vunpack.c.l.b16 %v69
  %v394 = vunpack.c.l.b16 %v70
  %v395 = vunpack.c.l.b16 %v71
  %v396 = vunpack.c.l.b16 %v72
  %v397 = vunpack.c.l.b16 %v73
  %v398 = vunpack.c.l.b16 %v74
  %v399 = vunpack.c.l.b16 %v75
  %v400 = vunpack.c.l.b16 %v76
  %v401 = vunpack.c.l.b16 %v77
  %v402 = vunpack.c.l.b16 %v78
  %v403 = vunpack.c.l.b16 %v79
  %v404 = vunpack.c.l.b16 %v80
  %v405 = vunpack.c.l.b16 %v81
  %v406 = vunpack.c.l.b16 %v82
  %v407 = vunpack.c.l.b16 %v83
  %v408 = vunpack.c.l.b16 %v84
  %v409 = vunpack.c.l.b16 %v85
  %v410 = vunpack.c.l.b16 %v86
  %v411 = vunpack.c.l.b16 %v87
  %v412 = vunpack.c.l.b16 %v88
  %v413 = vunpack.c.l.b16 %v89
  %v414 = vunpack.c.l.b16 %v90
  %v415 = vunpack.c.l.b16 %v91
  %v416 = vunpack.c.l.b16 %v92
  %v417 = vunpack.c.l.b16 %v93
  %v418 = vunpack.c.l.b16 %v94
  %v419 = vunpack.c.l.b16 %v95
  %v420 = vunpack.c.l.b16 %v96
  %v421 = vunpack.c.l.b16 %v97
  %v422 = vunpack.c.l.b16 %v98
  %v423 = vunpack.c.l.b16 %v99
  %v424 = vunpack.c.l.b16 %v100
  %v425 = vunpack.c.l.b16 %v101
  %v426 = vunpack.c.l.b16 %v102
  %v427 = vunpack.c.l.b16 %v103
  %v428 = vunpack.c.l.b16 %v104
  %v429 = vunpack.c.l.b16 %v105
  %v430 = vunpack.c.l.b16 %v106
  %v431 = vunpack.c.l.b16 %v107
  %v432 = vunpack.c.l.b16 %v108
  %v433 = vunpack.c.l.b16 %v109
  %v434 = vunpack.c.l.b16 %v110
  %v435 = vunpack.c.l.b16 %v111
  %v436 = vunpack.c.l.b16 %v112
  %v437 = vunpack.c.l.b16 %v113
  %v438 = vunpack.c.l.b16 %v114
  %v439 = vunpack.c.l.b16 %v115
  %v440 = vunpack.c.l.b16 %v116
  %v441 = vunpack.c.l.b16 %v117
  %v442 = vunpack.c.l.b16 %v118
  %v443 = vunpack.c.l.b16 %v119
  %v444 = vunpack.c.l.b16 %v120
  %v445 = vunpack.c.l.b16 %v121
  %v446 = vunpack.c.l.b16 %v122
  %v447 = vunpack.c.l.b16 %v123
  %v448 = vunpack.c.l.b16 %v124
  %v449 = vunpack.c.l.b16 %v125
  %v450 = vunpack.c.l.b16 %v126
  %v451 = vunpack.c.l.b16 %v127
  %v452 = vunpack.c.l.b16 %v128
  %v453 = vunpack.c.l.b16 %v129
  %v454 = vunpack.c.l.b16 %v130
  %v455 = vunpack.c.l.b16 %v131
  %v456 = vunpack.c.l.b16 %v132
  %v457 = vunpack.c.l.b16 %v133
  %v458 = vunpack.c.l.b16 %v134
  %v459 = vunpack.c.l.b16 %v135
  %v460 = vunpack.c.l.b16 %v136
  %v461 = vunpack.c.l.b16 %v137
  %v462 = vunpack.c.l.b16 %v138
  %v463 = vunpack.c.l.b16 %v139
  %v464 = vunpack.c.l.b16 %v140
  %v465 = vunpack.c.l.b16 %v141
  %v466 = vunpack.c.l.b16 %v142
  %v467 = vunpack.c.l.b16 %v143
  %v468 = vunpack.c.l.b16 %v144
  %v469 = vunpack.c.l.b16 %v145
  %v470 = vunpack.c.l.b16 %v146
  %v471 = vunpack.c.l.b16 %v147
  %v472 = vunpack.c.l.b16 %v148
  %v473 = vunpack.c.l.b16 %v149
  %v474 = vunpack.c.l.b16 %v150
  %v475 = vunpack.c.l.b16 %v151
  %v476 = vunpack.c.l.b16 %v152
  %v477 = vunpack.c.l.b16 %v153
  %v478 = vunpack.c.l.b16 %v154
  %v479 = vunpack.c.l.b16 %v155
  %v480 = vunpack.c.l.b16 %v156
  %v481 = vunpack.c.l.b16 %v157
  %v482 = vpack.c.b16 %v355, %v354
  %v483 = vpack.c.b16 %v357, %v356
  %v484 = vpack.c.b16 %v359, %v358
  %v485 = vpack.c.b16 %v361, %v360
  %v486 = vpack.c.b16 %v363, %v362
  %v487 = vpack.c.b16 %v365, %v364
  %v488 = vpack.c.b16 %v367, %v366
  %v489 = vpack.c.b16 %v369, %v368
  %v490 = vpack.c.b16 %v371, %v370
  %v491 = vpack.c.b16 %v373, %v372
  %v492 = vpack.c.b16 %v375, %v374
  %v493 = vpack.c.b16 %v377, %v376
  %v494 = vpack.c.b16 %v379, %v378
  %v495 = vpack.c.b16 %v381, %v380
  %v496 = vpack.c.b16 %v383, %v382
  %v497 = vpack.c.b16 %v385, %v384
  %v498 = vpack.c.b16 %v387, %v386
  %v499 = vpack.c.b16 %v389, %v388
  %v500 = vpack.c.b16 %v391, %v390
  %v501 = vpack.c.b16 %v393, %v392
  %v502 = vpack.c.b16 %v395, %v394
  %v503 = vpack.c.b16 %v397, %v396
  %v504 = vpack.c.b16 %v399, %v398
  %v505 = vpack.c.b16 %v401, %v400
  %v506 = vpack.c.b16 %v403, %v402
  %v507 = vpack.c.b16 %v405, %v404
  %v508 = vpack.c.b16 %v407, %v406
  %v509 = vpack.c.b16 %v409, %v408
  %v510 = vpack.c.b16 %v411, %v410
  %v511 = vpack.c.b16 %v413, %v412
  %v512 = vpack.c.b16 %v415, %v414
  %v513 = vpack.c.b16 %v417, %v416
  %v514 = vpack.c.b16 %v419, %v418
  %v515 = vpack.c.b16 %v421, %v420
  %v516 = vpack.c.b16 %v423, %v422
  %v517 = vpack.c.b16 %v425, %v424
  %v518 = vpack.c.b16 %v427, %v426
  %v519 = vpack.c.b16 %v429, %v428
  %v520 = vpack.c.b16 %v431, %v430
  %v521 = vpack.c.b16 %v433, %v432
  %v522 = vpack.c.b16 %v435, %v434
  %v523 = vpack.c.b16 %v437, %v436
  %v524 = vpack.c.b16 %v439, %v438
  %v525 = vpack.c.b16 %v441, %v440
  %v526 = vpack.c.b16 %v443, %v442
  %v527 = vpack.c.b16 %v445, %v444
  %v528 = vpack.c.b16 %v447, %v446
  %v529 = vpack.c.b16 %v449, %v448
  %v530 = vpack.c.b16 %v451, %v450
  %v531 = vpack.c.b16 %v453, %v452
  %v532 = vpack.c.b16 %v455, %v454
  %v533 = vpack.c.b16 %v457, %v456
  %v534 = vpack.c.b16 %v459, %v458
  %v535 = vpack.c.b16 %v461, %v460
  %v536 = vpack.c.b16 %v463, %v462
  %v537 = vpack.c.b16 %v465, %v464
  %v538 = vpack.c.b16 %v467, %v466
  %v539 = vpack.c.b16 %v469, %v468
  %v540 = vpack.c.b16 %v471, %v470
  %v541 = vpack.c.b16 %v473, %v472
  %v542 = vpack.c.b16 %v475, %v474
  %v543 = vpack.c.b16 %v477, %v476
  %v544 = vpack.c.b16 %v479, %v478
  %v545 = vpack.c.b16 %v481, %v480
  %610 = vmatprep.subr.bf16.mxu0 0
  %611 = vmatpush1.bf16.msra.mxu0 %v489
  %612 = vmatprep.subr.bf16.mxu0 0
  %613 = vmatpush1.bf16.msra.mxu0 %v488
  %614 = vmatprep.subr.bf16.mxu0 0
  %615 = vmatpush1.bf16.msra.mxu0 %v487
  %616 = vmatprep.subr.bf16.mxu0 0
  %617 = vmatpush1.bf16.msra.mxu0 %v486
  %618 = vmatprep.subr.bf16.mxu0 0
  %619 = vmatpush1.bf16.msra.mxu0 %v485
  %620 = vmatprep.subr.bf16.mxu0 0
  %621 = vmatpush1.bf16.msra.mxu0 %v484
  %622 = vmatprep.subr.bf16.mxu0 0
  %623 = vmatpush1.bf16.msra.mxu0 %v483
  %624 = vmatprep.subr.bf16.mxu0 0
  %625 = vmatpush1.bf16.msra.mxu0 %v482
  %626 = vmatprep.subr.bf16.mxu0 0
  %627 = vmatpush2.bf16.msra.mxu0 %v497
  %628 = vmatprep.subr.bf16.mxu0 0
  %629 = vmatpush2.bf16.msra.mxu0 %v496
  %630 = vmatprep.subr.bf16.mxu0 0
  %631 = vmatpush2.bf16.msra.mxu0 %v495
  %632 = vmatprep.subr.bf16.mxu0 0
  %633 = vmatpush2.bf16.msra.mxu0 %v494
  %634 = vmatprep.subr.bf16.mxu0 0
  %635 = vmatpush2.bf16.msra.mxu0 %v493
  %636 = vmatprep.subr.bf16.mxu0 0
  %637 = vmatpush2.bf16.msra.mxu0 %v492
  %638 = vmatprep.subr.bf16.mxu0 0
  %639 = vmatpush2.bf16.msra.mxu0 %v491
  %640 = vmatprep.subr.bf16.mxu0 0
  %641 = vmatpush2.bf16.msra.mxu0 %v490
  %642 = vmatprep.mubr.bf16.mxu0 %v195
  %643 = vmatmul.mubr.bf16.gmra.mxu0 %v194
  %v644 = vpop.f32.mrf.mxu0
  %v645 = vadd.f32 0.0, %v644
  %v646 = vpop.f32.mrf.mxu0
  %v647 = vpop.f32.mrf.mxu0
  %v648 = vadd.f32 0.0, %v647
  %v649 = vpop.f32.mrf.mxu0
  %650 = vmatprep.mubr.bf16.mxu0 %v203
  %651 = vmatmul.mubr.bf16.gmra.mxu0 %v202
  %v652 = vpop.f32.mrf.mxu0
  %v653 = vadd.f32 0.0, %v652
  %v654 = vpop.f32.mrf.mxu0
  %v655 = vpop.f32.mrf.mxu0
  %v656 = vpop.f32.mrf.mxu0
  %657 = vdwg.mxu0
  %658 = vmatprep.subr.bf16.mxu0 0
  %659 = vmatpush1.bf16.msra.mxu0 %v505
  %660 = vmatprep.subr.bf16.mxu0 0
  %661 = vmatpush1.bf16.msra.mxu0 %v504
  %662 = vmatprep.subr.bf16.mxu0 0
  %663 = vmatpush1.bf16.msra.mxu0 %v503
  %664 = vmatprep.subr.bf16.mxu0 0
  %665 = vmatpush1.bf16.msra.mxu0 %v502
  %666 = vmatprep.subr.bf16.mxu0 0
  %667 = vmatpush1.bf16.msra.mxu0 %v501
  %668 = vmatprep.subr.bf16.mxu0 0
  %669 = vmatpush1.bf16.msra.mxu0 %v500
  %670 = vmatprep.subr.bf16.mxu0 0
  %671 = vmatpush1.bf16.msra.mxu0 %v499
  %672 = vmatprep.subr.bf16.mxu0 0
  %673 = vmatpush1.bf16.msra.mxu0 %v498
  %674 = vmatprep.subr.bf16.mxu0 0
  %675 = vmatpush2.bf16.msra.mxu0 %v513
  %676 = vmatprep.subr.bf16.mxu0 0
  %677 = vmatpush2.bf16.msra.mxu0 %v512
  %678 = vmatprep.subr.bf16.mxu0 0
  %679 = vmatpush2.bf16.msra.mxu0 %v511
  %680 = vmatprep.subr.bf16.mxu0 0
  %681 = vmatpush2.bf16.msra.mxu0 %v510
  %682 = vmatprep.subr.bf16.mxu0 0
  %683 = vmatpush2.bf16.msra.mxu0 %v509
  %684 = vmatprep.subr.bf16.mxu0 0
  %685 = vmatpush2.bf16.msra.mxu0 %v508
  %686 = vmatprep.subr.bf16.mxu0 0
  %687 = vmatpush2.bf16.msra.mxu0 %v507
  %688 = vmatprep.subr.bf16.mxu0 0
  %689 = vmatpush2.bf16.msra.mxu0 %v506
  %690 = vmatprep.mubr.bf16.mxu0 %v197
  %691 = vmatmul.mubr.bf16.gmra.mxu0 %v196
  %v692 = vpop.f32.mrf.mxu0
  %v693 = vadd.f32 %v645, %v692
  %v694 = vpop.f32.mrf.mxu0
  %v695 = vpop.f32.mrf.mxu0
  %v696 = vadd.f32 %v648, %v695
  %v697 = vpop.f32.mrf.mxu0
  %698 = vmatprep.mubr.bf16.mxu0 %v205
  %699 = vmatmul.mubr.bf16.gmra.mxu0 %v204
  %v700 = vpop.f32.mrf.mxu0
  %v701 = vadd.f32 %v653, %v700
  %v702 = vpop.f32.mrf.mxu0
  %v703 = vpop.f32.mrf.mxu0
  %v704 = vpop.f32.mrf.mxu0
  %705 = vdwg.mxu0
  %706 = vmatprep.subr.bf16.mxu0 0
  %707 = vmatpush1.bf16.msra.mxu0 %v521
  %708 = vmatprep.subr.bf16.mxu0 0
  %709 = vmatpush1.bf16.msra.mxu0 %v520
  %710 = vmatprep.subr.bf16.mxu0 0
  %711 = vmatpush1.bf16.msra.mxu0 %v519
  %712 = vmatprep.subr.bf16.mxu0 0
  %713 = vmatpush1.bf16.msra.mxu0 %v518
  %714 = vmatprep.subr.bf16.mxu0 0
  %715 = vmatpush1.bf16.msra.mxu0 %v517
  %716 = vmatprep.subr.bf16.mxu0 0
  %717 = vmatpush1.bf16.msra.mxu0 %v516
  %718 = vmatprep.subr.bf16.mxu0 0
  %719 = vmatpush1.bf16.msra.mxu0 %v515
  %720 = vmatprep.subr.bf16.mxu0 0
  %721 = vmatpush1.bf16.msra.mxu0 %v514
  %722 = vmatprep.subr.bf16.mxu0 0
  %723 = vmatpush2.bf16.msra.mxu0 %v529
  %724 = vmatprep.subr.bf16.mxu0 0
  %725 = vmatpush2.bf16.msra.mxu0 %v528
  %726 = vmatprep.subr.bf16.mxu0 0
  %727 = vmatpush2.bf16.msra.mxu0 %v527
  %728 = vmatprep.subr.bf16.mxu0 0
  %729 = vmatpush2.bf16.msra.mxu0 %v526
  %730 = vmatprep.subr.bf16.mxu0 0
  %731 = vmatpush2.bf16.msra.mxu0 %v525
  %732 = vmatprep.subr.bf16.mxu0 0
  %733 = vmatpush2.bf16.msra.mxu0 %v524
  %734 = vmatprep.subr.bf16.mxu0 0
  %735 = vmatpush2.bf16.msra.mxu0 %v523
  %736 = vmatprep.subr.bf16.mxu0 0
  %737 = vmatpush2.bf16.msra.mxu0 %v522
  %738 = vmatprep.mubr.bf16.mxu0 %v199
  %739 = vmatmul.mubr.bf16.gmra.mxu0 %v198
  %v740 = vpop.f32.mrf.mxu0
  %v741 = vadd.f32 %v693, %v740
  %v742 = vpop.f32.mrf.mxu0
  %v743 = vpop.f32.mrf.mxu0
  %v744 = vadd.f32 %v696, %v743
  %v745 = vpop.f32.mrf.mxu0
  %746 = vmatprep.mubr.bf16.mxu0 %v207
  %747 = vmatmul.mubr.bf16.gmra.mxu0 %v206
  %v748 = vpop.f32.mrf.mxu0
  %v749 = vadd.f32 %v701, %v748
  %v750 = vpop.f32.mrf.mxu0
  %v751 = vpop.f32.mrf.mxu0
  %v752 = vpop.f32.mrf.mxu0
  %753 = vdwg.mxu0
  %754 = vmatprep.subr.bf16.mxu0 0
  %755 = vmatpush1.bf16.msra.mxu0 %v537
  %756 = vmatprep.subr.bf16.mxu0 0
  %757 = vmatpush1.bf16.msra.mxu0 %v536
  %758 = vmatprep.subr.bf16.mxu0 0
  %759 = vmatpush1.bf16.msra.mxu0 %v535
  %760 = vmatprep.subr.bf16.mxu0 0
  %761 = vmatpush1.bf16.msra.mxu0 %v534
  %762 = vmatprep.subr.bf16.mxu0 0
  %763 = vmatpush1.bf16.msra.mxu0 %v533
  %764 = vmatprep.subr.bf16.mxu0 0
  %765 = vmatpush1.bf16.msra.mxu0 %v532
  %766 = vmatprep.subr.bf16.mxu0 0
  %767 = vmatpush1.bf16.msra.mxu0 %v531
  %768 = vmatprep.subr.bf16.mxu0 0
  %769 = vmatpush1.bf16.msra.mxu0 %v530
  %770 = vmatprep.subr.bf16.mxu0 0
  %771 = vmatpush2.bf16.msra.mxu0 %v545
  %772 = vmatprep.subr.bf16.mxu0 0
  %773 = vmatpush2.bf16.msra.mxu0 %v544
  %774 = vmatprep.subr.bf16.mxu0 0
  %775 = vmatpush2.bf16.msra.mxu0 %v543
  %776 = vmatprep.subr.bf16.mxu0 0
  %777 = vmatpush2.bf16.msra.mxu0 %v542
  %778 = vmatprep.subr.bf16.mxu0 0
  %779 = vmatpush2.bf16.msra.mxu0 %v541
  %780 = vmatprep.subr.bf16.mxu0 0
  %781 = vmatpush2.bf16.msra.mxu0 %v540
  %782 = vmatprep.subr.bf16.mxu0 0
  %783 = vmatpush2.bf16.msra.mxu0 %v539
  %784 = vmatprep.subr.bf16.mxu0 0
  %785 = vmatpush2.bf16.msra.mxu0 %v538
  %786 = vmatprep.mubr.bf16.mxu0 %v201
  %787 = vmatmul.mubr.bf16.gmra.mxu0 %v200
  %v788 = vpop.f32.mrf.mxu0
  %v789 = vadd.f32 %v741, %v788
  %v790 = vpop.f32.mrf.mxu0
  %v791 = vpop.f32.mrf.mxu0
  %v792 = vadd.f32 %v744, %v791
  %v793 = vpop.f32.mrf.mxu0
  %794 = vmatprep.mubr.bf16.mxu0 %v209
  %795 = vmatmul.mubr.bf16.gmra.mxu0 %v208
  %v796 = vpop.f32.mrf.mxu0
  %v797 = vadd.f32 %v749, %v796
  %v798 = vpop.f32.mrf.mxu0
  %v799 = vpop.f32.mrf.mxu0
  %v800 = vpop.f32.mrf.mxu0
  %801 = vdwg.mxu0
  %s802 = smul.u32 0, 24
  %s803 = scalar_lea.vmem [#allocation2], %s802
  %804 = vst [vmem:[%s803] sm:$0xff] %v789
  %805 = vst [vmem:[%s803 + $0x8] sm:$0xff] %v792
  %806 = vst [vmem:[%s803 + $0x10] sm:$0xff] %v797
  %p807 = scmp.eq.s32.totalorder 0, 0
  // Predicated region
  $region18: #{discriminator_forward.8} parent=0 // pred_check
    %p808 = pneg %p807
  $region19: #{discriminator_forward.8} parent=0 // pred_check_branch
    %810 = sbr.rel (%p808) target = $region21
  $region20: #{discriminator_forward.8} parent=0 // pred_region
    %v811 = vld [vmem:[#allocation2] sm:$0xff]
    %v812 = vld [vmem:[#allocation2 + $0x8] sm:$0xff]
    %v813 = vld [vmem:[#allocation2 + $0x10] sm:$0xff]
    %v814 = vadd.f32 %v811, %v812
    %v815 = vadd.f32 %v814, %v813
    %v816 = vrot.slane %v815, 4
    %v817 = vadd.f32 %v815, %v816
    %v818 = vrot.slane %v817, 2
    %v819 = vadd.f32 %v817, %v818
    %v820 = vrot.slane %v819, 1
    %v821 = vadd.f32 %v819, %v820
    %v822 = vmul.f32 %v821, 0.055555556
    %v823 = vmul.f32 %v811, %v811
    %v824 = vmul.f32 %v812, %v812
    %v825 = vmul.f32 %v813, %v813
    %v826 = vadd.f32 %v823, %v824
    %v827 = vadd.f32 %v826, %v825
    %v828 = vrot.slane %v827, 4
    %v829 = vadd.f32 %v827, %v828
    %v830 = vrot.slane %v829, 2
    %v831 = vadd.f32 %v829, %v830
    %v832 = vrot.slane %v831, 1
    %v833 = vadd.f32 %v831, %v832
    %v834 = vmul.f32 %v833, 0.055555556
    %v835 = vmul.f32 %v822, %v822
    %v836 = vsub.f32 %v834, %v835
    %v837 = vmax.f32 %v836, 0.0
    %v838 = vld [vmem:[%s2] sm:$0x1]
    %v839 = vadd.f32 %v837, 1e-05
    %v840 = vrsqrt.pop %v839
    %v841 = vmul.f32 %v838, %v840
    %v842 = vld [vmem:[%s3] sm:$0x1]
    %v843 = vmul.f32 %v822, %v841
    %v844 = vsub.f32 %v842, %v843
    %v846 = vlaneseq
    %v847 = vshrl.u32 %v846, 7
    %v848 = vsub.s32 0, %v847
    %v849 = vrot.slane %v841, %v848
    %v851 = vmul.f32 %v811, %v849
    %v852 = vmul.f32 %v812, %v849
    %v853 = vmul.f32 %v813, %v849
    %v855 = vlaneseq
    %v856 = vshrl.u32 %v855, 7
    %v857 = vsub.s32 0, %v856
    %v858 = vrot.slane %v844, %v857
    %v860 = vadd.f32 %v851, %v858
    %v861 = vadd.f32 %v852, %v858
    %v862 = vadd.f32 %v853, %v858
    %v863 = vmul.f32 %v860, 0.2
    %v864 = vmul.f32 %v861, 0.2
    %v865 = vmul.f32 %v862, 0.2
    %v866 = vmax.f32 %v860, %v863
    %v867 = vmax.f32 %v861, %v864
    %v868 = vmax.f32 %v862, %v865
    %v869 = vpack.c.bf16 %v867, %v866
    %v870 = vpack.c.bf16 %v868, %v868
    %v873 = vunpack.c.l.b16 %v869
    %v874 = vunpack.c.h.b16 %v869
    %v875 = vunpack.c.l.b16 %v870
    %v876 = vpack.c.b16 %v873, %v873
    %v877 = vpack.c.b16 %v874, %v874
    %v878 = vpack.c.b16 %v875, %v875
    %882 = vst [vmem:[%s4] sm:$0xf] %v876
    %883 = vst [vmem:[%s4 + $0x4] sm:$0xf] %v877
    %884 = vst [vmem:[%s4 + $0x8] sm:$0xf] %v878
  $region21: #{discriminator_forward.8} parent=0 // pred_fallthru
    _
  // Predicated region
  $region22: #{discriminator_forward.8} parent=0 // pred_check
    _
  $region23: #{discriminator_forward.8} parent=0 // pred_check_branch
    %886 = sbr.rel (0) target = $region25
  $region24: #{discriminator_forward.8} parent=0 // pred_region
    _
  $region25: #{discriminator_forward.8} parent=0 // pred_fallthru
    _
  // Predicated region
  $region26: #{discriminator_forward.8} parent=0 // pred_check
    _
  $region27: #{discriminator_forward.8} parent=0 // pred_check_branch
    %888 = sbr.rel (0) target = $region29
  $region28: #{discriminator_forward.8} parent=0 // pred_region
    _
  $region29: #{discriminator_forward.8} parent=0 // pred_fallthru
    _

// kernel: discriminator_forward.9
$region0: #{discriminator_forward.9}
  #allocation0 [shape = 'u32[]', space=smem, size = 0x4, offset = 0x4, fixed_abs, tag = 'smem constant byte address 0x4 - core index']
  #allocation1 [shape = 'u32[144,128]{1,0:T(1,128)}', space=vmem, size = 0x12000, scoped, tag = 'internal scratch']
  %s0 = inlined_call_operand.vmem [shape: bf16[8,2048], index: 0, kind: input, shape index: {}]
  %s1 = inlined_call_operand.vmem [shape: bf16[2048,128], index: 1, kind: input, shape index: {}]
  %s2 = inlined_call_operand.vmem [shape: f32[1,128], index: 2, kind: input, shape index: {}]
  %s3 = inlined_call_operand.hbm [shape: f32[8,128], index: 3, kind: output, shape index: {}]
  %s4 = sld [smem:[#allocation0]]
  $region22: #{discriminator_forward.9} parent=0
    _
  %s6 = ssub.s32 1, %s4
  %s7 = scalar_select 0, %s6, %s4
  $region1: #{discriminator_forward.9} parent=0
    #allocation2 [shape = 'u8[4096]{0}', space=vmem, size = 0x1000, scoped, tag = 'output window, operand 0, single buffered']
    #allocation3 [shape = 's32[1]{0}', space=sflag, size = 0x4, scoped, tag = 'scoped memory for discriminator_forward.9']
    %8 = vsyncpa [#allocation3], 0
    // Predicated region
    $region2: #{discriminator_forward.9} parent=1 // pred_check
      _
    $region3: #{discriminator_forward.9} parent=1 // pred_check_branch
      %10 = sbr.rel (0) target = $region5
    $region4: #{discriminator_forward.9} parent=1 // pred_region
      _
    $region5: #{discriminator_forward.9} parent=1 // pred_fallthru
      _
    // Predicated region
    $region6: #{discriminator_forward.9} parent=1 // pred_check
      _
    $region7: #{discriminator_forward.9} parent=1 // pred_check_branch
      %12 = sbr.rel (0) target = $region9
    $region8: #{discriminator_forward.9} parent=1 // pred_region
      _
    $region9: #{discriminator_forward.9} parent=1 // pred_fallthru
      _
    // Predicated region
    $region10: #{discriminator_forward.9} parent=1 // pred_check
      _
    $region11: #{discriminator_forward.9} parent=1 // pred_check_branch
      %14 = sbr.rel (0) target = $region13
    $region12: #{discriminator_forward.9} parent=1 // pred_region
      _
    $region13: #{discriminator_forward.9} parent=1 // pred_fallthru
      _
    %v16 = vld [vmem:[%s0] sm:$0xff]
    %v17 = vld [vmem:[%s0 + $0x8] sm:$0xff]
    %v18 = vld [vmem:[%s0 + $0x10] sm:$0xff]
    %v19 = vld [vmem:[%s0 + $0x18] sm:$0xff]
    %v20 = vld [vmem:[%s0 + $0x20] sm:$0xff]
    %v21 = vld [vmem:[%s0 + $0x28] sm:$0xff]
    %v22 = vld [vmem:[%s0 + $0x30] sm:$0xff]
    %v23 = vld [vmem:[%s0 + $0x38] sm:$0xff]
    %v24 = vld [vmem:[%s1] sm:$0xf]
    %v25 = vld [vmem:[%s1 + $0x4] sm:$0xf]
    %v26 = vld [vmem:[%s1 + $0x8] sm:$0xf]
    %v27 = vld [vmem:[%s1 + $0xc] sm:$0xf]
    %v28 = vld [vmem:[%s1 + $0x10] sm:$0xf]
    %v29 = vld [vmem:[%s1 + $0x14] sm:$0xf]
    %v30 = vld [vmem:[%s1 + $0x18] sm:$0xf]
    %v31 = vld [vmem:[%s1 + $0x1c] sm:$0xf]
    %v32 = vld [vmem:[%s1 + $0x20] sm:$0xf]
    %v33 = vld [vmem:[%s1 + $0x24] sm:$0xf]
    %v34 = vld [vmem:[%s1 + $0x28] sm:$0xf]
    %v35 = vld [vmem:[%s1 + $0x2c] sm:$0xf]
    %v36 = vld [vmem:[%s1 + $0x30] sm:$0xf]
    %v37 = vld [vmem:[%s1 + $0x34] sm:$0xf]
    %v38 = vld [vmem:[%s1 + $0x38] sm:$0xf]
    %v39 = vld [vmem:[%s1 + $0x3c] sm:$0xf]
    %v40 = vld [vmem:[%s1 + $0x40] sm:$0xf]
    %v41 = vld [vmem:[%s1 + $0x44] sm:$0xf]
    %v42 = vld [vmem:[%s1 + $0x48] sm:$0xf]
    %v43 = vld [vmem:[%s1 + $0x4c] sm:$0xf]
    %v44 = vld [vmem:[%s1 + $0x50] sm:$0xf]
    %v45 = vld [vmem:[%s1 + $0x54] sm:$0xf]
    %v46 = vld [vmem:[%s1 + $0x58] sm:$0xf]
    %v47 = vld [vmem:[%s1 + $0x5c] sm:$0xf]
    %v48 = vld [vmem:[%s1 + $0x60] sm:$0xf]
    %v49 = vld [vmem:[%s1 + $0x64] sm:$0xf]
    %v50 = vld [vmem:[%s1 + $0x68] sm:$0xf]
    %v51 = vld [vmem:[%s1 + $0x6c] sm:$0xf]
    %v52 = vld [vmem:[%s1 + $0x70] sm:$0xf]
    %v53 = vld [vmem:[%s1 + $0x74] sm:$0xf]
    %v54 = vld [vmem:[%s1 + $0x78] sm:$0xf]
    %v55 = vld [vmem:[%s1 + $0x7c] sm:$0xf]
    %v56 = vld [vmem:[%s1 + $0x80] sm:$0xf]
    %v57 = vld [vmem:[%s1 + $0x84] sm:$0xf]
    %v58 = vld [vmem:[%s1 + $0x88] sm:$0xf]
    %v59 = vld [vmem:[%s1 + $0x8c] sm:$0xf]
    %v60 = vld [vmem:[%s1 + $0x90] sm:$0xf]
    %v61 = vld [vmem:[%s1 + $0x94] sm:$0xf]
    %v62 = vld [vmem:[%s1 + $0x98] sm:$0xf]
    %v63 = vld [vmem:[%s1 + $0x9c] sm:$0xf]
    %v64 = vld [vmem:[%s1 + $0xa0] sm:$0xf]
    %v65 = vld [vmem:[%s1 + $0xa4] sm:$0xf]
    %v66 = vld [vmem:[%s1 + $0xa8] sm:$0xf]
    %v67 = vld [vmem:[%s1 + $0xac] sm:$0xf]
    %v68 = vld [vmem:[%s1 + $0xb0] sm:$0xf]
    %v69 = vld [vmem:[%s1 + $0xb4] sm:$0xf]
    %v70 = vld [vmem:[%s1 + $0xb8] sm:$0xf]
    %v71 = vld [vmem:[%s1 + $0xbc] sm:$0xf]
    %v72 = vld [vmem:[%s1 + $0xc0] sm:$0xf]
    %v73 = vld [vmem:[%s1 + $0xc4] sm:$0xf]
    %v74 = vld [vmem:[%s1 + $0xc8] sm:$0xf]
    %v75 = vld [vmem:[%s1 + $0xcc] sm:$0xf]
    %v76 = vld [vmem:[%s1 + $0xd0] sm:$0xf]
    %v77 = vld [vmem:[%s1 + $0xd4] sm:$0xf]
    %v78 = vld [vmem:[%s1 + $0xd8] sm:$0xf]
    %v79 = vld [vmem:[%s1 + $0xdc] sm:$0xf]
    %v80 = vld [vmem:[%s1 + $0xe0] sm:$0xf]
    %v81 = vld [vmem:[%s1 + $0xe4] sm:$0xf]
    %v82 = vld [vmem:[%s1 + $0xe8] sm:$0xf]
    %v83 = vld [vmem:[%s1 + $0xec] sm:$0xf]
    %v84 = vld [vmem:[%s1 + $0xf0] sm:$0xf]
    %v85 = vld [vmem:[%s1 + $0xf4] sm:$0xf]
    %v86 = vld [vmem:[%s1 + $0xf8] sm:$0xf]
    %v87 = vld [vmem:[%s1 + $0xfc] sm:$0xf]
    %v88 = vld [vmem:[%s1 + $0x100] sm:$0xf]
    %v89 = vld [vmem:[%s1 + $0x104] sm:$0xf]
    %v90 = vld [vmem:[%s1 + $0x108] sm:$0xf]
    %v91 = vld [vmem:[%s1 + $0x10c] sm:$0xf]
    %v92 = vld [vmem:[%s1 + $0x110] sm:$0xf]
    %v93 = vld [vmem:[%s1 + $0x114] sm:$0xf]
    %v94 = vld [vmem:[%s1 + $0x118] sm:$0xf]
    %v95 = vld [vmem:[%s1 + $0x11c] sm:$0xf]
    %v96 = vld [vmem:[%s1 + $0x120] sm:$0xf]
    %v97 = vld [vmem:[%s1 + $0x124] sm:$0xf]
    %v98 = vld [vmem:[%s1 + $0x128] sm:$0xf]
    %v99 = vld [vmem:[%s1 + $0x12c] sm:$0xf]
    %v100 = vld [vmem:[%s1 + $0x130] sm:$0xf]
    %v101 = vld [vmem:[%s1 + $0x134] sm:$0xf]
    %v102 = vld [vmem:[%s1 + $0x138] sm:$0xf]
    %v103 = vld [vmem:[%s1 + $0x13c] sm:$0xf]
    %v104 = vld [vmem:[%s1 + $0x140] sm:$0xf]
    %v105 = vld [vmem:[%s1 + $0x144] sm:$0xf]
    %v106 = vld [vmem:[%s1 + $0x148] sm:$0xf]
    %v107 = vld [vmem:[%s1 + $0x14c] sm:$0xf]
    %v108 = vld [vmem:[%s1 + $0x150] sm:$0xf]
    %v109 = vld [vmem:[%s1 + $0x154] sm:$0xf]
    %v110 = vld [vmem:[%s1 + $0x158] sm:$0xf]
    %v111 = vld [vmem:[%s1 + $0x15c] sm:$0xf]
    %v112 = vld [vmem:[%s1 + $0x160] sm:$0xf]
    %v113 = vld [vmem:[%s1 + $0x164] sm:$0xf]
    %v114 = vld [vmem:[%s1 + $0x168] sm:$0xf]
    %v115 = vld [vmem:[%s1 + $0x16c] sm:$0xf]
    %v116 = vld [vmem:[%s1 + $0x170] sm:$0xf]
    %v117 = vld [vmem:[%s1 + $0x174] sm:$0xf]
    %v118 = vld [vmem:[%s1 + $0x178] sm:$0xf]
    %v119 = vld [vmem:[%s1 + $0x17c] sm:$0xf]
    %v120 = vld [vmem:[%s1 + $0x180] sm:$0xf]
    %v121 = vld [vmem:[%s1 + $0x184] sm:$0xf]
    %v122 = vld [vmem:[%s1 + $0x188] sm:$0xf]
    %v123 = vld [vmem:[%s1 + $0x18c] sm:$0xf]
    %v124 = vld [vmem:[%s1 + $0x190] sm:$0xf]
    %v125 = vld [vmem:[%s1 + $0x194] sm:$0xf]
    %v126 = vld [vmem:[%s1 + $0x198] sm:$0xf]
    %v127 = vld [vmem:[%s1 + $0x19c] sm:$0xf]
    %v128 = vld [vmem:[%s1 + $0x1a0] sm:$0xf]
    %v129 = vld [vmem:[%s1 + $0x1a4] sm:$0xf]
    %v130 = vld [vmem:[%s1 + $0x1a8] sm:$0xf]
    %v131 = vld [vmem:[%s1 + $0x1ac] sm:$0xf]
    %v132 = vld [vmem:[%s1 + $0x1b0] sm:$0xf]
    %v133 = vld [vmem:[%s1 + $0x1b4] sm:$0xf]
    %v134 = vld [vmem:[%s1 + $0x1b8] sm:$0xf]
    %v135 = vld [vmem:[%s1 + $0x1bc] sm:$0xf]
    %v136 = vld [vmem:[%s1 + $0x1c0] sm:$0xf]
    %v137 = vld [vmem:[%s1 + $0x1c4] sm:$0xf]
    %v138 = vld [vmem:[%s1 + $0x1c8] sm:$0xf]
    %v139 = vld [vmem:[%s1 + $0x1cc] sm:$0xf]
    %v140 = vld [vmem:[%s1 + $0x1d0] sm:$0xf]
    %v141 = vld [vmem:[%s1 + $0x1d4] sm:$0xf]
    %v142 = vld [vmem:[%s1 + $0x1d8] sm:$0xf]
    %v143 = vld [vmem:[%s1 + $0x1dc] sm:$0xf]
    %v144 = vld [vmem:[%s1 + $0x1e0] sm:$0xf]
    %v145 = vld [vmem:[%s1 + $0x1e4] sm:$0xf]
    %v146 = vld [vmem:[%s1 + $0x1e8] sm:$0xf]
    %v147 = vld [vmem:[%s1 + $0x1ec] sm:$0xf]
    %v148 = vld [vmem:[%s1 + $0x1f0] sm:$0xf]
    %v149 = vld [vmem:[%s1 + $0x1f4] sm:$0xf]
    %v150 = vld [vmem:[%s1 + $0x1f8] sm:$0xf]
    %v151 = vld [vmem:[%s1 + $0x1fc] sm:$0xf]
    %v152 = vld [vmem:[%s1 + $0x200] sm:$0xf]
    %v153 = vld [vmem:[%s1 + $0x204] sm:$0xf]
    %v154 = vld [vmem:[%s1 + $0x208] sm:$0xf]
    %v155 = vld [vmem:[%s1 + $0x20c] sm:$0xf]
    %v156 = vld [vmem:[%s1 + $0x210] sm:$0xf]
    %v157 = vld [vmem:[%s1 + $0x214] sm:$0xf]
    %v158 = vld [vmem:[%s1 + $0x218] sm:$0xf]
    %v159 = vld [vmem:[%s1 + $0x21c] sm:$0xf]
    %v160 = vld [vmem:[%s1 + $0x220] sm:$0xf]
    %v161 = vld [vmem:[%s1 + $0x224] sm:$0xf]
    %v162 = vld [vmem:[%s1 + $0x228] sm:$0xf]
    %v163 = vld [vmem:[%s1 + $0x22c] sm:$0xf]
    %v164 = vld [vmem:[%s1 + $0x230] sm:$0xf]
    %v165 = vld [vmem:[%s1 + $0x234] sm:$0xf]
    %v166 = vld [vmem:[%s1 + $0x238] sm:$0xf]
    %v167 = vld [vmem:[%s1 + $0x23c] sm:$0xf]
    %v168 = vld [vmem:[%s1 + $0x240] sm:$0xf]
    %v169 = vld [vmem:[%s1 + $0x244] sm:$0xf]
    %v170 = vld [vmem:[%s1 + $0x248] sm:$0xf]
    %v171 = vld [vmem:[%s1 + $0x24c] sm:$0xf]
    %v172 = vld [vmem:[%s1 + $0x250] sm:$0xf]
    %v173 = vld [vmem:[%s1 + $0x254] sm:$0xf]
    %v174 = vld [vmem:[%s1 + $0x258] sm:$0xf]
    %v175 = vld [vmem:[%s1 + $0x25c] sm:$0xf]
    %v176 = vld [vmem:[%s1 + $0x260] sm:$0xf]
    %v177 = vld [vmem:[%s1 + $0x264] sm:$0xf]
    %v178 = vld [vmem:[%s1 + $0x268] sm:$0xf]
    %v179 = vld [vmem:[%s1 + $0x26c] sm:$0xf]
    %v180 = vld [vmem:[%s1 + $0x270] sm:$0xf]
    %v181 = vld [vmem:[%s1 + $0x274] sm:$0xf]
    %v182 = vld [vmem:[%s1 + $0x278] sm:$0xf]
    %v183 = vld [vmem:[%s1 + $0x27c] sm:$0xf]
    %v184 = vld [vmem:[%s1 + $0x280] sm:$0xf]
    %v185 = vld [vmem:[%s1 + $0x284] sm:$0xf]
    %v186 = vld [vmem:[%s1 + $0x288] sm:$0xf]
    %v187 = vld [vmem:[%s1 + $0x28c] sm:$0xf]
    %v188 = vld [vmem:[%s1 + $0x290] sm:$0xf]
    %v189 = vld [vmem:[%s1 + $0x294] sm:$0xf]
    %v190 = vld [vmem:[%s1 + $0x298] sm:$0xf]
    %v191 = vld [vmem:[%s1 + $0x29c] sm:$0xf]
    %v192 = vld [vmem:[%s1 + $0x2a0] sm:$0xf]
    %v193 = vld [vmem:[%s1 + $0x2a4] sm:$0xf]
    %v194 = vld [vmem:[%s1 + $0x2a8] sm:$0xf]
    %v195 = vld [vmem:[%s1 + $0x2ac] sm:$0xf]
    %v196 = vld [vmem:[%s1 + $0x2b0] sm:$0xf]
    %v197 = vld [vmem:[%s1 + $0x2b4] sm:$0xf]
    %v198 = vld [vmem:[%s1 + $0x2b8] sm:$0xf]
    %v199 = vld [vmem:[%s1 + $0x2bc] sm:$0xf]
    %v200 = vld [vmem:[%s1 + $0x2c0] sm:$0xf]
    %v201 = vld [vmem:[%s1 + $0x2c4] sm:$0xf]
    %v202 = vld [vmem:[%s1 + $0x2c8] sm:$0xf]
    %v203 = vld [vmem:[%s1 + $0x2cc] sm:$0xf]
    %v204 = vld [vmem:[%s1 + $0x2d0] sm:$0xf]
    %v205 = vld [vmem:[%s1 + $0x2d4] sm:$0xf]
    %v206 = vld [vmem:[%s1 + $0x2d8] sm:$0xf]
    %v207 = vld [vmem:[%s1 + $0x2dc] sm:$0xf]
    %v208 = vld [vmem:[%s1 + $0x2e0] sm:$0xf]
    %v209 = vld [vmem:[%s1 + $0x2e4] sm:$0xf]
    %v210 = vld [vmem:[%s1 + $0x2e8] sm:$0xf]
    %v211 = vld [vmem:[%s1 + $0x2ec] sm:$0xf]
    %v212 = vld [vmem:[%s1 + $0x2f0] sm:$0xf]
    %v213 = vld [vmem:[%s1 + $0x2f4] sm:$0xf]
    %v214 = vld [vmem:[%s1 + $0x2f8] sm:$0xf]
    %v215 = vld [vmem:[%s1 + $0x2fc] sm:$0xf]
    %v216 = vld [vmem:[%s1 + $0x300] sm:$0xf]
    %v217 = vld [vmem:[%s1 + $0x304] sm:$0xf]
    %v218 = vld [vmem:[%s1 + $0x308] sm:$0xf]
    %v219 = vld [vmem:[%s1 + $0x30c] sm:$0xf]
    %v220 = vld [vmem:[%s1 + $0x310] sm:$0xf]
    %v221 = vld [vmem:[%s1 + $0x314] sm:$0xf]
    %v222 = vld [vmem:[%s1 + $0x318] sm:$0xf]
    %v223 = vld [vmem:[%s1 + $0x31c] sm:$0xf]
    %v224 = vld [vmem:[%s1 + $0x320] sm:$0xf]
    %v225 = vld [vmem:[%s1 + $0x324] sm:$0xf]
    %v226 = vld [vmem:[%s1 + $0x328] sm:$0xf]
    %v227 = vld [vmem:[%s1 + $0x32c] sm:$0xf]
    %v228 = vld [vmem:[%s1 + $0x330] sm:$0xf]
    %v229 = vld [vmem:[%s1 + $0x334] sm:$0xf]
    %v230 = vld [vmem:[%s1 + $0x338] sm:$0xf]
    %v231 = vld [vmem:[%s1 + $0x33c] sm:$0xf]
    %v232 = vld [vmem:[%s1 + $0x340] sm:$0xf]
    %v233 = vld [vmem:[%s1 + $0x344] sm:$0xf]
    %v234 = vld [vmem:[%s1 + $0x348] sm:$0xf]
    %v235 = vld [vmem:[%s1 + $0x34c] sm:$0xf]
    %v236 = vld [vmem:[%s1 + $0x350] sm:$0xf]
    %v237 = vld [vmem:[%s1 + $0x354] sm:$0xf]
    %v238 = vld [vmem:[%s1 + $0x358] sm:$0xf]
    %v239 = vld [vmem:[%s1 + $0x35c] sm:$0xf]
    %v240 = vld [vmem:[%s1 + $0x360] sm:$0xf]
    %v241 = vld [vmem:[%s1 + $0x364] sm:$0xf]
    %v242 = vld [vmem:[%s1 + $0x368] sm:$0xf]
    %v243 = vld [vmem:[%s1 + $0x36c] sm:$0xf]
    %v244 = vld [vmem:[%s1 + $0x370] sm:$0xf]
    %v245 = vld [vmem:[%s1 + $0x374] sm:$0xf]
    %v246 = vld [vmem:[%s1 + $0x378] sm:$0xf]
    %v247 = vld [vmem:[%s1 + $0x37c] sm:$0xf]
    %v248 = vld [vmem:[%s1 + $0x380] sm:$0xf]
    %v249 = vld [vmem:[%s1 + $0x384] sm:$0xf]
    %v250 = vld [vmem:[%s1 + $0x388] sm:$0xf]
    %v251 = vld [vmem:[%s1 + $0x38c] sm:$0xf]
    %v252 = vld [vmem:[%s1 + $0x390] sm:$0xf]
    %v253 = vld [vmem:[%s1 + $0x394] sm:$0xf]
    %v254 = vld [vmem:[%s1 + $0x398] sm:$0xf]
    %v255 = vld [vmem:[%s1 + $0x39c] sm:$0xf]
    %v256 = vld [vmem:[%s1 + $0x3a0] sm:$0xf]
    %v257 = vld [vmem:[%s1 + $0x3a4] sm:$0xf]
    %v258 = vld [vmem:[%s1 + $0x3a8] sm:$0xf]
    %v259 = vld [vmem:[%s1 + $0x3ac] sm:$0xf]
    %v260 = vld [vmem:[%s1 + $0x3b0] sm:$0xf]
    %v261 = vld [vmem:[%s1 + $0x3b4] sm:$0xf]
    %v262 = vld [vmem:[%s1 + $0x3b8] sm:$0xf]
    %v263 = vld [vmem:[%s1 + $0x3bc] sm:$0xf]
    %v264 = vld [vmem:[%s1 + $0x3c0] sm:$0xf]
    %v265 = vld [vmem:[%s1 + $0x3c4] sm:$0xf]
    %v266 = vld [vmem:[%s1 + $0x3c8] sm:$0xf]
    %v267 = vld [vmem:[%s1 + $0x3cc] sm:$0xf]
    %v268 = vld [vmem:[%s1 + $0x3d0] sm:$0xf]
    %v269 = vld [vmem:[%s1 + $0x3d4] sm:$0xf]
    %v270 = vld [vmem:[%s1 + $0x3d8] sm:$0xf]
    %v271 = vld [vmem:[%s1 + $0x3dc] sm:$0xf]
    %v272 = vld [vmem:[%s1 + $0x3e0] sm:$0xf]
    %v273 = vld [vmem:[%s1 + $0x3e4] sm:$0xf]
    %v274 = vld [vmem:[%s1 + $0x3e8] sm:$0xf]
    %v275 = vld [vmem:[%s1 + $0x3ec] sm:$0xf]
    %v276 = vld [vmem:[%s1 + $0x3f0] sm:$0xf]
    %v277 = vld [vmem:[%s1 + $0x3f4] sm:$0xf]
    %v278 = vld [vmem:[%s1 + $0x3f8] sm:$0xf]
    %v279 = vld [vmem:[%s1 + $0x3fc] sm:$0xf]
    %v280 = vld [vmem:[%s2] sm:$0x1]
    %v282 = vlaneseq
    %v283 = vshrl.u32 %v282, 7
    %v284 = vsub.s32 0, %v283
    %v285 = vrot.slane %v280, %v284
    %v295 = vunpack.c.l.b16 %v16
    %v296 = vunpack.c.h.b16 %v16
    %v297 = vunpack.c.l.b16 %v17
    %v298 = vunpack.c.h.b16 %v17
    %v299 = vunpack.c.l.b16 %v18
    %v300 = vunpack.c.h.b16 %v18
    %v301 = vunpack.c.l.b16 %v19
    %v302 = vunpack.c.h.b16 %v19
    %v303 = vunpack.c.l.b16 %v20
    %v304 = vunpack.c.h.b16 %v20
    %v305 = vunpack.c.l.b16 %v21
    %v306 = vunpack.c.h.b16 %v21
    %v307 = vunpack.c.l.b16 %v22
    %v308 = vunpack.c.h.b16 %v22
    %v309 = vunpack.c.l.b16 %v23
    %v310 = vunpack.c.h.b16 %v23
    %v311 = vpack.c.b16 %v295, %v295
    %v312 = vpack.c.b16 %v296, %v296
    %v313 = vpack.c.b16 %v297, %v297
    %v314 = vpack.c.b16 %v298, %v298
    %v315 = vpack.c.b16 %v299, %v299
    %v316 = vpack.c.b16 %v300, %v300
    %v317 = vpack.c.b16 %v301, %v301
    %v318 = vpack.c.b16 %v302, %v302
    %v319 = vpack.c.b16 %v303, %v303
    %v320 = vpack.c.b16 %v304, %v304
    %v321 = vpack.c.b16 %v305, %v305
    %v322 = vpack.c.b16 %v306, %v306
    %v323 = vpack.c.b16 %v307, %v307
    %v324 = vpack.c.b16 %v308, %v308
    %v325 = vpack.c.b16 %v309, %v309
    %v326 = vpack.c.b16 %v310, %v310
    %v599 = vunpack.c.l.b16 %v24
    %v600 = vunpack.c.l.b16 %v25
    %v601 = vunpack.c.l.b16 %v26
    %v602 = vunpack.c.l.b16 %v27
    %v603 = vunpack.c.l.b16 %v28
    %v604 = vunpack.c.l.b16 %v29
    %v605 = vunpack.c.l.b16 %v30
    %v606 = vunpack.c.l.b16 %v31
    %v607 = vunpack.c.l.b16 %v32
    %v608 = vunpack.c.l.b16 %v33
    %v609 = vunpack.c.l.b16 %v34
    %v610 = vunpack.c.l.b16 %v35
    %v611 = vunpack.c.l.b16 %v36
    %v612 = vunpack.c.l.b16 %v37
    %v613 = vunpack.c.l.b16 %v38
    %v614 = vunpack.c.l.b16 %v39
    %v615 = vunpack.c.l.b16 %v40
    %v616 = vunpack.c.l.b16 %v41
    %v617 = vunpack.c.l.b16 %v42
    %v618 = vunpack.c.l.b16 %v43
    %v619 = vunpack.c.l.b16 %v44
    %v620 = vunpack.c.l.b16 %v45
    %v621 = vunpack.c.l.b16 %v46
    %v622 = vunpack.c.l.b16 %v47
    %v623 = vunpack.c.l.b16 %v48
    %v624 = vunpack.c.l.b16 %v49
    %v625 = vunpack.c.l.b16 %v50
    %v626 = vunpack.c.l.b16 %v51
    %v627 = vunpack.c.l.b16 %v52
    %v628 = vunpack.c.l.b16 %v53
    %v629 = vunpack.c.l.b16 %v54
    %v630 = vunpack.c.l.b16 %v55
    %v631 = vunpack.c.l.b16 %v56
    %v632 = vunpack.c.l.b16 %v57
    %v633 = vunpack.c.l.b16 %v58
    %v634 = vunpack.c.l.b16 %v59
    %v635 = vunpack.c.l.b16 %v60
    %v636 = vunpack.c.l.b16 %v61
    %v637 = vunpack.c.l.b16 %v62
    %v638 = vunpack.c.l.b16 %v63
    %v639 = vunpack.c.l.b16 %v64
    %v640 = vunpack.c.l.b16 %v65
    %v641 = vunpack.c.l.b16 %v66
    %v642 = vunpack.c.l.b16 %v67
    %v643 = vunpack.c.l.b16 %v68
    %v644 = vunpack.c.l.b16 %v69
    %v645 = vunpack.c.l.b16 %v70
    %v646 = vunpack.c.l.b16 %v71
    %v647 = vunpack.c.l.b16 %v72
    %v648 = vunpack.c.l.b16 %v73
    %v649 = vunpack.c.l.b16 %v74
    %v650 = vunpack.c.l.b16 %v75
    %v651 = vunpack.c.l.b16 %v76
    %v652 = vunpack.c.l.b16 %v77
    %v653 = vunpack.c.l.b16 %v78
    %v654 = vunpack.c.l.b16 %v79
    %v655 = vunpack.c.l.b16 %v80
    %v656 = vunpack.c.l.b16 %v81
    %v657 = vunpack.c.l.b16 %v82
    %v658 = vunpack.c.l.b16 %v83
    %v659 = vunpack.c.l.b16 %v84
    %v660 = vunpack.c.l.b16 %v85
    %v661 = vunpack.c.l.b16 %v86
    %v662 = vunpack.c.l.b16 %v87
    %v663 = vunpack.c.l.b16 %v88
    %v664 = vunpack.c.l.b16 %v89
    %v665 = vunpack.c.l.b16 %v90
    %v666 = vunpack.c.l.b16 %v91
    %v667 = vunpack.c.l.b16 %v92
    %v668 = vunpack.c.l.b16 %v93
    %v669 = vunpack.c.l.b16 %v94
    %v670 = vunpack.c.l.b16 %v95
    %v671 = vunpack.c.l.b16 %v96
    %v672 = vunpack.c.l.b16 %v97
    %v673 = vunpack.c.l.b16 %v98
    %v674 = vunpack.c.l.b16 %v99
    %v675 = vunpack.c.l.b16 %v100
    %v676 = vunpack.c.l.b16 %v101
    %v677 = vunpack.c.l.b16 %v102
    %v678 = vunpack.c.l.b16 %v103
    %v679 = vunpack.c.l.b16 %v104
    %v680 = vunpack.c.l.b16 %v105
    %v681 = vunpack.c.l.b16 %v106
    %v682 = vunpack.c.l.b16 %v107
    %v683 = vunpack.c.l.b16 %v108
    %v684 = vunpack.c.l.b16 %v109
    %v685 = vunpack.c.l.b16 %v110
    %v686 = vunpack.c.l.b16 %v111
    %v687 = vunpack.c.l.b16 %v112
    %v688 = vunpack.c.l.b16 %v113
    %v689 = vunpack.c.l.b16 %v114
    %v690 = vunpack.c.l.b16 %v115
    %v691 = vunpack.c.l.b16 %v116
    %v692 = vunpack.c.l.b16 %v117
    %v693 = vunpack.c.l.b16 %v118
    %v694 = vunpack.c.l.b16 %v119
    %v695 = vunpack.c.l.b16 %v120
    %v696 = vunpack.c.l.b16 %v121
    %v697 = vunpack.c.l.b16 %v122
    %v698 = vunpack.c.l.b16 %v123
    %v699 = vunpack.c.l.b16 %v124
    %v700 = vunpack.c.l.b16 %v125
    %v701 = vunpack.c.l.b16 %v126
    %v702 = vunpack.c.l.b16 %v127
    %v703 = vunpack.c.l.b16 %v128
    %v704 = vunpack.c.l.b16 %v129
    %v705 = vunpack.c.l.b16 %v130
    %v706 = vunpack.c.l.b16 %v131
    %v707 = vunpack.c.l.b16 %v132
    %v708 = vunpack.c.l.b16 %v133
    %v709 = vunpack.c.l.b16 %v134
    %v710 = vunpack.c.l.b16 %v135
    %v711 = vunpack.c.l.b16 %v136
    %v712 = vunpack.c.l.b16 %v137
    %v713 = vunpack.c.l.b16 %v138
    %v714 = vunpack.c.l.b16 %v139
    %v715 = vunpack.c.l.b16 %v140
    %v716 = vunpack.c.l.b16 %v141
    %v717 = vunpack.c.l.b16 %v142
    %v718 = vunpack.c.l.b16 %v143
    %v719 = vunpack.c.l.b16 %v144
    %v720 = vunpack.c.l.b16 %v145
    %v721 = vunpack.c.l.b16 %v146
    %v722 = vunpack.c.l.b16 %v147
    %v723 = vunpack.c.l.b16 %v148
    %v724 = vunpack.c.l.b16 %v149
    %v725 = vunpack.c.l.b16 %v150
    %v726 = vunpack.c.l.b16 %v151
    %v727 = vunpack.c.l.b16 %v152
    %v728 = vunpack.c.l.b16 %v153
    %v729 = vunpack.c.l.b16 %v154
    %v730 = vunpack.c.l.b16 %v155
    %v731 = vunpack.c.l.b16 %v156
    %v732 = vunpack.c.l.b16 %v157
    %v733 = vunpack.c.l.b16 %v158
    %v734 = vunpack.c.l.b16 %v159
    %v735 = vunpack.c.l.b16 %v160
    %v736 = vunpack.c.l.b16 %v161
    %v737 = vunpack.c.l.b16 %v162
    %v738 = vunpack.c.l.b16 %v163
    %v739 = vunpack.c.l.b16 %v164
    %v740 = vunpack.c.l.b16 %v165
    %v741 = vunpack.c.l.b16 %v166
    %v742 = vunpack.c.l.b16 %v167
    %v743 = vunpack.c.l.b16 %v168
    %v744 = vunpack.c.l.b16 %v169
    %v745 = vunpack.c.l.b16 %v170
    %v746 = vunpack.c.l.b16 %v171
    %v747 = vunpack.c.l.b16 %v172
    %v748 = vunpack.c.l.b16 %v173
    %v749 = vunpack.c.l.b16 %v174
    %v750 = vunpack.c.l.b16 %v175
    %v751 = vunpack.c.l.b16 %v176
    %v752 = vunpack.c.l.b16 %v177
    %v753 = vunpack.c.l.b16 %v178
    %v754 = vunpack.c.l.b16 %v179
    %v755 = vunpack.c.l.b16 %v180
    %v756 = vunpack.c.l.b16 %v181
    %v757 = vunpack.c.l.b16 %v182
    %v758 = vunpack.c.l.b16 %v183
    %v759 = vunpack.c.l.b16 %v184
    %v760 = vunpack.c.l.b16 %v185
    %v761 = vunpack.c.l.b16 %v186
    %v762 = vunpack.c.l.b16 %v187
    %v763 = vunpack.c.l.b16 %v188
    %v764 = vunpack.c.l.b16 %v189
    %v765 = vunpack.c.l.b16 %v190
    %v766 = vunpack.c.l.b16 %v191
    %v767 = vunpack.c.l.b16 %v192
    %v768 = vunpack.c.l.b16 %v193
    %v769 = vunpack.c.l.b16 %v194
    %v770 = vunpack.c.l.b16 %v195
    %v771 = vunpack.c.l.b16 %v196
    %v772 = vunpack.c.l.b16 %v197
    %v773 = vunpack.c.l.b16 %v198
    %v774 = vunpack.c.l.b16 %v199
    %v775 = vunpack.c.l.b16 %v200
    %v776 = vunpack.c.l.b16 %v201
    %v777 = vunpack.c.l.b16 %v202
    %v778 = vunpack.c.l.b16 %v203
    %v779 = vunpack.c.l.b16 %v204
    %v780 = vunpack.c.l.b16 %v205
    %v781 = vunpack.c.l.b16 %v206
    %v782 = vunpack.c.l.b16 %v207
    %v783 = vunpack.c.l.b16 %v208
    %v784 = vunpack.c.l.b16 %v209
    %v785 = vunpack.c.l.b16 %v210
    %v786 = vunpack.c.l.b16 %v211
    %v787 = vunpack.c.l.b16 %v212
    %v788 = vunpack.c.l.b16 %v213
    %v789 = vunpack.c.l.b16 %v214
    %v790 = vunpack.c.l.b16 %v215
    %v791 = vunpack.c.l.b16 %v216
    %v792 = vunpack.c.l.b16 %v217
    %v793 = vunpack.c.l.b16 %v218
    %v794 = vunpack.c.l.b16 %v219
    %v795 = vunpack.c.l.b16 %v220
    %v796 = vunpack.c.l.b16 %v221
    %v797 = vunpack.c.l.b16 %v222
    %v798 = vunpack.c.l.b16 %v223
    %v799 = vunpack.c.l.b16 %v224
    %v800 = vunpack.c.l.b16 %v225
    %v801 = vunpack.c.l.b16 %v226
    %v802 = vunpack.c.l.b16 %v227
    %v803 = vunpack.c.l.b16 %v228
    %v804 = vunpack.c.l.b16 %v229
    %v805 = vunpack.c.l.b16 %v230
    %v806 = vunpack.c.l.b16 %v231
    %v807 = vunpack.c.l.b16 %v232
    %v808 = vunpack.c.l.b16 %v233
    %v809 = vunpack.c.l.b16 %v234
    %v810 = vunpack.c.l.b16 %v235
    %v811 = vunpack.c.l.b16 %v236
    %v812 = vunpack.c.l.b16 %v237
    %v813 = vunpack.c.l.b16 %v238
    %v814 = vunpack.c.l.b16 %v239
    %v815 = vunpack.c.l.b16 %v240
    %v816 = vunpack.c.l.b16 %v241
    %v817 = vunpack.c.l.b16 %v242
    %v818 = vunpack.c.l.b16 %v243
    %v819 = vunpack.c.l.b16 %v244
    %v820 = vunpack.c.l.b16 %v245
    %v821 = vunpack.c.l.b16 %v246
    %v822 = vunpack.c.l.b16 %v247
    %v823 = vunpack.c.l.b16 %v248
    %v824 = vunpack.c.l.b16 %v249
    %v825 = vunpack.c.l.b16 %v250
    %v826 = vunpack.c.l.b16 %v251
    %v827 = vunpack.c.l.b16 %v252
    %v828 = vunpack.c.l.b16 %v253
    %v829 = vunpack.c.l.b16 %v254
    %v830 = vunpack.c.l.b16 %v255
    %v831 = vunpack.c.l.b16 %v256
    %v832 = vunpack.c.l.b16 %v257
    %v833 = vunpack.c.l.b16 %v258
    %v834 = vunpack.c.l.b16 %v259
    %v835 = vunpack.c.l.b16 %v260
    %v836 = vunpack.c.l.b16 %v261
    %v837 = vunpack.c.l.b16 %v262
    %v838 = vunpack.c.l.b16 %v263
    %v839 = vunpack.c.l.b16 %v264
    %v840 = vunpack.c.l.b16 %v265
    %v841 = vunpack.c.l.b16 %v266
    %v842 = vunpack.c.l.b16 %v267
    %v843 = vunpack.c.l.b16 %v268
    %v844 = vunpack.c.l.b16 %v269
    %v845 = vunpack.c.l.b16 %v270
    %v846 = vunpack.c.l.b16 %v271
    %v847 = vunpack.c.l.b16 %v272
    %v848 = vunpack.c.l.b16 %v273
    %v849 = vunpack.c.l.b16 %v274
    %v850 = vunpack.c.l.b16 %v275
    %v851 = vunpack.c.l.b16 %v276
    %v852 = vunpack.c.l.b16 %v277
    %v853 = vunpack.c.l.b16 %v278
    %v854 = vunpack.c.l.b16 %v279
    %v855 = vpack.c.b16 %v600, %v599
    %v856 = vpack.c.b16 %v602, %v601
    %v857 = vpack.c.b16 %v604, %v603
    %v858 = vpack.c.b16 %v606, %v605
    %v859 = vpack.c.b16 %v608, %v607
    %v860 = vpack.c.b16 %v610, %v609
    %v861 = vpack.c.b16 %v612, %v611
    %v862 = vpack.c.b16 %v614, %v613
    %v863 = vpack.c.b16 %v616, %v615
    %v864 = vpack.c.b16 %v618, %v617
    %v865 = vpack.c.b16 %v620, %v619
    %v866 = vpack.c.b16 %v622, %v621
    %v867 = vpack.c.b16 %v624, %v623
    %v868 = vpack.c.b16 %v626, %v625
    %v869 = vpack.c.b16 %v628, %v627
    %v870 = vpack.c.b16 %v630, %v629
    %v871 = vpack.c.b16 %v632, %v631
    %v872 = vpack.c.b16 %v634, %v633
    %v873 = vpack.c.b16 %v636, %v635
    %v874 = vpack.c.b16 %v638, %v637
    %v875 = vpack.c.b16 %v640, %v639
    %v876 = vpack.c.b16 %v642, %v641
    %v877 = vpack.c.b16 %v644, %v643
    %v878 = vpack.c.b16 %v646, %v645
    %v879 = vpack.c.b16 %v648, %v647
    %v880 = vpack.c.b16 %v650, %v649
    %v881 = vpack.c.b16 %v652, %v651
    %v882 = vpack.c.b16 %v654, %v653
    %v883 = vpack.c.b16 %v656, %v655
    %v884 = vpack.c.b16 %v658, %v657
    %v885 = vpack.c.b16 %v660, %v659
    %v886 = vpack.c.b16 %v662, %v661
    %v887 = vpack.c.b16 %v664, %v663
    %v888 = vpack.c.b16 %v666, %v665
    %v889 = vpack.c.b16 %v668, %v667
    %v890 = vpack.c.b16 %v670, %v669
    %v891 = vpack.c.b16 %v672, %v671
    %v892 = vpack.c.b16 %v674, %v673
    %v893 = vpack.c.b16 %v676, %v675
    %v894 = vpack.c.b16 %v678, %v677
    %v895 = vpack.c.b16 %v680, %v679
    %v896 = vpack.c.b16 %v682, %v681
    %v897 = vpack.c.b16 %v684, %v683
    %v898 = vpack.c.b16 %v686, %v685
    %v899 = vpack.c.b16 %v688, %v687
    %v900 = vpack.c.b16 %v690, %v689
    %v901 = vpack.c.b16 %v692, %v691
    %v902 = vpack.c.b16 %v694, %v693
    %v903 = vpack.c.b16 %v696, %v695
    %v904 = vpack.c.b16 %v698, %v697
    %v905 = vpack.c.b16 %v700, %v699
    %v906 = vpack.c.b16 %v702, %v701
    %v907 = vpack.c.b16 %v704, %v703
    %v908 = vpack.c.b16 %v706, %v705
    %v909 = vpack.c.b16 %v708, %v707
    %v910 = vpack.c.b16 %v710, %v709
    %v911 = vpack.c.b16 %v712, %v711
    %v912 = vpack.c.b16 %v714, %v713
    %v913 = vpack.c.b16 %v716, %v715
    %v914 = vpack.c.b16 %v718, %v717
    %v915 = vpack.c.b16 %v720, %v719
    %v916 = vpack.c.b16 %v722, %v721
    %v917 = vpack.c.b16 %v724, %v723
    %v918 = vpack.c.b16 %v726, %v725
    %v919 = vpack.c.b16 %v728, %v727
    %v920 = vpack.c.b16 %v730, %v729
    %v921 = vpack.c.b16 %v732, %v731
    %v922 = vpack.c.b16 %v734, %v733
    %v923 = vpack.c.b16 %v736, %v735
    %v924 = vpack.c.b16 %v738, %v737
    %v925 = vpack.c.b16 %v740, %v739
    %v926 = vpack.c.b16 %v742, %v741
    %v927 = vpack.c.b16 %v744, %v743
    %v928 = vpack.c.b16 %v746, %v745
    %v929 = vpack.c.b16 %v748, %v747
    %v930 = vpack.c.b16 %v750, %v749
    %v931 = vpack.c.b16 %v752, %v751
    %v932 = vpack.c.b16 %v754, %v753
    %v933 = vpack.c.b16 %v756, %v755
    %v934 = vpack.c.b16 %v758, %v757
    %v935 = vpack.c.b16 %v760, %v759
    %v936 = vpack.c.b16 %v762, %v761
    %v937 = vpack.c.b16 %v764, %v763
    %v938 = vpack.c.b16 %v766, %v765
    %v939 = vpack.c.b16 %v768, %v767
    %v940 = vpack.c.b16 %v770, %v769
    %v941 = vpack.c.b16 %v772, %v771
    %v942 = vpack.c.b16 %v774, %v773
    %v943 = vpack.c.b16 %v776, %v775
    %v944 = vpack.c.b16 %v778, %v777
    %v945 = vpack.c.b16 %v780, %v779
    %v946 = vpack.c.b16 %v782, %v781
    %v947 = vpack.c.b16 %v784, %v783
    %v948 = vpack.c.b16 %v786, %v785
    %v949 = vpack.c.b16 %v788, %v787
    %v950 = vpack.c.b16 %v790, %v789
    %v951 = vpack.c.b16 %v792, %v791
    %v952 = vpack.c.b16 %v794, %v793
    %v953 = vpack.c.b16 %v796, %v795
    %v954 = vpack.c.b16 %v798, %v797
    %v955 = vpack.c.b16 %v800, %v799
    %v956 = vpack.c.b16 %v802, %v801
    %v957 = vpack.c.b16 %v804, %v803
    %v958 = vpack.c.b16 %v806, %v805
    %v959 = vpack.c.b16 %v808, %v807
    %v960 = vpack.c.b16 %v810, %v809
    %v961 = vpack.c.b16 %v812, %v811
    %v962 = vpack.c.b16 %v814, %v813
    %v963 = vpack.c.b16 %v816, %v815
    %v964 = vpack.c.b16 %v818, %v817
    %v965 = vpack.c.b16 %v820, %v819
    %v966 = vpack.c.b16 %v822, %v821
    %v967 = vpack.c.b16 %v824, %v823
    %v968 = vpack.c.b16 %v826, %v825
    %v969 = vpack.c.b16 %v828, %v827
    %v970 = vpack.c.b16 %v830, %v829
    %v971 = vpack.c.b16 %v832, %v831
    %v972 = vpack.c.b16 %v834, %v833
    %v973 = vpack.c.b16 %v836, %v835
    %v974 = vpack.c.b16 %v838, %v837
    %v975 = vpack.c.b16 %v840, %v839
    %v976 = vpack.c.b16 %v842, %v841
    %v977 = vpack.c.b16 %v844, %v843
    %v978 = vpack.c.b16 %v846, %v845
    %v979 = vpack.c.b16 %v848, %v847
    %v980 = vpack.c.b16 %v850, %v849
    %v981 = vpack.c.b16 %v852, %v851
    %v982 = vpack.c.b16 %v854, %v853
    %1111 = vmatprep.subr.bf16.mxu0 0
    %1112 = vmatpush1.bf16.msra.mxu0 %v862
    %1113 = vmatprep.subr.bf16.mxu0 0
    %1114 = vmatpush1.bf16.msra.mxu0 %v861
    %1115 = vmatprep.subr.bf16.mxu0 0
    %1116 = vmatpush1.bf16.msra.mxu0 %v860
    %1117 = vmatprep.subr.bf16.mxu0 0
    %1118 = vmatpush1.bf16.msra.mxu0 %v859
    %1119 = vmatprep.subr.bf16.mxu0 0
    %1120 = vmatpush1.bf16.msra.mxu0 %v858
    %1121 = vmatprep.subr.bf16.mxu0 0
    %1122 = vmatpush1.bf16.msra.mxu0 %v857
    %1123 = vmatprep.subr.bf16.mxu0 0
    %1124 = vmatpush1.bf16.msra.mxu0 %v856
    %1125 = vmatprep.subr.bf16.mxu0 0
    %1126 = vmatpush1.bf16.msra.mxu0 %v855
    %1127 = vmatprep.subr.bf16.mxu0 0
    %1128 = vmatpush2.bf16.msra.mxu0 %v870
    %1129 = vmatprep.subr.bf16.mxu0 0
    %1130 = vmatpush2.bf16.msra.mxu0 %v869
    %1131 = vmatprep.subr.bf16.mxu0 0
    %1132 = vmatpush2.bf16.msra.mxu0 %v868
    %1133 = vmatprep.subr.bf16.mxu0 0
    %1134 = vmatpush2.bf16.msra.mxu0 %v867
    %1135 = vmatprep.subr.bf16.mxu0 0
    %1136 = vmatpush2.bf16.msra.mxu0 %v866
    %1137 = vmatprep.subr.bf16.mxu0 0
    %1138 = vmatpush2.bf16.msra.mxu0 %v865
    %1139 = vmatprep.subr.bf16.mxu0 0
    %1140 = vmatpush2.bf16.msra.mxu0 %v864
    %1141 = vmatprep.subr.bf16.mxu0 0
    %1142 = vmatpush2.bf16.msra.mxu0 %v863
    %1143 = vmatprep.mubr.bf16.mxu0 %v312
    %1144 = vmatmul.mubr.bf16.gmra.mxu0 %v311
    %v1145 = vpop.f32.mrf.mxu0
    %v1146 = vadd.f32 %v285, %v1145
    %v1147 = vpop.f32.mrf.mxu0
    %v1148 = vpop.f32.mrf.mxu0
    %v1149 = vpop.f32.mrf.mxu0
    %1150 = vdwg.mxu0
    %1151 = vmatprep.subr.bf16.mxu0 0
    %1152 = vmatpush1.bf16.msra.mxu0 %v878
    %1153 = vmatprep.subr.bf16.mxu0 0
    %1154 = vmatpush1.bf16.msra.mxu0 %v877
    %1155 = vmatprep.subr.bf16.mxu0 0
    %1156 = vmatpush1.bf16.msra.mxu0 %v876
    %1157 = vmatprep.subr.bf16.mxu0 0
    %1158 = vmatpush1.bf16.msra.mxu0 %v875
    %1159 = vmatprep.subr.bf16.mxu0 0
    %1160 = vmatpush1.bf16.msra.mxu0 %v874
    %1161 = vmatprep.subr.bf16.mxu0 0
    %1162 = vmatpush1.bf16.msra.mxu0 %v873
    %1163 = vmatprep.subr.bf16.mxu0 0
    %1164 = vmatpush1.bf16.msra.mxu0 %v872
    %1165 = vmatprep.subr.bf16.mxu0 0
    %1166 = vmatpush1.bf16.msra.mxu0 %v871
    %1167 = vmatprep.subr.bf16.mxu0 0
    %1168 = vmatpush2.bf16.msra.mxu0 %v886
    %1169 = vmatprep.subr.bf16.mxu0 0
    %1170 = vmatpush2.bf16.msra.mxu0 %v885
    %1171 = vmatprep.subr.bf16.mxu0 0
    %1172 = vmatpush2.bf16.msra.mxu0 %v884
    %1173 = vmatprep.subr.bf16.mxu0 0
    %1174 = vmatpush2.bf16.msra.mxu0 %v883
    %1175 = vmatprep.subr.bf16.mxu0 0
    %1176 = vmatpush2.bf16.msra.mxu0 %v882
    %1177 = vmatprep.subr.bf16.mxu0 0
    %1178 = vmatpush2.bf16.msra.mxu0 %v881
    %1179 = vmatprep.subr.bf16.mxu0 0
    %1180 = vmatpush2.bf16.msra.mxu0 %v880
    %1181 = vmatprep.subr.bf16.mxu0 0
    %1182 = vmatpush2.bf16.msra.mxu0 %v879
    %1183 = vmatprep.mubr.bf16.mxu0 %v314
    %1184 = vmatmul.mubr.bf16.gmra.mxu0 %v313
    %v1185 = vpop.f32.mrf.mxu0
    %v1186 = vadd.f32 %v1146, %v1185
    %v1187 = vpop.f32.mrf.mxu0
    %v1188 = vpop.f32.mrf.mxu0
    %v1189 = vpop.f32.mrf.mxu0
    %1190 = vdwg.mxu0
    %1191 = vmatprep.subr.bf16.mxu0 0
    %1192 = vmatpush1.bf16.msra.mxu0 %v894
    %1193 = vmatprep.subr.bf16.mxu0 0
    %1194 = vmatpush1.bf16.msra.mxu0 %v893
    %1195 = vmatprep.subr.bf16.mxu0 0
    %1196 = vmatpush1.bf16.msra.mxu0 %v892
    %1197 = vmatprep.subr.bf16.mxu0 0
    %1198 = vmatpush1.bf16.msra.mxu0 %v891
    %1199 = vmatprep.subr.bf16.mxu0 0
    %1200 = vmatpush1.bf16.msra.mxu0 %v890
    %1201 = vmatprep.subr.bf16.mxu0 0
    %1202 = vmatpush1.bf16.msra.mxu0 %v889
    %1203 = vmatprep.subr.bf16.mxu0 0
    %1204 = vmatpush1.bf16.msra.mxu0 %v888
    %1205 = vmatprep.subr.bf16.mxu0 0
    %1206 = vmatpush1.bf16.msra.mxu0 %v887
    %1207 = vmatprep.subr.bf16.mxu0 0
    %1208 = vmatpush2.bf16.msra.mxu0 %v902
    %1209 = vmatprep.subr.bf16.mxu0 0
    %1210 = vmatpush2.bf16.msra.mxu0 %v901
    %1211 = vmatprep.subr.bf16.mxu0 0
    %1212 = vmatpush2.bf16.msra.mxu0 %v900
    %1213 = vmatprep.subr.bf16.mxu0 0
    %1214 = vmatpush2.bf16.msra.mxu0 %v899
    %1215 = vmatprep.subr.bf16.mxu0 0
    %1216 = vmatpush2.bf16.msra.mxu0 %v898
    %1217 = vmatprep.subr.bf16.mxu0 0
    %1218 = vmatpush2.bf16.msra.mxu0 %v897
    %1219 = vmatprep.subr.bf16.mxu0 0
    %1220 = vmatpush2.bf16.msra.mxu0 %v896
    %1221 = vmatprep.subr.bf16.mxu0 0
    %1222 = vmatpush2.bf16.msra.mxu0 %v895
    %1223 = vmatprep.mubr.bf16.mxu0 %v316
    %1224 = vmatmul.mubr.bf16.gmra.mxu0 %v315
    %v1225 = vpop.f32.mrf.mxu0
    %v1226 = vadd.f32 %v1186, %v1225
    %v1227 = vpop.f32.mrf.mxu0
    %v1228 = vpop.f32.mrf.mxu0
    %v1229 = vpop.f32.mrf.mxu0
    %1230 = vdwg.mxu0
    %1231 = vmatprep.subr.bf16.mxu0 0
    %1232 = vmatpush1.bf16.msra.mxu0 %v910
    %1233 = vmatprep.subr.bf16.mxu0 0
    %1234 = vmatpush1.bf16.msra.mxu0 %v909
    %1235 = vmatprep.subr.bf16.mxu0 0
    %1236 = vmatpush1.bf16.msra.mxu0 %v908
    %1237 = vmatprep.subr.bf16.mxu0 0
    %1238 = vmatpush1.bf16.msra.mxu0 %v907
    %1239 = vmatprep.subr.bf16.mxu0 0
    %1240 = vmatpush1.bf16.msra.mxu0 %v906
    %1241 = vmatprep.subr.bf16.mxu0 0
    %1242 = vmatpush1.bf16.msra.mxu0 %v905
    %1243 = vmatprep.subr.bf16.mxu0 0
    %1244 = vmatpush1.bf16.msra.mxu0 %v904
    %1245 = vmatprep.subr.bf16.mxu0 0
    %1246 = vmatpush1.bf16.msra.mxu0 %v903
    %1247 = vmatprep.subr.bf16.mxu0 0
    %1248 = vmatpush2.bf16.msra.mxu0 %v918
    %1249 = vmatprep.subr.bf16.mxu0 0
    %1250 = vmatpush2.bf16.msra.mxu0 %v917
    %1251 = vmatprep.subr.bf16.mxu0 0
    %1252 = vmatpush2.bf16.msra.mxu0 %v916
    %1253 = vmatprep.subr.bf16.mxu0 0
    %1254 = vmatpush2.bf16.msra.mxu0 %v915
    %1255 = vmatprep.subr.bf16.mxu0 0
    %1256 = vmatpush2.bf16.msra.mxu0 %v914
    %1257 = vmatprep.subr.bf16.mxu0 0
    %1258 = vmatpush2.bf16.msra.mxu0 %v913
    %1259 = vmatprep.subr.bf16.mxu0 0
    %1260 = vmatpush2.bf16.msra.mxu0 %v912
    %1261 = vmatprep.subr.bf16.mxu0 0
    %1262 = vmatpush2.bf16.msra.mxu0 %v911
    %1263 = vmatprep.mubr.bf16.mxu0 %v318
    %1264 = vmatmul.mubr.bf16.gmra.mxu0 %v317
    %v1265 = vpop.f32.mrf.mxu0
    %v1266 = vadd.f32 %v1226, %v1265
    %v1267 = vpop.f32.mrf.mxu0
    %v1268 = vpop.f32.mrf.mxu0
    %v1269 = vpop.f32.mrf.mxu0
    %1270 = vdwg.mxu0
    %1271 = vmatprep.subr.bf16.mxu0 0
    %1272 = vmatpush1.bf16.msra.mxu0 %v926
    %1273 = vmatprep.subr.bf16.mxu0 0
    %1274 = vmatpush1.bf16.msra.mxu0 %v925
    %1275 = vmatprep.subr.bf16.mxu0 0
    %1276 = vmatpush1.bf16.msra.mxu0 %v924
    %1277 = vmatprep.subr.bf16.mxu0 0
    %1278 = vmatpush1.bf16.msra.mxu0 %v923
    %1279 = vmatprep.subr.bf16.mxu0 0
    %1280 = vmatpush1.bf16.msra.mxu0 %v922
    %1281 = vmatprep.subr.bf16.mxu0 0
    %1282 = vmatpush1.bf16.msra.mxu0 %v921
    %1283 = vmatprep.subr.bf16.mxu0 0
    %1284 = vmatpush1.bf16.msra.mxu0 %v920
    %1285 = vmatprep.subr.bf16.mxu0 0
    %1286 = vmatpush1.bf16.msra.mxu0 %v919
    %1287 = vmatprep.subr.bf16.mxu0 0
    %1288 = vmatpush2.bf16.msra.mxu0 %v934
    %1289 = vmatprep.subr.bf16.mxu0 0
    %1290 = vmatpush2.bf16.msra.mxu0 %v933
    %1291 = vmatprep.subr.bf16.mxu0 0
    %1292 = vmatpush2.bf16.msra.mxu0 %v932
    %1293 = vmatprep.subr.bf16.mxu0 0
    %1294 = vmatpush2.bf16.msra.mxu0 %v931
    %1295 = vmatprep.subr.bf16.mxu0 0
    %1296 = vmatpush2.bf16.msra.mxu0 %v930
    %1297 = vmatprep.subr.bf16.mxu0 0
    %1298 = vmatpush2.bf16.msra.mxu0 %v929
    %1299 = vmatprep.subr.bf16.mxu0 0
    %1300 = vmatpush2.bf16.msra.mxu0 %v928
    %1301 = vmatprep.subr.bf16.mxu0 0
    %1302 = vmatpush2.bf16.msra.mxu0 %v927
    %1303 = vmatprep.mubr.bf16.mxu0 %v320
    %1304 = vmatmul.mubr.bf16.gmra.mxu0 %v319
    %v1305 = vpop.f32.mrf.mxu0
    %v1306 = vadd.f32 %v1266, %v1305
    %v1307 = vpop.f32.mrf.mxu0
    %v1308 = vpop.f32.mrf.mxu0
    %v1309 = vpop.f32.mrf.mxu0
    %1310 = vdwg.mxu0
    %1311 = vmatprep.subr.bf16.mxu0 0
    %1312 = vmatpush1.bf16.msra.mxu0 %v942
    %1313 = vmatprep.subr.bf16.mxu0 0
    %1314 = vmatpush1.bf16.msra.mxu0 %v941
    %1315 = vmatprep.subr.bf16.mxu0 0
    %1316 = vmatpush1.bf16.msra.mxu0 %v940
    %1317 = vmatprep.subr.bf16.mxu0 0
    %1318 = vmatpush1.bf16.msra.mxu0 %v939
    %1319 = vmatprep.subr.bf16.mxu0 0
    %1320 = vmatpush1.bf16.msra.mxu0 %v938
    %1321 = vmatprep.subr.bf16.mxu0 0
    %1322 = vmatpush1.bf16.msra.mxu0 %v937
    %1323 = vmatprep.subr.bf16.mxu0 0
    %1324 = vmatpush1.bf16.msra.mxu0 %v936
    %1325 = vmatprep.subr.bf16.mxu0 0
    %1326 = vmatpush1.bf16.msra.mxu0 %v935
    %1327 = vmatprep.subr.bf16.mxu0 0
    %1328 = vmatpush2.bf16.msra.mxu0 %v950
    %1329 = vmatprep.subr.bf16.mxu0 0
    %1330 = vmatpush2.bf16.msra.mxu0 %v949
    %1331 = vmatprep.subr.bf16.mxu0 0
    %1332 = vmatpush2.bf16.msra.mxu0 %v948
    %1333 = vmatprep.subr.bf16.mxu0 0
    %1334 = vmatpush2.bf16.msra.mxu0 %v947
    %1335 = vmatprep.subr.bf16.mxu0 0
    %1336 = vmatpush2.bf16.msra.mxu0 %v946
    %1337 = vmatprep.subr.bf16.mxu0 0
    %1338 = vmatpush2.bf16.msra.mxu0 %v945
    %1339 = vmatprep.subr.bf16.mxu0 0
    %1340 = vmatpush2.bf16.msra.mxu0 %v944
    %1341 = vmatprep.subr.bf16.mxu0 0
    %1342 = vmatpush2.bf16.msra.mxu0 %v943
    %1343 = vmatprep.mubr.bf16.mxu0 %v322
    %1344 = vmatmul.mubr.bf16.gmra.mxu0 %v321
    %v1345 = vpop.f32.mrf.mxu0
    %v1346 = vadd.f32 %v1306, %v1345
    %v1347 = vpop.f32.mrf.mxu0
    %v1348 = vpop.f32.mrf.mxu0
    %v1349 = vpop.f32.mrf.mxu0
    %1350 = vdwg.mxu0
    %1351 = vmatprep.subr.bf16.mxu0 0
    %1352 = vmatpush1.bf16.msra.mxu0 %v958
    %1353 = vmatprep.subr.bf16.mxu0 0
    %1354 = vmatpush1.bf16.msra.mxu0 %v957
    %1355 = vmatprep.subr.bf16.mxu0 0
    %1356 = vmatpush1.bf16.msra.mxu0 %v956
    %1357 = vmatprep.subr.bf16.mxu0 0
    %1358 = vmatpush1.bf16.msra.mxu0 %v955
    %1359 = vmatprep.subr.bf16.mxu0 0
    %1360 = vmatpush1.bf16.msra.mxu0 %v954
    %1361 = vmatprep.subr.bf16.mxu0 0
    %1362 = vmatpush1.bf16.msra.mxu0 %v953
    %1363 = vmatprep.subr.bf16.mxu0 0
    %1364 = vmatpush1.bf16.msra.mxu0 %v952
    %1365 = vmatprep.subr.bf16.mxu0 0
    %1366 = vmatpush1.bf16.msra.mxu0 %v951
    %1367 = vmatprep.subr.bf16.mxu0 0
    %1368 = vmatpush2.bf16.msra.mxu0 %v966
    %1369 = vmatprep.subr.bf16.mxu0 0
    %1370 = vmatpush2.bf16.msra.mxu0 %v965
    %1371 = vmatprep.subr.bf16.mxu0 0
    %1372 = vmatpush2.bf16.msra.mxu0 %v964
    %1373 = vmatprep.subr.bf16.mxu0 0
    %1374 = vmatpush2.bf16.msra.mxu0 %v963
    %1375 = vmatprep.subr.bf16.mxu0 0
    %1376 = vmatpush2.bf16.msra.mxu0 %v962
    %1377 = vmatprep.subr.bf16.mxu0 0
    %1378 = vmatpush2.bf16.msra.mxu0 %v961
    %1379 = vmatprep.subr.bf16.mxu0 0
    %1380 = vmatpush2.bf16.msra.mxu0 %v960
    %1381 = vmatprep.subr.bf16.mxu0 0
    %1382 = vmatpush2.bf16.msra.mxu0 %v959
    %1383 = vmatprep.mubr.bf16.mxu0 %v324
    %1384 = vmatmul.mubr.bf16.gmra.mxu0 %v323
    %v1385 = vpop.f32.mrf.mxu0
    %v1386 = vadd.f32 %v1346, %v1385
    %v1387 = vpop.f32.mrf.mxu0
    %v1388 = vpop.f32.mrf.mxu0
    %v1389 = vpop.f32.mrf.mxu0
    %1390 = vdwg.mxu0
    %1391 = vmatprep.subr.bf16.mxu0 0
    %1392 = vmatpush1.bf16.msra.mxu0 %v974
    %1393 = vmatprep.subr.bf16.mxu0 0
    %1394 = vmatpush1.bf16.msra.mxu0 %v973
    %1395 = vmatprep.subr.bf16.mxu0 0
    %1396 = vmatpush1.bf16.msra.mxu0 %v972
    %1397 = vmatprep.subr.bf16.mxu0 0
    %1398 = vmatpush1.bf16.msra.mxu0 %v971
    %1399 = vmatprep.subr.bf16.mxu0 0
    %1400 = vmatpush1.bf16.msra.mxu0 %v970
    %1401 = vmatprep.subr.bf16.mxu0 0
    %1402 = vmatpush1.bf16.msra.mxu0 %v969
    %1403 = vmatprep.subr.bf16.mxu0 0
    %1404 = vmatpush1.bf16.msra.mxu0 %v968
    %1405 = vmatprep.subr.bf16.mxu0 0
    %1406 = vmatpush1.bf16.msra.mxu0 %v967
    %1407 = vmatprep.subr.bf16.mxu0 0
    %1408 = vmatpush2.bf16.msra.mxu0 %v982
    %1409 = vmatprep.subr.bf16.mxu0 0
    %1410 = vmatpush2.bf16.msra.mxu0 %v981
    %1411 = vmatprep.subr.bf16.mxu0 0
    %1412 = vmatpush2.bf16.msra.mxu0 %v980
    %1413 = vmatprep.subr.bf16.mxu0 0
    %1414 = vmatpush2.bf16.msra.mxu0 %v979
    %1415 = vmatprep.subr.bf16.mxu0 0
    %1416 = vmatpush2.bf16.msra.mxu0 %v978
    %1417 = vmatprep.subr.bf16.mxu0 0
    %1418 = vmatpush2.bf16.msra.mxu0 %v977
    %1419 = vmatprep.subr.bf16.mxu0 0
    %1420 = vmatpush2.bf16.msra.mxu0 %v976
    %1421 = vmatprep.subr.bf16.mxu0 0
    %1422 = vmatpush2.bf16.msra.mxu0 %v975
    %1423 = vmatprep.mubr.bf16.mxu0 %v326
    %1424 = vmatmul.mubr.bf16.gmra.mxu0 %v325
    %v1425 = vpop.f32.mrf.mxu0
    %v1426 = vadd.f32 %v1386, %v1425
    %v1427 = vpop.f32.mrf.mxu0
    %v1428 = vpop.f32.mrf.mxu0
    %v1429 = vpop.f32.mrf.mxu0
    %1430 = vdwg.mxu0
    %1431 = vst [vmem:[#allocation2] sm:$0xff] %v1426
    // Predicated region
    $region14: #{discriminator_forward.9} parent=1 // pred_check
      _
    $region15: #{discriminator_forward.9} parent=1 // pred_check_branch
      %1433 = sbr.rel (0) target = $region17
    $region16: #{discriminator_forward.9} parent=1 // pred_region
      %s1435 = ssub.s32 128, 128
      %1436 = vsyncadd [#allocation3], %s1435
      %s1438 = sshll.u32 [#allocation2], 4
      %s1439 = int_to_ptr.vmem [resolvable:$true] %s1438
      %1441 = dma.vmem_to_hbm [thread:$0]  %s1439, 128, %s3, [#allocation3]
    $region17: #{discriminator_forward.9} parent=1 // pred_fallthru
      _
    // Predicated region
    $region18: #{discriminator_forward.9} parent=1 // pred_check
      _
    $region19: #{discriminator_forward.9} parent=1 // pred_check_branch
      %1443 = sbr.rel (0) target = $region21
    $region20: #{discriminator_forward.9} parent=1 // pred_region
      %1444 = dma.done [#allocation3], 128
    $region21: #{discriminator_forward.9} parent=1 // pred_fallthru
      _
    %1445 = vsyncpa [#allocation3], 1

</llo_original>
